<compile_context>
chip_gen: v5e
topology: v5e:2x2
jax: 0.10.0
libtpu: 0.0.40
codegen_flags: <defaults>
</compile_context>

<pallas_src>
import jax
import jax.numpy as jnp
from jax.experimental import pallas as pl
from jax.experimental.pallas import tpu as pltpu

# --- small config (stand-in for __C; real BUTD uses 1024/512/2/2048) ---------
HIDDEN_SIZE = 128      # __C.HIDDEN_SIZE
FLAT_MLP_SIZE = 64     # __C.FLAT_MLP_SIZE
FLAT_GLIMPSES = 2      # __C.FLAT_GLIMPSES
FLAT_OUT_SIZE = 128    # __C.FLAT_OUT_SIZE
BATCH = 16
SEQ = 16

NEG_INF = -1000000000.0  # matches masked_fill value in the PyTorch code


def attflat_kernel(x_ref, mask_ref, w1_ref, b1_ref, w2t_ref, b2_ref,
                   w3_ref, b3_ref, out_ref):
    tb, seq, hidden = x_ref.shape
    glimpses = w2t_ref.shape[0]
    out_size = out_ref.shape[-1]

    x = x_ref[...]                                      # (TB, S, H) f32
    x2d = x.reshape(tb * seq, hidden)

    # --- MLP: Linear(H -> MID) + ReLU on the MXU -----------------------------
    # TODO(synk): train-mode dropout inside the MLP is not implemented (eval only).
    h = jnp.dot(x2d, w1_ref[...], preferred_element_type=jnp.float32) + b1_ref[...]
    h = jnp.maximum(h, 0.0)                             # (TB*S, MID)
    h3 = h.reshape(tb, seq, -1)                         # (TB, S, MID)

    pad = mask_ref[...] != 0                            # (TB, S), S on lanes

    # linear_merge bias, broadcast once (hoisted out of the glimpse loop)
    acc = jnp.broadcast_to(b3_ref[...], (tb, out_size))

    for g in range(glimpses):                           # static unroll, G is tiny
        # --- Linear(MID -> 1) for glimpse g: VPU multiply + lane reduction ----
        w2g = w2t_ref[g:g + 1, :]                       # (1, MID)
        logit = jnp.sum(h3 * w2g, axis=-1) + b2_ref[:, g:g + 1]   # (TB, S)

        # --- masked_fill + softmax over the sequence axis (lane axis) ---------
        logit = jnp.where(pad, NEG_INF, logit)
        m = jnp.max(logit, axis=-1, keepdims=True)
        e = jnp.exp(logit - m)
        denom = jnp.sum(e, axis=-1, keepdims=True)
        att = e * pl.reciprocal(denom, approx=True)     # EUP reciprocal (free slot)

        # --- glimpse-weighted sum over S: VPU multiply + sublane reduction ----
        xg = jnp.sum(att[:, :, None] * x, axis=1)       # (TB, H)

        # --- linear_merge contribution of glimpse g (H x OUT on the MXU) ------
        acc = acc + jnp.dot(xg, w3_ref[g],
                            preferred_element_type=jnp.float32)

    out_ref[...] = acc.astype(out_ref.dtype)


def _pick_batch_tile(batch):
    """Generation-aware default: >=2 parallel grid steps on multi-TC chips
    (v7x), one fully-resident step on single-TC chips (v5e/v6e)."""
    try:
        kind = jax.devices()[0].device_kind.lower()
    except Exception:
        kind = ""
    if "v7" in kind:
        half = batch // 2
        if half > 0 and batch % half == 0 and half % 8 == 0:
            return half
    return batch


def _const_spec(shape, single_buffer):
    """BlockSpec for a grid-invariant operand (same block every grid step)."""
    zeros = (0,) * len(shape)

    def index_map(b):
        return zeros

    if single_buffer:
        # grid-invariant -> no need to double buffer (saves VMEM at prod sizes)
        return pl.BlockSpec(shape, index_map, pipeline_mode=pl.Buffered(1))
    return pl.BlockSpec(shape, index_map)


def attflat(x, x_mask, params, *, batch_tile=None):
    """x: (B, S, HIDDEN) f32; x_mask: (B, 1, 1, S) bool (True = masked position)."""
    B, S, H = x.shape
    w1, b1, w2, b2, w3, b3 = params
    MID = w1.shape[1]
    G = w2.shape[1]
    OUT = w3.shape[1]

    tb = _pick_batch_tile(B) if batch_tile is None else batch_tile
    assert B % tb == 0, "batch_tile must divide batch"
    # 2D mask/out blocks need a sublane-aligned (or full) batch tile.
    assert tb == B or tb % 8 == 0, "batch_tile must be a multiple of 8 (or == batch)"

    # squeeze(1).squeeze(1) -> lane-dense (B, S) int32 mask (S on lanes).
    mask = x_mask.reshape(B, S).astype(jnp.int32)
    w2t = jnp.transpose(w2)            # (G, MID): per-glimpse sublane slices
    w3g = w3.reshape(G, H, OUT)        # per-glimpse merge weights

    # explicit VMEM budget: double-buffered x/mask/out tiles + weights + slack
    itemsize = 4
    tiles = 2 * itemsize * (tb * S * H + tb * S + tb * OUT)
    weights = 2 * itemsize * (H * MID + MID + G * MID + G + G * H * OUT + OUT)
    vmem_limit = int(min(max(2 * (tiles + weights), 8 << 20), 64 << 20))

    def build_and_run(single_buffer_weights):
        in_specs = [
            pl.BlockSpec((tb, S, H), lambda b: (b, 0, 0)),     # x tile
            pl.BlockSpec((tb, S), lambda b: (b, 0)),           # mask tile (lane-dense)
            _const_spec((H, MID), single_buffer_weights),      # w1
            _const_spec((1, MID), single_buffer_weights),      # b1
            _const_spec((G, MID), single_buffer_weights),      # w2^T
            _const_spec((1, G), single_buffer_weights),        # b2
            _const_spec((G, H, OUT), single_buffer_weights),   # w3 per glimpse
            _const_spec((1, OUT), single_buffer_weights),      # b3
        ]
        return pl.pallas_call(
            attflat_kernel,
            out_shape=jax.ShapeDtypeStruct((B, OUT), jnp.float32),
            grid=(B // tb,),
            in_specs=in_specs,
            out_specs=pl.BlockSpec((tb, OUT), lambda b: (b, 0)),
            compiler_params=pltpu.CompilerParams(
                dimension_semantics=("parallel",),              # megacore / v7x sharding
                vmem_limit_bytes=vmem_limit),
        )(x, mask, w1, b1, w2t, b2, w3g, b3)

    try:
        return build_and_run(True)
    except Exception:
        # pl.Buffered(1) pipeline_mode unavailable on this jax version;
        # fall back to default double buffering (identical results).
        return build_and_run(False)


def attflat_reference(x, x_mask, params):
    """Pure-JAX reference matching the PyTorch forward (eval mode)."""
    w1, b1, w2, b2, w3, b3 = params
    B, S, H = x.shape
    G = w2.shape[1]
    h = jnp.maximum(jnp.einsum('bsh,hm->bsm', x, w1) + b1[None], 0.0)
    att = jnp.einsum('bsm,mg->bsg', h, w2) + b2[None]
    att = jnp.where(x_mask.reshape(B, S, 1), NEG_INF, att)
    att = jax.nn.softmax(att, axis=1)
    x_atted = jnp.concatenate(
        [jnp.sum(att[:, :, g:g + 1] * x, axis=1) for g in range(G)], axis=1)
    return x_atted @ w3 + b3


if __name__ == "__main__":
    key = jax.random.PRNGKey(0)
    kx, k1, k2, k3, kb1, kb2, kb3 = jax.random.split(key, 7)

    # deterministic synthetic parameters (shapes from AttFlat.__init__ / MLP)
    w1 = jax.random.normal(k1, (HIDDEN_SIZE, FLAT_MLP_SIZE), jnp.float32) * 0.05
    b1 = jax.random.normal(kb1, (1, FLAT_MLP_SIZE), jnp.float32) * 0.05
    w2 = jax.random.normal(k2, (FLAT_MLP_SIZE, FLAT_GLIMPSES), jnp.float32) * 0.05
    b2 = jax.random.normal(kb2, (1, FLAT_GLIMPSES), jnp.float32) * 0.05
    w3 = jax.random.normal(k3, (HIDDEN_SIZE * FLAT_GLIMPSES, FLAT_OUT_SIZE),
                           jnp.float32) * 0.05
    b3 = jax.random.normal(kb3, (1, FLAT_OUT_SIZE), jnp.float32) * 0.05
    params = (w1, b1, w2, b2, w3, b3)

    # inputs: suffix padding per sample plus one arbitrary interior masked slot
    x = jax.random.normal(kx, (BATCH, SEQ, HIDDEN_SIZE), jnp.float32)
    lengths = (4 + jax.random.randint(jax.random.PRNGKey(1), (BATCH,), 0, SEQ - 3)
               ).astype(jnp.int32)
    lengths = lengths.at[0].set(SEQ)                       # one fully-unmasked sample
    pos = jnp.arange(SEQ, dtype=jnp.int32)
    mask2d = pos[None, :] >= lengths[:, None]              # True = masked
    mask2d = mask2d.at[1, 2].set(True)                     # arbitrary-position mask
    x_mask = mask2d.reshape(BATCH, 1, 1, SEQ)

    ref = attflat_reference(x, x_mask, params)

    # default: generation-aware tile (2 parallel steps on v7x, 1 step elsewhere)
    out_default = jax.block_until_ready(attflat(x, x_mask, params))
    # explicit multi-step parallel grid (half-batch tiles)
    out_tiled = jax.block_until_ready(attflat(x, x_mask, params, batch_tile=BATCH // 2))

    for out in (out_default, out_tiled):
        assert out.shape == (BATCH, FLAT_OUT_SIZE)
        # tolerance covers the approximate EUP reciprocal in the softmax
        assert jnp.allclose(out, ref, atol=5e-3, rtol=5e-3), "mismatch vs reference"

    print("KERNEL_OK")
</pallas_src>

<mosaic_0001>
module attributes {stable_mosaic.version = 11 : i64} {
  func.func @attflat_kernel(%arg0: i32, %arg1: memref<16x16x128xf32, #tpu.memory_space<vmem>>, %arg2: memref<16x16xi32, #tpu.memory_space<vmem>>, %arg3: memref<128x64xf32, #tpu.memory_space<vmem>>, %arg4: memref<1x64xf32, #tpu.memory_space<vmem>>, %arg5: memref<2x64xf32, #tpu.memory_space<vmem>>, %arg6: memref<1x2xf32, #tpu.memory_space<vmem>>, %arg7: memref<2x128x128xf32, #tpu.memory_space<vmem>>, %arg8: memref<1x128xf32, #tpu.memory_space<vmem>>, %arg9: memref<16x128xf32, #tpu.memory_space<vmem>>) attributes {dimension_semantics = [#tpu.dimension_semantics<parallel>], iteration_bounds = array<i64: 1>, scalar_prefetch = 0 : i64, scratch_operands = 0 : i64, tpu.core_type = #tpu.core_type<tc>, window_params = [{transform_indices = @transform_0, window_bounds = array<i64: 16, 16, 128>}, {transform_indices = @transform_1, window_bounds = array<i64: 16, 16>}, {pipeline_mode = #tpu.pipeline_mode<synchronous>, transform_indices = @transform_2, window_bounds = array<i64: 128, 64>}, {pipeline_mode = #tpu.pipeline_mode<synchronous>, transform_indices = @transform_3, window_bounds = array<i64: 1, 64>}, {pipeline_mode = #tpu.pipeline_mode<synchronous>, transform_indices = @transform_4, window_bounds = array<i64: 2, 64>}, {pipeline_mode = #tpu.pipeline_mode<synchronous>, transform_indices = @transform_5, window_bounds = array<i64: 1, 2>}, {pipeline_mode = #tpu.pipeline_mode<synchronous>, transform_indices = @transform_6, window_bounds = array<i64: 2, 128, 128>}, {pipeline_mode = #tpu.pipeline_mode<synchronous>, transform_indices = @transform_7, window_bounds = array<i64: 1, 128>}, {transform_indices = @transform_8, window_bounds = array<i64: 16, 128>}]} {
    %c0 = arith.constant 0 : index
    %c0_0 = arith.constant 0 : index
    %c0_1 = arith.constant 0 : index
    %0 = vector.load %arg1[%c0, %c0_0, %c0_1] : memref<16x16x128xf32, #tpu.memory_space<vmem>>, vector<16x16x128xf32>
    %1 = vector.shape_cast %0 : vector<16x16x128xf32> to vector<256x128xf32>
    %c0_2 = arith.constant 0 : index
    %c0_3 = arith.constant 0 : index
    %2 = vector.load %arg3[%c0_2, %c0_3] : memref<128x64xf32, #tpu.memory_space<vmem>>, vector<128x64xf32>
    %cst = arith.constant dense<0.000000e+00> : vector<256x64xf32>
    %3 = tpu.matmul %1, %2, %cst {dimension_numbers = #tpu.dot_dimension_numbers<[1], [0], [0], [1], [0, 0, 1, 1], [], []>} : vector<256x128xf32>, vector<128x64xf32>, vector<256x64xf32> -> vector<256x64xf32>
    %c0_4 = arith.constant 0 : index
    %c0_5 = arith.constant 0 : index
    %4 = vector.load %arg4[%c0_4, %c0_5] : memref<1x64xf32, #tpu.memory_space<vmem>>, vector<1x64xf32>
    %5 = vector.broadcast %4 : vector<1x64xf32> to vector<256x64xf32>
    %6 = arith.addf %3, %5 : vector<256x64xf32>
    %cst_6 = arith.constant 0.000000e+00 : f32
    %7 = vector.broadcast %cst_6 : f32 to vector<256x64xf32>
    %8 = arith.maximumf %6, %7 : vector<256x64xf32>
    %9 = vector.shape_cast %8 : vector<256x64xf32> to vector<16x16x64xf32>
    %c0_7 = arith.constant 0 : index
    %c0_8 = arith.constant 0 : index
    %10 = vector.load %arg2[%c0_7, %c0_8] : memref<16x16xi32, #tpu.memory_space<vmem>>, vector<16x16xi32>
    %c0_i32 = arith.constant 0 : i32
    %11 = vector.broadcast %c0_i32 : i32 to vector<16x16xi32>
    %12 = arith.cmpi ne, %10, %11 : vector<16x16xi32>
    %c0_9 = arith.constant 0 : index
    %c0_10 = arith.constant 0 : index
    %13 = vector.load %arg8[%c0_9, %c0_10] : memref<1x128xf32, #tpu.memory_space<vmem>>, vector<1x128xf32>
    %14 = vector.shape_cast %13 : vector<1x128xf32> to vector<1x128xf32>
    %15 = vector.broadcast %14 : vector<1x128xf32> to vector<16x128xf32>
    %c0_11 = arith.constant 0 : index
    %c0_12 = arith.constant 0 : index
    %16 = vector.load %arg5[%c0_11, %c0_12] : memref<2x64xf32, #tpu.memory_space<vmem>>, vector<1x64xf32>
    %17 = vector.shape_cast %16 : vector<1x64xf32> to vector<1x1x64xf32>
    %18 = vector.broadcast %17 : vector<1x1x64xf32> to vector<16x16x64xf32>
    %19 = arith.mulf %9, %18 : vector<16x16x64xf32>
    %cst_13 = arith.constant dense<0.000000e+00> : vector<16x16xf32>
    %20 = vector.multi_reduction <add>, %19, %cst_13 [2] : vector<16x16x64xf32> to vector<16x16xf32>
    %c0_14 = arith.constant 0 : index
    %c0_15 = arith.constant 0 : index
    %21 = vector.load %arg6[%c0_14, %c0_15] : memref<1x2xf32, #tpu.memory_space<vmem>>, vector<1x1xf32>
    %22 = vector.broadcast %21 : vector<1x1xf32> to vector<16x16xf32>
    %23 = arith.addf %20, %22 : vector<16x16xf32>
    %cst_16 = arith.constant -1.000000e+09 : f32
    %24 = vector.broadcast %cst_16 : f32 to vector<16x16xf32>
    %25 = arith.select %12, %24, %23 : vector<16x16xi1>, vector<16x16xf32>
    %cst_17 = arith.constant dense<0xFF800000> : vector<16xf32>
    %26 = vector.multi_reduction <maximumf>, %25, %cst_17 [1] : vector<16x16xf32> to vector<16xf32>
    %27 = vector.shape_cast %26 : vector<16xf32> to vector<16x1xf32>
    %28 = vector.broadcast %27 : vector<16x1xf32> to vector<16x16xf32>
    %29 = arith.subf %25, %28 : vector<16x16xf32>
    %30 = math.exp %29 : vector<16x16xf32>
    %cst_18 = arith.constant dense<0.000000e+00> : vector<16xf32>
    %31 = vector.multi_reduction <add>, %30, %cst_18 [1] : vector<16x16xf32> to vector<16xf32>
    %32 = vector.shape_cast %31 : vector<16xf32> to vector<16x1xf32>
    %33 = tpu.reciprocal %32 {approx = true} : vector<16x1xf32> -> vector<16x1xf32>
    %34 = vector.broadcast %33 : vector<16x1xf32> to vector<16x16xf32>
    %35 = arith.mulf %30, %34 : vector<16x16xf32>
    %36 = vector.shape_cast %35 : vector<16x16xf32> to vector<16x16x1xf32>
    %37 = vector.broadcast %36 : vector<16x16x1xf32> to vector<16x16x128xf32>
    %38 = arith.mulf %37, %0 : vector<16x16x128xf32>
    %cst_19 = arith.constant dense<0.000000e+00> : vector<16x128xf32>
    %39 = vector.multi_reduction <add>, %38, %cst_19 [1] : vector<16x16x128xf32> to vector<16x128xf32>
    %c0_20 = arith.constant 0 : index
    %c0_21 = arith.constant 0 : index
    %c0_22 = arith.constant 0 : index
    %40 = vector.load %arg7[%c0_20, %c0_21, %c0_22] : memref<2x128x128xf32, #tpu.memory_space<vmem>>, vector<1x128x128xf32>
    %41 = vector.shape_cast %40 : vector<1x128x128xf32> to vector<128x128xf32>
    %cst_23 = arith.constant dense<0.000000e+00> : vector<16x128xf32>
    %42 = tpu.matmul %39, %41, %cst_23 {dimension_numbers = #tpu.dot_dimension_numbers<[1], [0], [0], [1], [0, 0, 1, 1], [], []>} : vector<16x128xf32>, vector<128x128xf32>, vector<16x128xf32> -> vector<16x128xf32>
    %43 = arith.addf %15, %42 : vector<16x128xf32>
    %c1 = arith.constant 1 : index
    %c0_24 = arith.constant 0 : index
    %44 = vector.load %arg5[%c1, %c0_24] : memref<2x64xf32, #tpu.memory_space<vmem>>, vector<1x64xf32>
    %45 = vector.shape_cast %44 : vector<1x64xf32> to vector<1x1x64xf32>
    %46 = vector.broadcast %45 : vector<1x1x64xf32> to vector<16x16x64xf32>
    %47 = arith.mulf %9, %46 : vector<16x16x64xf32>
    %cst_25 = arith.constant dense<0.000000e+00> : vector<16x16xf32>
    %48 = vector.multi_reduction <add>, %47, %cst_25 [2] : vector<16x16x64xf32> to vector<16x16xf32>
    %c0_26 = arith.constant 0 : index
    %c1_27 = arith.constant 1 : index
    %49 = vector.load %arg6[%c0_26, %c1_27] : memref<1x2xf32, #tpu.memory_space<vmem>>, vector<1x1xf32>
    %50 = vector.broadcast %49 : vector<1x1xf32> to vector<16x16xf32>
    %51 = arith.addf %48, %50 : vector<16x16xf32>
    %cst_28 = arith.constant -1.000000e+09 : f32
    %52 = vector.broadcast %cst_28 : f32 to vector<16x16xf32>
    %53 = arith.select %12, %52, %51 : vector<16x16xi1>, vector<16x16xf32>
    %cst_29 = arith.constant dense<0xFF800000> : vector<16xf32>
    %54 = vector.multi_reduction <maximumf>, %53, %cst_29 [1] : vector<16x16xf32> to vector<16xf32>
    %55 = vector.shape_cast %54 : vector<16xf32> to vector<16x1xf32>
    %56 = vector.broadcast %55 : vector<16x1xf32> to vector<16x16xf32>
    %57 = arith.subf %53, %56 : vector<16x16xf32>
    %58 = math.exp %57 : vector<16x16xf32>
    %cst_30 = arith.constant dense<0.000000e+00> : vector<16xf32>
    %59 = vector.multi_reduction <add>, %58, %cst_30 [1] : vector<16x16xf32> to vector<16xf32>
    %60 = vector.shape_cast %59 : vector<16xf32> to vector<16x1xf32>
    %61 = tpu.reciprocal %60 {approx = true} : vector<16x1xf32> -> vector<16x1xf32>
    %62 = vector.broadcast %61 : vector<16x1xf32> to vector<16x16xf32>
    %63 = arith.mulf %58, %62 : vector<16x16xf32>
    %64 = vector.shape_cast %63 : vector<16x16xf32> to vector<16x16x1xf32>
    %65 = vector.broadcast %64 : vector<16x16x1xf32> to vector<16x16x128xf32>
    %66 = arith.mulf %65, %0 : vector<16x16x128xf32>
    %cst_31 = arith.constant dense<0.000000e+00> : vector<16x128xf32>
    %67 = vector.multi_reduction <add>, %66, %cst_31 [1] : vector<16x16x128xf32> to vector<16x128xf32>
    %c1_32 = arith.constant 1 : index
    %c0_33 = arith.constant 0 : index
    %c0_34 = arith.constant 0 : index
    %68 = vector.load %arg7[%c1_32, %c0_33, %c0_34] : memref<2x128x128xf32, #tpu.memory_space<vmem>>, vector<1x128x128xf32>
    %69 = vector.shape_cast %68 : vector<1x128x128xf32> to vector<128x128xf32>
    %cst_35 = arith.constant dense<0.000000e+00> : vector<16x128xf32>
    %70 = tpu.matmul %67, %69, %cst_35 {dimension_numbers = #tpu.dot_dimension_numbers<[1], [0], [0], [1], [0, 0, 1, 1], [], []>} : vector<16x128xf32>, vector<128x128xf32>, vector<16x128xf32> -> vector<16x128xf32>
    %71 = arith.addf %43, %70 : vector<16x128xf32>
    %c0_36 = arith.constant 0 : index
    %c0_37 = arith.constant 0 : index
    %72 = vector.load %arg9[%c0_36, %c0_37] : memref<16x128xf32, #tpu.memory_space<vmem>>, vector<16x128xf32>
    tpu.vector_store %arg9[%c0_36, %c0_37], %71 {strides = array<i32>} : memref<16x128xf32, #tpu.memory_space<vmem>>, vector<16x128xf32>,
    return
  }
  func.func @transform_0(%arg0: i32) -> (i32, i32, i32) {
    %c0_i32 = arith.constant 0 : i32
    %c0_i32_0 = arith.constant 0 : i32
    %c0_i32_1 = arith.constant 0 : i32
    return %arg0, %c0_i32, %c0_i32_0 : i32, i32, i32
  }
  func.func @transform_1(%arg0: i32) -> (i32, i32) {
    %c0_i32 = arith.constant 0 : i32
    %c0_i32_0 = arith.constant 0 : i32
    return %arg0, %c0_i32 : i32, i32
  }
  func.func @transform_2(%arg0: i32) -> (i32, i32) {
    %c0_i32 = arith.constant 0 : i32
    %c0_i32_0 = arith.constant 0 : i32
    %c0_i32_1 = arith.constant 0 : i32
    return %c0_i32, %c0_i32_0 : i32, i32
  }
  func.func @transform_3(%arg0: i32) -> (i32, i32) {
    %c0_i32 = arith.constant 0 : i32
    %c0_i32_0 = arith.constant 0 : i32
    %c0_i32_1 = arith.constant 0 : i32
    return %c0_i32, %c0_i32_0 : i32, i32
  }
  func.func @transform_4(%arg0: i32) -> (i32, i32) {
    %c0_i32 = arith.constant 0 : i32
    %c0_i32_0 = arith.constant 0 : i32
    %c0_i32_1 = arith.constant 0 : i32
    return %c0_i32, %c0_i32_0 : i32, i32
  }
  func.func @transform_5(%arg0: i32) -> (i32, i32) {
    %c0_i32 = arith.constant 0 : i32
    %c0_i32_0 = arith.constant 0 : i32
    %c0_i32_1 = arith.constant 0 : i32
    return %c0_i32, %c0_i32_0 : i32, i32
  }
  func.func @transform_6(%arg0: i32) -> (i32, i32, i32) {
    %c0_i32 = arith.constant 0 : i32
    %c0_i32_0 = arith.constant 0 : i32
    %c0_i32_1 = arith.constant 0 : i32
    %c0_i32_2 = arith.constant 0 : i32
    return %c0_i32, %c0_i32_0, %c0_i32_1 : i32, i32, i32
  }
  func.func @transform_7(%arg0: i32) -> (i32, i32) {
    %c0_i32 = arith.constant 0 : i32
    %c0_i32_0 = arith.constant 0 : i32
    %c0_i32_1 = arith.constant 0 : i32
    return %c0_i32, %c0_i32_0 : i32, i32
  }
  func.func @transform_8(%arg0: i32) -> (i32, i32) {
    %c0_i32 = arith.constant 0 : i32
    %c0_i32_0 = arith.constant 0 : i32
    return %arg0, %c0_i32 : i32, i32
  }
}

module attributes {stable_mosaic.version = 11 : i64} {
  func.func @attflat_kernel(%arg0: i32, %arg1: memref<16x16x128xf32, #tpu.memory_space<vmem>>, %arg2: memref<16x16xi32, #tpu.memory_space<vmem>>, %arg3: memref<128x64xf32, #tpu.memory_space<vmem>>, %arg4: memref<1x64xf32, #tpu.memory_space<vmem>>, %arg5: memref<2x64xf32, #tpu.memory_space<vmem>>, %arg6: memref<1x2xf32, #tpu.memory_space<vmem>>, %arg7: memref<2x128x128xf32, #tpu.memory_space<vmem>>, %arg8: memref<1x128xf32, #tpu.memory_space<vmem>>, %arg9: memref<16x128xf32, #tpu.memory_space<vmem>>) attributes {dimension_semantics = [#tpu.dimension_semantics<parallel>], iteration_bounds = array<i64: 1>, scalar_prefetch = 0 : i64, scratch_operands = 0 : i64, tpu.core_type = #tpu.core_type<tc>, window_params = [{transform_indices = @transform_0, window_bounds = array<i64: 16, 16, 128>}, {transform_indices = @transform_1, window_bounds = array<i64: 16, 16>}, {pipeline_mode = #tpu.pipeline_mode<synchronous>, transform_indices = @transform_2, window_bounds = array<i64: 128, 64>}, {pipeline_mode = #tpu.pipeline_mode<synchronous>, transform_indices = @transform_3, window_bounds = array<i64: 1, 64>}, {pipeline_mode = #tpu.pipeline_mode<synchronous>, transform_indices = @transform_4, window_bounds = array<i64: 2, 64>}, {pipeline_mode = #tpu.pipeline_mode<synchronous>, transform_indices = @transform_5, window_bounds = array<i64: 1, 2>}, {pipeline_mode = #tpu.pipeline_mode<synchronous>, transform_indices = @transform_6, window_bounds = array<i64: 2, 128, 128>}, {pipeline_mode = #tpu.pipeline_mode<synchronous>, transform_indices = @transform_7, window_bounds = array<i64: 1, 128>}, {transform_indices = @transform_8, window_bounds = array<i64: 16, 128>}]} {
    %c0 = arith.constant 0 : index
    %c0_0 = arith.constant 0 : index
    %c0_1 = arith.constant 0 : index
    %0 = vector.load %arg1[%c0, %c0_0, %c0_1] : memref<16x16x128xf32, #tpu.memory_space<vmem>>, vector<16x16x128xf32>
    %1 = vector.shape_cast %0 : vector<16x16x128xf32> to vector<256x128xf32>
    %c0_2 = arith.constant 0 : index
    %c0_3 = arith.constant 0 : index
    %2 = vector.load %arg3[%c0_2, %c0_3] : memref<128x64xf32, #tpu.memory_space<vmem>>, vector<128x64xf32>
    %cst = arith.constant dense<0.000000e+00> : vector<256x64xf32>
    %3 = tpu.matmul %1, %2, %cst {dimension_numbers = #tpu.dot_dimension_numbers<[1], [0], [0], [1], [0, 0, 1, 1], [], []>} : vector<256x128xf32>, vector<128x64xf32>, vector<256x64xf32> -> vector<256x64xf32>
    %c0_4 = arith.constant 0 : index
    %c0_5 = arith.constant 0 : index
    %4 = vector.load %arg4[%c0_4, %c0_5] : memref<1x64xf32, #tpu.memory_space<vmem>>, vector<1x64xf32>
    %5 = vector.broadcast %4 : vector<1x64xf32> to vector<256x64xf32>
    %6 = arith.addf %3, %5 : vector<256x64xf32>
    %cst_6 = arith.constant 0.000000e+00 : f32
    %7 = vector.broadcast %cst_6 : f32 to vector<256x64xf32>
    %8 = arith.maximumf %6, %7 : vector<256x64xf32>
    %9 = vector.shape_cast %8 : vector<256x64xf32> to vector<16x16x64xf32>
    %c0_7 = arith.constant 0 : index
    %c0_8 = arith.constant 0 : index
    %10 = vector.load %arg2[%c0_7, %c0_8] : memref<16x16xi32, #tpu.memory_space<vmem>>, vector<16x16xi32>
    %c0_i32 = arith.constant 0 : i32
    %11 = vector.broadcast %c0_i32 : i32 to vector<16x16xi32>
    %12 = arith.cmpi ne, %10, %11 : vector<16x16xi32>
    %c0_9 = arith.constant 0 : index
    %c0_10 = arith.constant 0 : index
    %13 = vector.load %arg8[%c0_9, %c0_10] : memref<1x128xf32, #tpu.memory_space<vmem>>, vector<1x128xf32>
    %14 = vector.shape_cast %13 : vector<1x128xf32> to vector<1x128xf32>
    %15 = vector.broadcast %14 : vector<1x128xf32> to vector<16x128xf32>
    %c0_11 = arith.constant 0 : index
    %c0_12 = arith.constant 0 : index
    %16 = vector.load %arg5[%c0_11, %c0_12] : memref<2x64xf32, #tpu.memory_space<vmem>>, vector<1x64xf32>
    %17 = vector.shape_cast %16 : vector<1x64xf32> to vector<1x1x64xf32>
    %18 = vector.broadcast %17 : vector<1x1x64xf32> to vector<16x16x64xf32>
    %19 = arith.mulf %9, %18 : vector<16x16x64xf32>
    %cst_13 = arith.constant dense<0.000000e+00> : vector<16x16xf32>
    %20 = vector.multi_reduction <add>, %19, %cst_13 [2] : vector<16x16x64xf32> to vector<16x16xf32>
    %c0_14 = arith.constant 0 : index
    %c0_15 = arith.constant 0 : index
    %21 = vector.load %arg6[%c0_14, %c0_15] : memref<1x2xf32, #tpu.memory_space<vmem>>, vector<1x1xf32>
    %22 = vector.broadcast %21 : vector<1x1xf32> to vector<16x16xf32>
    %23 = arith.addf %20, %22 : vector<16x16xf32>
    %cst_16 = arith.constant -1.000000e+09 : f32
    %24 = vector.broadcast %cst_16 : f32 to vector<16x16xf32>
    %25 = arith.select %12, %24, %23 : vector<16x16xi1>, vector<16x16xf32>
    %cst_17 = arith.constant dense<0xFF800000> : vector<16xf32>
    %26 = vector.multi_reduction <maximumf>, %25, %cst_17 [1] : vector<16x16xf32> to vector<16xf32>
    %27 = vector.shape_cast %26 : vector<16xf32> to vector<16x1xf32>
    %28 = vector.broadcast %27 : vector<16x1xf32> to vector<16x16xf32>
    %29 = arith.subf %25, %28 : vector<16x16xf32>
    %30 = math.exp %29 : vector<16x16xf32>
    %cst_18 = arith.constant dense<0.000000e+00> : vector<16xf32>
    %31 = vector.multi_reduction <add>, %30, %cst_18 [1] : vector<16x16xf32> to vector<16xf32>
    %32 = vector.shape_cast %31 : vector<16xf32> to vector<16x1xf32>
    %33 = tpu.reciprocal %32 {approx = true} : vector<16x1xf32> -> vector<16x1xf32>
    %34 = vector.broadcast %33 : vector<16x1xf32> to vector<16x16xf32>
    %35 = arith.mulf %30, %34 : vector<16x16xf32>
    %36 = vector.shape_cast %35 : vector<16x16xf32> to vector<16x16x1xf32>
    %37 = vector.broadcast %36 : vector<16x16x1xf32> to vector<16x16x128xf32>
    %38 = arith.mulf %37, %0 : vector<16x16x128xf32>
    %cst_19 = arith.constant dense<0.000000e+00> : vector<16x128xf32>
    %39 = vector.multi_reduction <add>, %38, %cst_19 [1] : vector<16x16x128xf32> to vector<16x128xf32>
    %c0_20 = arith.constant 0 : index
    %c0_21 = arith.constant 0 : index
    %c0_22 = arith.constant 0 : index
    %40 = vector.load %arg7[%c0_20, %c0_21, %c0_22] : memref<2x128x128xf32, #tpu.memory_space<vmem>>, vector<1x128x128xf32>
    %41 = vector.shape_cast %40 : vector<1x128x128xf32> to vector<128x128xf32>
    %cst_23 = arith.constant dense<0.000000e+00> : vector<16x128xf32>
    %42 = tpu.matmul %39, %41, %cst_23 {dimension_numbers = #tpu.dot_dimension_numbers<[1], [0], [0], [1], [0, 0, 1, 1], [], []>} : vector<16x128xf32>, vector<128x128xf32>, vector<16x128xf32> -> vector<16x128xf32>
    %43 = arith.addf %15, %42 : vector<16x128xf32>
    %c1 = arith.constant 1 : index
    %c0_24 = arith.constant 0 : index
    %44 = vector.load %arg5[%c1, %c0_24] : memref<2x64xf32, #tpu.memory_space<vmem>>, vector<1x64xf32>
    %45 = vector.shape_cast %44 : vector<1x64xf32> to vector<1x1x64xf32>
    %46 = vector.broadcast %45 : vector<1x1x64xf32> to vector<16x16x64xf32>
    %47 = arith.mulf %9, %46 : vector<16x16x64xf32>
    %cst_25 = arith.constant dense<0.000000e+00> : vector<16x16xf32>
    %48 = vector.multi_reduction <add>, %47, %cst_25 [2] : vector<16x16x64xf32> to vector<16x16xf32>
    %c0_26 = arith.constant 0 : index
    %c1_27 = arith.constant 1 : index
    %49 = vector.load %arg6[%c0_26, %c1_27] : memref<1x2xf32, #tpu.memory_space<vmem>>, vector<1x1xf32>
    %50 = vector.broadcast %49 : vector<1x1xf32> to vector<16x16xf32>
    %51 = arith.addf %48, %50 : vector<16x16xf32>
    %cst_28 = arith.constant -1.000000e+09 : f32
    %52 = vector.broadcast %cst_28 : f32 to vector<16x16xf32>
    %53 = arith.select %12, %52, %51 : vector<16x16xi1>, vector<16x16xf32>
    %cst_29 = arith.constant dense<0xFF800000> : vector<16xf32>
    %54 = vector.multi_reduction <maximumf>, %53, %cst_29 [1] : vector<16x16xf32> to vector<16xf32>
    %55 = vector.shape_cast %54 : vector<16xf32> to vector<16x1xf32>
    %56 = vector.broadcast %55 : vector<16x1xf32> to vector<16x16xf32>
    %57 = arith.subf %53, %56 : vector<16x16xf32>
    %58 = math.exp %57 : vector<16x16xf32>
    %cst_30 = arith.constant dense<0.000000e+00> : vector<16xf32>
    %59 = vector.multi_reduction <add>, %58, %cst_30 [1] : vector<16x16xf32> to vector<16xf32>
    %60 = vector.shape_cast %59 : vector<16xf32> to vector<16x1xf32>
    %61 = tpu.reciprocal %60 {approx = true} : vector<16x1xf32> -> vector<16x1xf32>
    %62 = vector.broadcast %61 : vector<16x1xf32> to vector<16x16xf32>
    %63 = arith.mulf %58, %62 : vector<16x16xf32>
    %64 = vector.shape_cast %63 : vector<16x16xf32> to vector<16x16x1xf32>
    %65 = vector.broadcast %64 : vector<16x16x1xf32> to vector<16x16x128xf32>
    %66 = arith.mulf %65, %0 : vector<16x16x128xf32>
    %cst_31 = arith.constant dense<0.000000e+00> : vector<16x128xf32>
    %67 = vector.multi_reduction <add>, %66, %cst_31 [1] : vector<16x16x128xf32> to vector<16x128xf32>
    %c1_32 = arith.constant 1 : index
    %c0_33 = arith.constant 0 : index
    %c0_34 = arith.constant 0 : index
    %68 = vector.load %arg7[%c1_32, %c0_33, %c0_34] : memref<2x128x128xf32, #tpu.memory_space<vmem>>, vector<1x128x128xf32>
    %69 = vector.shape_cast %68 : vector<1x128x128xf32> to vector<128x128xf32>
    %cst_35 = arith.constant dense<0.000000e+00> : vector<16x128xf32>
    %70 = tpu.matmul %67, %69, %cst_35 {dimension_numbers = #tpu.dot_dimension_numbers<[1], [0], [0], [1], [0, 0, 1, 1], [], []>} : vector<16x128xf32>, vector<128x128xf32>, vector<16x128xf32> -> vector<16x128xf32>
    %71 = arith.addf %43, %70 : vector<16x128xf32>
    %c0_36 = arith.constant 0 : index
    %c0_37 = arith.constant 0 : index
    %72 = vector.load %arg9[%c0_36, %c0_37] : memref<16x128xf32, #tpu.memory_space<vmem>>, vector<16x128xf32>
    tpu.vector_store %arg9[%c0_36, %c0_37], %71 {strides = array<i32>} : memref<16x128xf32, #tpu.memory_space<vmem>>, vector<16x128xf32>,
    return
  }
  func.func @transform_0(%arg0: i32) -> (i32, i32, i32) {
    %c0_i32 = arith.constant 0 : i32
    %c0_i32_0 = arith.constant 0 : i32
    %c0_i32_1 = arith.constant 0 : i32
    return %arg0, %c0_i32, %c0_i32_0 : i32, i32, i32
  }
  func.func @transform_1(%arg0: i32) -> (i32, i32) {
    %c0_i32 = arith.constant 0 : i32
    %c0_i32_0 = arith.constant 0 : i32
    return %arg0, %c0_i32 : i32, i32
  }
  func.func @transform_2(%arg0: i32) -> (i32, i32) {
    %c0_i32 = arith.constant 0 : i32
    %c0_i32_0 = arith.constant 0 : i32
    %c0_i32_1 = arith.constant 0 : i32
    return %c0_i32, %c0_i32_0 : i32, i32
  }
  func.func @transform_3(%arg0: i32) -> (i32, i32) {
    %c0_i32 = arith.constant 0 : i32
    %c0_i32_0 = arith.constant 0 : i32
    %c0_i32_1 = arith.constant 0 : i32
    return %c0_i32, %c0_i32_0 : i32, i32
  }
  func.func @transform_4(%arg0: i32) -> (i32, i32) {
    %c0_i32 = arith.constant 0 : i32
    %c0_i32_0 = arith.constant 0 : i32
    %c0_i32_1 = arith.constant 0 : i32
    return %c0_i32, %c0_i32_0 : i32, i32
  }
  func.func @transform_5(%arg0: i32) -> (i32, i32) {
    %c0_i32 = arith.constant 0 : i32
    %c0_i32_0 = arith.constant 0 : i32
    %c0_i32_1 = arith.constant 0 : i32
    return %c0_i32, %c0_i32_0 : i32, i32
  }
  func.func @transform_6(%arg0: i32) -> (i32, i32, i32) {
    %c0_i32 = arith.constant 0 : i32
    %c0_i32_0 = arith.constant 0 : i32
    %c0_i32_1 = arith.constant 0 : i32
    %c0_i32_2 = arith.constant 0 : i32
    return %c0_i32, %c0_i32_0, %c0_i32_1 : i32, i32, i32
  }
  func.func @transform_7(%arg0: i32) -> (i32, i32) {
    %c0_i32 = arith.constant 0 : i32
    %c0_i32_0 = arith.constant 0 : i32
    %c0_i32_1 = arith.constant 0 : i32
    return %c0_i32, %c0_i32_0 : i32, i32
  }
  func.func @transform_8(%arg0: i32) -> (i32, i32) {
    %c0_i32 = arith.constant 0 : i32
    %c0_i32_0 = arith.constant 0 : i32
    return %arg0, %c0_i32 : i32, i32
  }
}

</mosaic_0001>

<llo_original>
// kernel: tpu_custom_call.1
$region0: #{tpu_custom_call.1}
  #allocation0 [shape = 'u32[]', space=smem, size = 0x4, offset = 0x4, fixed_abs, tag = 'smem constant byte address 0x4 - core index']
  #allocation1 [shape = 'u32[72,128]{1,0:T(1,128)}', space=vmem, size = 0x9000, scoped, tag = 'internal scratch']
  %s0 = inlined_call_operand.hbm [shape: f32[16,16,128], index: 0, kind: input, shape index: {}]
  %s1 = inlined_call_operand.vmem [shape: s32[16,16], index: 1, kind: input, shape index: {}]
  %s2 = inlined_call_operand.vmem [shape: f32[128,64], index: 2, kind: input, shape index: {}]
  %s3 = inlined_call_operand.vmem [shape: f32[1,64], index: 3, kind: input, shape index: {}]
  %s4 = inlined_call_operand.vmem [shape: f32[2,64], index: 4, kind: input, shape index: {}]
  %s5 = inlined_call_operand.vmem [shape: f32[1,2], index: 5, kind: input, shape index: {}]
  %s6 = inlined_call_operand.hbm [shape: f32[2,128,128], index: 6, kind: input, shape index: {}]
  %s7 = inlined_call_operand.vmem [shape: f32[1,128], index: 7, kind: input, shape index: {}]
  %s8 = inlined_call_operand.hbm [shape: f32[16,128], index: 8, kind: output, shape index: {}]
  %s9 = sld [smem:[#allocation0]]
  $region50: #{tpu_custom_call.1} parent=0
    _
  %s11 = ssub.s32 1, %s9
  %s12 = scalar_select 0, %s11, %s9
  $region1: #{tpu_custom_call.1} parent=0
    #allocation2 [shape = 'u8[131072]{0}', space=vmem, size = 0x20000, scoped, tag = 'input window, operand 0, single buffered']
    #allocation3 [shape = 's32[1]{0}', space=sflag, size = 0x4, scoped, tag = 'scoped memory for tpu_custom_call.1']
    #allocation4 [shape = 's32[1]{0}', space=sflag, size = 0x4, scoped, tag = 'scoped memory for tpu_custom_call.1']
    #allocation5 [shape = 'u8[131072]{0}', space=vmem, size = 0x20000, scoped, tag = 'input window, operand 6, single buffered']
    #allocation6 [shape = 's32[1]{0}', space=sflag, size = 0x4, scoped, tag = 'scoped memory for tpu_custom_call.1']
    #allocation7 [shape = 'u8[8192]{0}', space=vmem, size = 0x2000, scoped, tag = 'output window, operand 0, single buffered']
    %13 = vsyncpa [#allocation3], 0
    %14 = vsyncpa [#allocation6], 0
    %15 = vsyncpa [#allocation4], 0
    // Predicated region
    $region2: #{tpu_custom_call.1} parent=1 // pred_check
      _
    $region3: #{tpu_custom_call.1} parent=1 // pred_check_branch
      %17 = sbr.rel (0) target = $region5
    $region4: #{tpu_custom_call.1} parent=1 // pred_region
      %19 = vsyncadd [#allocation3], 0
      %s20 = sshll.u32 %s0, 4
      %s21 = int_to_ptr.hbm [resolvable:$true] %s20
      %s22 = sshll.u32 [#allocation2], 4
      %s23 = int_to_ptr.vmem [resolvable:$true] %s22
      %28 = dma.hbm_to_vmem [thread:$0]  %s21, 4096, %s23, [#allocation3], 128, 128, 8
    $region5: #{tpu_custom_call.1} parent=1 // pred_fallthru
      _
    // Predicated region
    $region6: #{tpu_custom_call.1} parent=1 // pred_check
      _
    $region7: #{tpu_custom_call.1} parent=1 // pred_check_branch
      %30 = sbr.rel (0) target = $region9
    $region8: #{tpu_custom_call.1} parent=1 // pred_region
      _
    $region9: #{tpu_custom_call.1} parent=1 // pred_fallthru
      _
    // Predicated region
    $region10: #{tpu_custom_call.1} parent=1 // pred_check
      _
    $region11: #{tpu_custom_call.1} parent=1 // pred_check_branch
      %32 = sbr.rel (0) target = $region13
    $region12: #{tpu_custom_call.1} parent=1 // pred_region
      _
    $region13: #{tpu_custom_call.1} parent=1 // pred_fallthru
      _
    // Predicated region
    $region14: #{tpu_custom_call.1} parent=1 // pred_check
      _
    $region15: #{tpu_custom_call.1} parent=1 // pred_check_branch
      %34 = sbr.rel (0) target = $region17
    $region16: #{tpu_custom_call.1} parent=1 // pred_region
      _
    $region17: #{tpu_custom_call.1} parent=1 // pred_fallthru
      _
    // Predicated region
    $region18: #{tpu_custom_call.1} parent=1 // pred_check
      _
    $region19: #{tpu_custom_call.1} parent=1 // pred_check_branch
      %36 = sbr.rel (0) target = $region21
    $region20: #{tpu_custom_call.1} parent=1 // pred_region
      _
    $region21: #{tpu_custom_call.1} parent=1 // pred_fallthru
      _
    // Predicated region
    $region22: #{tpu_custom_call.1} parent=1 // pred_check
      _
    $region23: #{tpu_custom_call.1} parent=1 // pred_check_branch
      %38 = sbr.rel (0) target = $region25
    $region24: #{tpu_custom_call.1} parent=1 // pred_region
      _
    $region25: #{tpu_custom_call.1} parent=1 // pred_fallthru
      _
    // Predicated region
    $region26: #{tpu_custom_call.1} parent=1 // pred_check
      _
    $region27: #{tpu_custom_call.1} parent=1 // pred_check_branch
      %40 = sbr.rel (0) target = $region29
    $region28: #{tpu_custom_call.1} parent=1 // pred_region
      %42 = vsyncadd [#allocation6], 0
      %s43 = sshll.u32 %s6, 4
      %s44 = int_to_ptr.hbm [resolvable:$true] %s43
      %s45 = sshll.u32 [#allocation5], 4
      %s46 = int_to_ptr.vmem [resolvable:$true] %s45
      %51 = dma.hbm_to_vmem [thread:$0]  %s44, 4096, %s46, [#allocation6], 128, 128, 8
    $region29: #{tpu_custom_call.1} parent=1 // pred_fallthru
      _
    // Predicated region
    $region30: #{tpu_custom_call.1} parent=1 // pred_check
      _
    $region31: #{tpu_custom_call.1} parent=1 // pred_check_branch
      %53 = sbr.rel (0) target = $region33
    $region32: #{tpu_custom_call.1} parent=1 // pred_region
      _
    $region33: #{tpu_custom_call.1} parent=1 // pred_fallthru
      _
    // Predicated region
    $region34: #{tpu_custom_call.1} parent=1 // pred_check
      _
    $region35: #{tpu_custom_call.1} parent=1 // pred_check_branch
      %55 = sbr.rel (0) target = $region37
    $region36: #{tpu_custom_call.1} parent=1 // pred_region
      %57 = dma.done [#allocation3], 4096
    $region37: #{tpu_custom_call.1} parent=1 // pred_fallthru
      _
    // Predicated region
    $region38: #{tpu_custom_call.1} parent=1 // pred_check
      _
    $region39: #{tpu_custom_call.1} parent=1 // pred_check_branch
      %59 = sbr.rel (0) target = $region41
    $region40: #{tpu_custom_call.1} parent=1 // pred_region
      %61 = dma.done [#allocation6], 4096
    $region41: #{tpu_custom_call.1} parent=1 // pred_fallthru
      _
    %v62 = vld [vmem:[#allocation2] sm:$0xff]
    %v63 = vld [vmem:[#allocation2 + $0x8] sm:$0xff]
    %v64 = vld [vmem:[#allocation2 + $0x10] sm:$0xff]
    %v65 = vld [vmem:[#allocation2 + $0x18] sm:$0xff]
    %v66 = vld [vmem:[#allocation2 + $0x20] sm:$0xff]
    %v67 = vld [vmem:[#allocation2 + $0x28] sm:$0xff]
    %v68 = vld [vmem:[#allocation2 + $0x30] sm:$0xff]
    %v69 = vld [vmem:[#allocation2 + $0x38] sm:$0xff]
    %v70 = vld [vmem:[#allocation2 + $0x40] sm:$0xff]
    %v71 = vld [vmem:[#allocation2 + $0x48] sm:$0xff]
    %v72 = vld [vmem:[#allocation2 + $0x50] sm:$0xff]
    %v73 = vld [vmem:[#allocation2 + $0x58] sm:$0xff]
    %v74 = vld [vmem:[#allocation2 + $0x60] sm:$0xff]
    %v75 = vld [vmem:[#allocation2 + $0x68] sm:$0xff]
    %v76 = vld [vmem:[#allocation2 + $0x70] sm:$0xff]
    %v77 = vld [vmem:[#allocation2 + $0x78] sm:$0xff]
    %v78 = vld [vmem:[#allocation2 + $0x80] sm:$0xff]
    %v79 = vld [vmem:[#allocation2 + $0x88] sm:$0xff]
    %v80 = vld [vmem:[#allocation2 + $0x90] sm:$0xff]
    %v81 = vld [vmem:[#allocation2 + $0x98] sm:$0xff]
    %v82 = vld [vmem:[#allocation2 + $0xa0] sm:$0xff]
    %v83 = vld [vmem:[#allocation2 + $0xa8] sm:$0xff]
    %v84 = vld [vmem:[#allocation2 + $0xb0] sm:$0xff]
    %v85 = vld [vmem:[#allocation2 + $0xb8] sm:$0xff]
    %v86 = vld [vmem:[#allocation2 + $0xc0] sm:$0xff]
    %v87 = vld [vmem:[#allocation2 + $0xc8] sm:$0xff]
    %v88 = vld [vmem:[#allocation2 + $0xd0] sm:$0xff]
    %v89 = vld [vmem:[#allocation2 + $0xd8] sm:$0xff]
    %v90 = vld [vmem:[#allocation2 + $0xe0] sm:$0xff]
    %v91 = vld [vmem:[#allocation2 + $0xe8] sm:$0xff]
    %v92 = vld [vmem:[#allocation2 + $0xf0] sm:$0xff]
    %v93 = vld [vmem:[#allocation2 + $0xf8] sm:$0xff]
    %v94 = vld [vmem:[%s2] sm:$0xff]
    %v95 = vld [vmem:[%s2 + $0x8] sm:$0xff]
    %v96 = vld [vmem:[%s2 + $0x10] sm:$0xff]
    %v97 = vld [vmem:[%s2 + $0x18] sm:$0xff]
    %v98 = vld [vmem:[%s2 + $0x20] sm:$0xff]
    %v99 = vld [vmem:[%s2 + $0x28] sm:$0xff]
    %v100 = vld [vmem:[%s2 + $0x30] sm:$0xff]
    %v101 = vld [vmem:[%s2 + $0x38] sm:$0xff]
    %v102 = vld [vmem:[%s2 + $0x40] sm:$0xff]
    %v103 = vld [vmem:[%s2 + $0x48] sm:$0xff]
    %v104 = vld [vmem:[%s2 + $0x50] sm:$0xff]
    %v105 = vld [vmem:[%s2 + $0x58] sm:$0xff]
    %v106 = vld [vmem:[%s2 + $0x60] sm:$0xff]
    %v107 = vld [vmem:[%s2 + $0x68] sm:$0xff]
    %v108 = vld [vmem:[%s2 + $0x70] sm:$0xff]
    %v109 = vld [vmem:[%s2 + $0x78] sm:$0xff]
    %v110 = vld [vmem:[%s3] sm:$0x1]
    %v112 = vperm.slane %v110, 0
    %114 = vmatpush.msra.mxu0 %v109
    %115 = vmatpush.msra.mxu0 %v108
    %116 = vmatpush.msra.mxu0 %v107
    %117 = vmatpush.msra.mxu0 %v106
    %118 = vmatpush.msra.mxu0 %v105
    %119 = vmatpush.msra.mxu0 %v104
    %120 = vmatpush.msra.mxu0 %v103
    %121 = vmatpush.msra.mxu0 %v102
    %122 = vmatpush.msra.mxu0 %v101
    %123 = vmatpush.msra.mxu0 %v100
    %124 = vmatpush.msra.mxu0 %v99
    %125 = vmatpush.msra.mxu0 %v98
    %126 = vmatpush.msra.mxu0 %v97
    %127 = vmatpush.msra.mxu0 %v96
    %128 = vmatpush.msra.mxu0 %v95
    %129 = vmatpush.msra.mxu0 %v94
    %130 = vmatmul.f32.gmra.mxu0 %v62
    %v131 = vpop.f32.mrf.mxu0
    %v132 = vadd.f32 %v112, %v131
    %133 = vmatmul.f32.gmra.mxu0 %v63
    %v134 = vpop.f32.mrf.mxu0
    %v135 = vadd.f32 %v112, %v134
    %136 = vmatmul.f32.gmra.mxu0 %v64
    %v137 = vpop.f32.mrf.mxu0
    %v138 = vadd.f32 %v112, %v137
    %139 = vmatmul.f32.gmra.mxu0 %v65
    %v140 = vpop.f32.mrf.mxu0
    %v141 = vadd.f32 %v112, %v140
    %142 = vmatmul.f32.gmra.mxu0 %v66
    %v143 = vpop.f32.mrf.mxu0
    %v144 = vadd.f32 %v112, %v143
    %145 = vmatmul.f32.gmra.mxu0 %v67
    %v146 = vpop.f32.mrf.mxu0
    %v147 = vadd.f32 %v112, %v146
    %148 = vmatmul.f32.gmra.mxu0 %v68
    %v149 = vpop.f32.mrf.mxu0
    %v150 = vadd.f32 %v112, %v149
    %151 = vmatmul.f32.gmra.mxu0 %v69
    %v152 = vpop.f32.mrf.mxu0
    %v153 = vadd.f32 %v112, %v152
    %154 = vmatmul.f32.gmra.mxu0 %v70
    %v155 = vpop.f32.mrf.mxu0
    %v156 = vadd.f32 %v112, %v155
    %157 = vmatmul.f32.gmra.mxu0 %v71
    %v158 = vpop.f32.mrf.mxu0
    %v159 = vadd.f32 %v112, %v158
    %160 = vmatmul.f32.gmra.mxu0 %v72
    %v161 = vpop.f32.mrf.mxu0
    %v162 = vadd.f32 %v112, %v161
    %163 = vmatmul.f32.gmra.mxu0 %v73
    %v164 = vpop.f32.mrf.mxu0
    %v165 = vadd.f32 %v112, %v164
    %166 = vmatmul.f32.gmra.mxu0 %v74
    %v167 = vpop.f32.mrf.mxu0
    %v168 = vadd.f32 %v112, %v167
    %169 = vmatmul.f32.gmra.mxu0 %v75
    %v170 = vpop.f32.mrf.mxu0
    %v171 = vadd.f32 %v112, %v170
    %172 = vmatmul.f32.gmra.mxu0 %v76
    %v173 = vpop.f32.mrf.mxu0
    %v174 = vadd.f32 %v112, %v173
    %175 = vmatmul.f32.gmra.mxu0 %v77
    %v176 = vpop.f32.mrf.mxu0
    %v177 = vadd.f32 %v112, %v176
    %178 = vmatmul.f32.gmra.mxu0 %v78
    %v179 = vpop.f32.mrf.mxu0
    %v180 = vadd.f32 %v112, %v179
    %181 = vmatmul.f32.gmra.mxu0 %v79
    %v182 = vpop.f32.mrf.mxu0
    %v183 = vadd.f32 %v112, %v182
    %184 = vmatmul.f32.gmra.mxu0 %v80
    %v185 = vpop.f32.mrf.mxu0
    %v186 = vadd.f32 %v112, %v185
    %187 = vmatmul.f32.gmra.mxu0 %v81
    %v188 = vpop.f32.mrf.mxu0
    %v189 = vadd.f32 %v112, %v188
    %190 = vmatmul.f32.gmra.mxu0 %v82
    %v191 = vpop.f32.mrf.mxu0
    %v192 = vadd.f32 %v112, %v191
    %193 = vmatmul.f32.gmra.mxu0 %v83
    %v194 = vpop.f32.mrf.mxu0
    %v195 = vadd.f32 %v112, %v194
    %196 = vmatmul.f32.gmra.mxu0 %v84
    %v197 = vpop.f32.mrf.mxu0
    %v198 = vadd.f32 %v112, %v197
    %199 = vmatmul.f32.gmra.mxu0 %v85
    %v200 = vpop.f32.mrf.mxu0
    %v201 = vadd.f32 %v112, %v200
    %202 = vmatmul.f32.gmra.mxu0 %v86
    %v203 = vpop.f32.mrf.mxu0
    %v204 = vadd.f32 %v112, %v203
    %205 = vmatmul.f32.gmra.mxu0 %v87
    %v206 = vpop.f32.mrf.mxu0
    %v207 = vadd.f32 %v112, %v206
    %208 = vmatmul.f32.gmra.mxu0 %v88
    %v209 = vpop.f32.mrf.mxu0
    %v210 = vadd.f32 %v112, %v209
    %211 = vmatmul.f32.gmra.mxu0 %v89
    %v212 = vpop.f32.mrf.mxu0
    %v213 = vadd.f32 %v112, %v212
    %214 = vmatmul.f32.gmra.mxu0 %v90
    %v215 = vpop.f32.mrf.mxu0
    %v216 = vadd.f32 %v112, %v215
    %217 = vmatmul.f32.gmra.mxu0 %v91
    %v218 = vpop.f32.mrf.mxu0
    %v219 = vadd.f32 %v112, %v218
    %220 = vmatmul.f32.gmra.mxu0 %v92
    %v221 = vpop.f32.mrf.mxu0
    %v222 = vadd.f32 %v112, %v221
    %223 = vmatmul.f32.gmra.mxu0 %v93
    %v224 = vpop.f32.mrf.mxu0
    %v225 = vadd.f32 %v112, %v224
    %226 = vdwg.mxu0
    %v227 = vmax.f32 %v132, 0.0
    %v228 = vmax.f32 %v135, 0.0
    %v229 = vmax.f32 %v138, 0.0
    %v230 = vmax.f32 %v141, 0.0
    %v231 = vmax.f32 %v144, 0.0
    %v232 = vmax.f32 %v147, 0.0
    %v233 = vmax.f32 %v150, 0.0
    %v234 = vmax.f32 %v153, 0.0
    %v235 = vmax.f32 %v156, 0.0
    %v236 = vmax.f32 %v159, 0.0
    %v237 = vmax.f32 %v162, 0.0
    %v238 = vmax.f32 %v165, 0.0
    %v239 = vmax.f32 %v168, 0.0
    %v240 = vmax.f32 %v171, 0.0
    %v241 = vmax.f32 %v174, 0.0
    %v242 = vmax.f32 %v177, 0.0
    %v243 = vmax.f32 %v180, 0.0
    %v244 = vmax.f32 %v183, 0.0
    %v245 = vmax.f32 %v186, 0.0
    %v246 = vmax.f32 %v189, 0.0
    %v247 = vmax.f32 %v192, 0.0
    %v248 = vmax.f32 %v195, 0.0
    %v249 = vmax.f32 %v198, 0.0
    %v250 = vmax.f32 %v201, 0.0
    %v251 = vmax.f32 %v204, 0.0
    %v252 = vmax.f32 %v207, 0.0
    %v253 = vmax.f32 %v210, 0.0
    %v254 = vmax.f32 %v213, 0.0
    %v255 = vmax.f32 %v216, 0.0
    %v256 = vmax.f32 %v219, 0.0
    %v257 = vmax.f32 %v222, 0.0
    %v258 = vmax.f32 %v225, 0.0
    %v259 = vld [vmem:[%s1] sm:$0xff]
    %v260 = vld [vmem:[%s1 + $0x8] sm:$0xff]
    %vm261 = vcmp.ne.s32.totalorder %v259, 0
    %vm262 = vcmp.ne.s32.totalorder %v260, 0
    %v263 = vld [vmem:[%s7] sm:$0x1]
    %v265 = vperm.slane %v263, 0
    %v267 = vld [vmem:[%s4] sm:$0x1]
    %v268 = vperm.slane %v267, 0
    %v269 = vmul.f32 %v227, %v268
    %v270 = vmul.f32 %v228, %v268
    %v271 = vmul.f32 %v229, %v268
    %v272 = vmul.f32 %v230, %v268
    %v273 = vmul.f32 %v231, %v268
    %v274 = vmul.f32 %v232, %v268
    %v275 = vmul.f32 %v233, %v268
    %v276 = vmul.f32 %v234, %v268
    %v277 = vmul.f32 %v235, %v268
    %v278 = vmul.f32 %v236, %v268
    %v279 = vmul.f32 %v237, %v268
    %v280 = vmul.f32 %v238, %v268
    %v281 = vmul.f32 %v239, %v268
    %v282 = vmul.f32 %v240, %v268
    %v283 = vmul.f32 %v241, %v268
    %v284 = vmul.f32 %v242, %v268
    %v285 = vmul.f32 %v243, %v268
    %v286 = vmul.f32 %v244, %v268
    %v287 = vmul.f32 %v245, %v268
    %v288 = vmul.f32 %v246, %v268
    %v289 = vmul.f32 %v247, %v268
    %v290 = vmul.f32 %v248, %v268
    %v291 = vmul.f32 %v249, %v268
    %v292 = vmul.f32 %v250, %v268
    %v293 = vmul.f32 %v251, %v268
    %v294 = vmul.f32 %v252, %v268
    %v295 = vmul.f32 %v253, %v268
    %v296 = vmul.f32 %v254, %v268
    %v297 = vmul.f32 %v255, %v268
    %v298 = vmul.f32 %v256, %v268
    %v299 = vmul.f32 %v257, %v268
    %v300 = vmul.f32 %v258, %v268
    %vm301 = vcmask 523264
    %v302 = vsel %vm301, %v269, 0.0
    %303 = vadd.xlane.f32.xlu0 %v302
    %v304 = vpop.xlane.xlu0 %303
    %v305 = vsel %vm301, %v270, 0.0
    %306 = vadd.xlane.f32.xlu0 %v305
    %v307 = vpop.xlane.xlu0 %306
    %v308 = vsel %vm301, %v271, 0.0
    %309 = vadd.xlane.f32.xlu0 %v308
    %v310 = vpop.xlane.xlu0 %309
    %v311 = vsel %vm301, %v272, 0.0
    %312 = vadd.xlane.f32.xlu0 %v311
    %v313 = vpop.xlane.xlu0 %312
    %v314 = vsel %vm301, %v273, 0.0
    %315 = vadd.xlane.f32.xlu0 %v314
    %v316 = vpop.xlane.xlu0 %315
    %v317 = vsel %vm301, %v274, 0.0
    %318 = vadd.xlane.f32.xlu0 %v317
    %v319 = vpop.xlane.xlu0 %318
    %v320 = vsel %vm301, %v275, 0.0
    %321 = vadd.xlane.f32.xlu0 %v320
    %v322 = vpop.xlane.xlu0 %321
    %v323 = vsel %vm301, %v276, 0.0
    %324 = vadd.xlane.f32.xlu0 %v323
    %v325 = vpop.xlane.xlu0 %324
    %v326 = vsel %vm301, %v277, 0.0
    %327 = vadd.xlane.f32.xlu0 %v326
    %v328 = vpop.xlane.xlu0 %327
    %v329 = vsel %vm301, %v278, 0.0
    %330 = vadd.xlane.f32.xlu0 %v329
    %v331 = vpop.xlane.xlu0 %330
    %v332 = vsel %vm301, %v279, 0.0
    %333 = vadd.xlane.f32.xlu0 %v332
    %v334 = vpop.xlane.xlu0 %333
    %v335 = vsel %vm301, %v280, 0.0
    %336 = vadd.xlane.f32.xlu0 %v335
    %v337 = vpop.xlane.xlu0 %336
    %v338 = vsel %vm301, %v281, 0.0
    %339 = vadd.xlane.f32.xlu0 %v338
    %v340 = vpop.xlane.xlu0 %339
    %v341 = vsel %vm301, %v282, 0.0
    %342 = vadd.xlane.f32.xlu0 %v341
    %v343 = vpop.xlane.xlu0 %342
    %v344 = vsel %vm301, %v283, 0.0
    %345 = vadd.xlane.f32.xlu0 %v344
    %v346 = vpop.xlane.xlu0 %345
    %v347 = vsel %vm301, %v284, 0.0
    %348 = vadd.xlane.f32.xlu0 %v347
    %v349 = vpop.xlane.xlu0 %348
    %v350 = vsel %vm301, %v285, 0.0
    %351 = vadd.xlane.f32.xlu0 %v350
    %v352 = vpop.xlane.xlu0 %351
    %v353 = vsel %vm301, %v286, 0.0
    %354 = vadd.xlane.f32.xlu0 %v353
    %v355 = vpop.xlane.xlu0 %354
    %v356 = vsel %vm301, %v287, 0.0
    %357 = vadd.xlane.f32.xlu0 %v356
    %v358 = vpop.xlane.xlu0 %357
    %v359 = vsel %vm301, %v288, 0.0
    %360 = vadd.xlane.f32.xlu0 %v359
    %v361 = vpop.xlane.xlu0 %360
    %v362 = vsel %vm301, %v289, 0.0
    %363 = vadd.xlane.f32.xlu0 %v362
    %v364 = vpop.xlane.xlu0 %363
    %v365 = vsel %vm301, %v290, 0.0
    %366 = vadd.xlane.f32.xlu0 %v365
    %v367 = vpop.xlane.xlu0 %366
    %v368 = vsel %vm301, %v291, 0.0
    %369 = vadd.xlane.f32.xlu0 %v368
    %v370 = vpop.xlane.xlu0 %369
    %v371 = vsel %vm301, %v292, 0.0
    %372 = vadd.xlane.f32.xlu0 %v371
    %v373 = vpop.xlane.xlu0 %372
    %v374 = vsel %vm301, %v293, 0.0
    %375 = vadd.xlane.f32.xlu0 %v374
    %v376 = vpop.xlane.xlu0 %375
    %v377 = vsel %vm301, %v294, 0.0
    %378 = vadd.xlane.f32.xlu0 %v377
    %v379 = vpop.xlane.xlu0 %378
    %v380 = vsel %vm301, %v295, 0.0
    %381 = vadd.xlane.f32.xlu0 %v380
    %v382 = vpop.xlane.xlu0 %381
    %v383 = vsel %vm301, %v296, 0.0
    %384 = vadd.xlane.f32.xlu0 %v383
    %v385 = vpop.xlane.xlu0 %384
    %v386 = vsel %vm301, %v297, 0.0
    %387 = vadd.xlane.f32.xlu0 %v386
    %v388 = vpop.xlane.xlu0 %387
    %v389 = vsel %vm301, %v298, 0.0
    %390 = vadd.xlane.f32.xlu0 %v389
    %v391 = vpop.xlane.xlu0 %390
    %v392 = vsel %vm301, %v299, 0.0
    %393 = vadd.xlane.f32.xlu0 %v392
    %v394 = vpop.xlane.xlu0 %393
    %v395 = vsel %vm301, %v300, 0.0
    %396 = vadd.xlane.f32.xlu0 %v395
    %v397 = vpop.xlane.xlu0 %396
    %v398 = vld [vmem:[%s5] sm:$0x1]
    %v400 = vperm.slane %v398, 0
    %401 = vset.pattern.permute.xlu0 0
    %402 = vperm.xlu0 %401, %v400
    %v403 = vpop.permute.xlu0 %402
    %v405 = vadd.f32 %v304, %v403
    %v406 = vadd.f32 %v307, %v403
    %v407 = vadd.f32 %v310, %v403
    %v408 = vadd.f32 %v313, %v403
    %v409 = vadd.f32 %v316, %v403
    %v410 = vadd.f32 %v319, %v403
    %v411 = vadd.f32 %v322, %v403
    %v412 = vadd.f32 %v325, %v403
    %v413 = vadd.f32 %v328, %v403
    %v414 = vadd.f32 %v331, %v403
    %v415 = vadd.f32 %v334, %v403
    %v416 = vadd.f32 %v337, %v403
    %v417 = vadd.f32 %v340, %v403
    %v418 = vadd.f32 %v343, %v403
    %v419 = vadd.f32 %v346, %v403
    %v420 = vadd.f32 %v349, %v403
    %v421 = vadd.f32 %v352, %v403
    %v422 = vadd.f32 %v355, %v403
    %v423 = vadd.f32 %v358, %v403
    %v424 = vadd.f32 %v361, %v403
    %v425 = vadd.f32 %v364, %v403
    %v426 = vadd.f32 %v367, %v403
    %v427 = vadd.f32 %v370, %v403
    %v428 = vadd.f32 %v373, %v403
    %v429 = vadd.f32 %v376, %v403
    %v430 = vadd.f32 %v379, %v403
    %v431 = vadd.f32 %v382, %v403
    %v432 = vadd.f32 %v385, %v403
    %v433 = vadd.f32 %v388, %v403
    %v434 = vadd.f32 %v391, %v403
    %v435 = vadd.f32 %v394, %v403
    %v436 = vadd.f32 %v397, %v403
    %v469 = vlaneseq
    %v470 = vand.u32 %v469, 127
    %v471 = vperm.slane %v405, %v470
    %v472 = vadd.s32 %v470, 4294967288
    %v473 = vperm.slane %v406, %v472
    %vm474 = vcmask 130112
    %v475 = vsel %vm474, %v473, %v471
    %v476 = vperm.slane %v407, %v470
    %v477 = vperm.slane %v408, %v472
    %v478 = vsel %vm474, %v477, %v476
    %v479 = vperm.slane %v409, %v470
    %v480 = vperm.slane %v410, %v472
    %v481 = vsel %vm474, %v480, %v479
    %v482 = vperm.slane %v411, %v470
    %v483 = vperm.slane %v412, %v472
    %v484 = vsel %vm474, %v483, %v482
    %v485 = vperm.slane %v413, %v470
    %v486 = vperm.slane %v414, %v472
    %v487 = vsel %vm474, %v486, %v485
    %v488 = vperm.slane %v415, %v470
    %v489 = vperm.slane %v416, %v472
    %v490 = vsel %vm474, %v489, %v488
    %v491 = vperm.slane %v417, %v470
    %v492 = vperm.slane %v418, %v472
    %v493 = vsel %vm474, %v492, %v491
    %v494 = vperm.slane %v419, %v470
    %v495 = vperm.slane %v420, %v472
    %v496 = vsel %vm474, %v495, %v494
    %v497 = vperm.slane %v421, %v470
    %v498 = vperm.slane %v422, %v472
    %v499 = vsel %vm474, %v498, %v497
    %v500 = vperm.slane %v423, %v470
    %v501 = vperm.slane %v424, %v472
    %v502 = vsel %vm474, %v501, %v500
    %v503 = vperm.slane %v425, %v470
    %v504 = vperm.slane %v426, %v472
    %v505 = vsel %vm474, %v504, %v503
    %v506 = vperm.slane %v427, %v470
    %v507 = vperm.slane %v428, %v472
    %v508 = vsel %vm474, %v507, %v506
    %v509 = vperm.slane %v429, %v470
    %v510 = vperm.slane %v430, %v472
    %v511 = vsel %vm474, %v510, %v509
    %v512 = vperm.slane %v431, %v470
    %v513 = vperm.slane %v432, %v472
    %v514 = vsel %vm474, %v513, %v512
    %v515 = vperm.slane %v433, %v470
    %v516 = vperm.slane %v434, %v472
    %v517 = vsel %vm474, %v516, %v515
    %v518 = vperm.slane %v435, %v470
    %v519 = vperm.slane %v436, %v472
    %v520 = vsel %vm474, %v519, %v518
    %vm521 = vcmask 1041409
    %v522 = vsel %vm521, %v478, %v475
    %vm523 = vcmask 1042434
    %v524 = vsel %vm523, %v481, %v522
    %vm525 = vcmask 1043459
    %v526 = vsel %vm525, %v484, %v524
    %vm527 = vcmask 1044484
    %v528 = vsel %vm527, %v487, %v526
    %vm529 = vcmask 1045509
    %v530 = vsel %vm529, %v490, %v528
    %vm531 = vcmask 1046534
    %v532 = vsel %vm531, %v493, %v530
    %vm533 = vcmask 1047559
    %v534 = vsel %vm533, %v496, %v532
    %v535 = vsel %vm521, %v502, %v499
    %v536 = vsel %vm523, %v505, %v535
    %v537 = vsel %vm525, %v508, %v536
    %v538 = vsel %vm527, %v511, %v537
    %v539 = vsel %vm529, %v514, %v538
    %v540 = vsel %vm531, %v517, %v539
    %v541 = vsel %vm533, %v520, %v540
    %v544 = vsel %vm261, -1e+09, %v534
    %v545 = vsel %vm262, -1e+09, %v541
    %vm546 = vcmask 130048
    %v547 = vsel %vm546, %v544, -inf
    %548 = vmax.xlane.f32.xlu0 %v547
    %v549 = vpop.xlane.xlu0 %548
    %v550 = vsel %vm546, %v545, -inf
    %551 = vmax.xlane.f32.xlu0 %v550
    %v552 = vpop.xlane.xlu0 %551
    %v553 = vsub.f32 %v544, %v549
    %v554 = vsub.f32 %v545, %v552
    %v555 = vmul.f32 %v553, 1.442695
    %v556 = vpow.pop %v555
    %v557 = vmul.f32 %v554, 1.442695
    %v558 = vpow.pop %v557
    %v559 = vsel %vm546, %v556, 0.0
    %560 = vadd.xlane.f32.xlu0 %v559
    %v561 = vpop.xlane.xlu0 %560
    %v562 = vsel %vm546, %v558, 0.0
    %563 = vadd.xlane.f32.xlu0 %v562
    %v564 = vpop.xlane.xlu0 %563
    %v565 = vrcp.pop %v561
    %v566 = vrcp.pop %v564
    %v567 = vmul.f32 %v556, %v565
    %v568 = vmul.f32 %v558, %v566
    %v569 = vperm.slane %v567, 0
    %v570 = vlaneseq
    %v571 = vshrl.u32 %v570, 7
    %573 = vset.pattern.permute.xlu0 %v571
    %574 = vperm.xlu0 %573, %v569
    %v575 = vpop.permute.xlu0 %574
    %v576 = vlaneseq
    %v577 = vshrl.u32 %v576, 7
    %v578 = vadd.s32 %v577, 8
    %579 = vset.pattern.permute.xlu0 %v578
    %580 = vperm.xlu0 %579, %v569
    %v581 = vpop.permute.xlu0 %580
    %v582 = vperm.slane %v567, 1
    %v583 = vlaneseq
    %v584 = vshrl.u32 %v583, 7
    %586 = vset.pattern.permute.xlu0 %v584
    %587 = vperm.xlu0 %586, %v582
    %v588 = vpop.permute.xlu0 %587
    %v589 = vlaneseq
    %v590 = vshrl.u32 %v589, 7
    %v591 = vadd.s32 %v590, 8
    %592 = vset.pattern.permute.xlu0 %v591
    %593 = vperm.xlu0 %592, %v582
    %v594 = vpop.permute.xlu0 %593
    %v595 = vperm.slane %v567, 2
    %v596 = vlaneseq
    %v597 = vshrl.u32 %v596, 7
    %599 = vset.pattern.permute.xlu0 %v597
    %600 = vperm.xlu0 %599, %v595
    %v601 = vpop.permute.xlu0 %600
    %v602 = vlaneseq
    %v603 = vshrl.u32 %v602, 7
    %v604 = vadd.s32 %v603, 8
    %605 = vset.pattern.permute.xlu0 %v604
    %606 = vperm.xlu0 %605, %v595
    %v607 = vpop.permute.xlu0 %606
    %v608 = vperm.slane %v567, 3
    %v609 = vlaneseq
    %v610 = vshrl.u32 %v609, 7
    %612 = vset.pattern.permute.xlu0 %v610
    %613 = vperm.xlu0 %612, %v608
    %v614 = vpop.permute.xlu0 %613
    %v615 = vlaneseq
    %v616 = vshrl.u32 %v615, 7
    %v617 = vadd.s32 %v616, 8
    %618 = vset.pattern.permute.xlu0 %v617
    %619 = vperm.xlu0 %618, %v608
    %v620 = vpop.permute.xlu0 %619
    %v621 = vperm.slane %v567, 4
    %v622 = vlaneseq
    %v623 = vshrl.u32 %v622, 7
    %625 = vset.pattern.permute.xlu0 %v623
    %626 = vperm.xlu0 %625, %v621
    %v627 = vpop.permute.xlu0 %626
    %v628 = vlaneseq
    %v629 = vshrl.u32 %v628, 7
    %v630 = vadd.s32 %v629, 8
    %631 = vset.pattern.permute.xlu0 %v630
    %632 = vperm.xlu0 %631, %v621
    %v633 = vpop.permute.xlu0 %632
    %v634 = vperm.slane %v567, 5
    %v635 = vlaneseq
    %v636 = vshrl.u32 %v635, 7
    %638 = vset.pattern.permute.xlu0 %v636
    %639 = vperm.xlu0 %638, %v634
    %v640 = vpop.permute.xlu0 %639
    %v641 = vlaneseq
    %v642 = vshrl.u32 %v641, 7
    %v643 = vadd.s32 %v642, 8
    %644 = vset.pattern.permute.xlu0 %v643
    %645 = vperm.xlu0 %644, %v634
    %v646 = vpop.permute.xlu0 %645
    %v647 = vperm.slane %v567, 6
    %v648 = vlaneseq
    %v649 = vshrl.u32 %v648, 7
    %651 = vset.pattern.permute.xlu0 %v649
    %652 = vperm.xlu0 %651, %v647
    %v653 = vpop.permute.xlu0 %652
    %v654 = vlaneseq
    %v655 = vshrl.u32 %v654, 7
    %v656 = vadd.s32 %v655, 8
    %657 = vset.pattern.permute.xlu0 %v656
    %658 = vperm.xlu0 %657, %v647
    %v659 = vpop.permute.xlu0 %658
    %v660 = vperm.slane %v567, 7
    %v661 = vlaneseq
    %v662 = vshrl.u32 %v661, 7
    %664 = vset.pattern.permute.xlu0 %v662
    %665 = vperm.xlu0 %664, %v660
    %v666 = vpop.permute.xlu0 %665
    %v667 = vlaneseq
    %v668 = vshrl.u32 %v667, 7
    %v669 = vadd.s32 %v668, 8
    %670 = vset.pattern.permute.xlu0 %v669
    %671 = vperm.xlu0 %670, %v660
    %v672 = vpop.permute.xlu0 %671
    %v673 = vperm.slane %v568, 0
    %v674 = vlaneseq
    %v675 = vshrl.u32 %v674, 7
    %677 = vset.pattern.permute.xlu0 %v675
    %678 = vperm.xlu0 %677, %v673
    %v679 = vpop.permute.xlu0 %678
    %v680 = vlaneseq
    %v681 = vshrl.u32 %v680, 7
    %v682 = vadd.s32 %v681, 8
    %683 = vset.pattern.permute.xlu0 %v682
    %684 = vperm.xlu0 %683, %v673
    %v685 = vpop.permute.xlu0 %684
    %v686 = vperm.slane %v568, 1
    %v687 = vlaneseq
    %v688 = vshrl.u32 %v687, 7
    %690 = vset.pattern.permute.xlu0 %v688
    %691 = vperm.xlu0 %690, %v686
    %v692 = vpop.permute.xlu0 %691
    %v693 = vlaneseq
    %v694 = vshrl.u32 %v693, 7
    %v695 = vadd.s32 %v694, 8
    %696 = vset.pattern.permute.xlu0 %v695
    %697 = vperm.xlu0 %696, %v686
    %v698 = vpop.permute.xlu0 %697
    %v699 = vperm.slane %v568, 2
    %v700 = vlaneseq
    %v701 = vshrl.u32 %v700, 7
    %703 = vset.pattern.permute.xlu0 %v701
    %704 = vperm.xlu0 %703, %v699
    %v705 = vpop.permute.xlu0 %704
    %v706 = vlaneseq
    %v707 = vshrl.u32 %v706, 7
    %v708 = vadd.s32 %v707, 8
    %709 = vset.pattern.permute.xlu0 %v708
    %710 = vperm.xlu0 %709, %v699
    %v711 = vpop.permute.xlu0 %710
    %v712 = vperm.slane %v568, 3
    %v713 = vlaneseq
    %v714 = vshrl.u32 %v713, 7
    %716 = vset.pattern.permute.xlu0 %v714
    %717 = vperm.xlu0 %716, %v712
    %v718 = vpop.permute.xlu0 %717
    %v719 = vlaneseq
    %v720 = vshrl.u32 %v719, 7
    %v721 = vadd.s32 %v720, 8
    %722 = vset.pattern.permute.xlu0 %v721
    %723 = vperm.xlu0 %722, %v712
    %v724 = vpop.permute.xlu0 %723
    %v725 = vperm.slane %v568, 4
    %v726 = vlaneseq
    %v727 = vshrl.u32 %v726, 7
    %729 = vset.pattern.permute.xlu0 %v727
    %730 = vperm.xlu0 %729, %v725
    %v731 = vpop.permute.xlu0 %730
    %v732 = vlaneseq
    %v733 = vshrl.u32 %v732, 7
    %v734 = vadd.s32 %v733, 8
    %735 = vset.pattern.permute.xlu0 %v734
    %736 = vperm.xlu0 %735, %v725
    %v737 = vpop.permute.xlu0 %736
    %v738 = vperm.slane %v568, 5
    %v739 = vlaneseq
    %v740 = vshrl.u32 %v739, 7
    %742 = vset.pattern.permute.xlu0 %v740
    %743 = vperm.xlu0 %742, %v738
    %v744 = vpop.permute.xlu0 %743
    %v745 = vlaneseq
    %v746 = vshrl.u32 %v745, 7
    %v747 = vadd.s32 %v746, 8
    %748 = vset.pattern.permute.xlu0 %v747
    %749 = vperm.xlu0 %748, %v738
    %v750 = vpop.permute.xlu0 %749
    %v751 = vperm.slane %v568, 6
    %v752 = vlaneseq
    %v753 = vshrl.u32 %v752, 7
    %755 = vset.pattern.permute.xlu0 %v753
    %756 = vperm.xlu0 %755, %v751
    %v757 = vpop.permute.xlu0 %756
    %v758 = vlaneseq
    %v759 = vshrl.u32 %v758, 7
    %v760 = vadd.s32 %v759, 8
    %761 = vset.pattern.permute.xlu0 %v760
    %762 = vperm.xlu0 %761, %v751
    %v763 = vpop.permute.xlu0 %762
    %v764 = vperm.slane %v568, 7
    %v765 = vlaneseq
    %v766 = vshrl.u32 %v765, 7
    %768 = vset.pattern.permute.xlu0 %v766
    %769 = vperm.xlu0 %768, %v764
    %v770 = vpop.permute.xlu0 %769
    %v771 = vlaneseq
    %v772 = vshrl.u32 %v771, 7
    %v773 = vadd.s32 %v772, 8
    %774 = vset.pattern.permute.xlu0 %v773
    %775 = vperm.xlu0 %774, %v764
    %v776 = vpop.permute.xlu0 %775
    %v777 = vmul.f32 %v575, %v62
    %v778 = vmul.f32 %v581, %v63
    %v779 = vmul.f32 %v588, %v64
    %v780 = vmul.f32 %v594, %v65
    %v781 = vmul.f32 %v601, %v66
    %v782 = vmul.f32 %v607, %v67
    %v783 = vmul.f32 %v614, %v68
    %v784 = vmul.f32 %v620, %v69
    %v785 = vmul.f32 %v627, %v70
    %v786 = vmul.f32 %v633, %v71
    %v787 = vmul.f32 %v640, %v72
    %v788 = vmul.f32 %v646, %v73
    %v789 = vmul.f32 %v653, %v74
    %v790 = vmul.f32 %v659, %v75
    %v791 = vmul.f32 %v666, %v76
    %v792 = vmul.f32 %v672, %v77
    %v793 = vmul.f32 %v679, %v78
    %v794 = vmul.f32 %v685, %v79
    %v795 = vmul.f32 %v692, %v80
    %v796 = vmul.f32 %v698, %v81
    %v797 = vmul.f32 %v705, %v82
    %v798 = vmul.f32 %v711, %v83
    %v799 = vmul.f32 %v718, %v84
    %v800 = vmul.f32 %v724, %v85
    %v801 = vmul.f32 %v731, %v86
    %v802 = vmul.f32 %v737, %v87
    %v803 = vmul.f32 %v744, %v88
    %v804 = vmul.f32 %v750, %v89
    %v805 = vmul.f32 %v757, %v90
    %v806 = vmul.f32 %v763, %v91
    %v807 = vmul.f32 %v770, %v92
    %v808 = vmul.f32 %v776, %v93
    %v809 = vadd.f32 %v777, %v778
    %v810 = vrot.slane %v809, 4
    %v811 = vadd.f32 %v809, %v810
    %v812 = vrot.slane %v811, 2
    %v813 = vadd.f32 %v811, %v812
    %v814 = vrot.slane %v813, 1
    %v815 = vadd.f32 %v813, %v814
    %v816 = vadd.f32 %v779, %v780
    %v817 = vrot.slane %v816, 4
    %v818 = vadd.f32 %v816, %v817
    %v819 = vrot.slane %v818, 2
    %v820 = vadd.f32 %v818, %v819
    %v821 = vrot.slane %v820, 1
    %v822 = vadd.f32 %v820, %v821
    %v823 = vadd.f32 %v781, %v782
    %v824 = vrot.slane %v823, 4
    %v825 = vadd.f32 %v823, %v824
    %v826 = vrot.slane %v825, 2
    %v827 = vadd.f32 %v825, %v826
    %v828 = vrot.slane %v827, 1
    %v829 = vadd.f32 %v827, %v828
    %v830 = vadd.f32 %v783, %v784
    %v831 = vrot.slane %v830, 4
    %v832 = vadd.f32 %v830, %v831
    %v833 = vrot.slane %v832, 2
    %v834 = vadd.f32 %v832, %v833
    %v835 = vrot.slane %v834, 1
    %v836 = vadd.f32 %v834, %v835
    %v837 = vadd.f32 %v785, %v786
    %v838 = vrot.slane %v837, 4
    %v839 = vadd.f32 %v837, %v838
    %v840 = vrot.slane %v839, 2
    %v841 = vadd.f32 %v839, %v840
    %v842 = vrot.slane %v841, 1
    %v843 = vadd.f32 %v841, %v842
    %v844 = vadd.f32 %v787, %v788
    %v845 = vrot.slane %v844, 4
    %v846 = vadd.f32 %v844, %v845
    %v847 = vrot.slane %v846, 2
    %v848 = vadd.f32 %v846, %v847
    %v849 = vrot.slane %v848, 1
    %v850 = vadd.f32 %v848, %v849
    %v851 = vadd.f32 %v789, %v790
    %v852 = vrot.slane %v851, 4
    %v853 = vadd.f32 %v851, %v852
    %v854 = vrot.slane %v853, 2
    %v855 = vadd.f32 %v853, %v854
    %v856 = vrot.slane %v855, 1
    %v857 = vadd.f32 %v855, %v856
    %v858 = vadd.f32 %v791, %v792
    %v859 = vrot.slane %v858, 4
    %v860 = vadd.f32 %v858, %v859
    %v861 = vrot.slane %v860, 2
    %v862 = vadd.f32 %v860, %v861
    %v863 = vrot.slane %v862, 1
    %v864 = vadd.f32 %v862, %v863
    %v865 = vadd.f32 %v793, %v794
    %v866 = vrot.slane %v865, 4
    %v867 = vadd.f32 %v865, %v866
    %v868 = vrot.slane %v867, 2
    %v869 = vadd.f32 %v867, %v868
    %v870 = vrot.slane %v869, 1
    %v871 = vadd.f32 %v869, %v870
    %v872 = vadd.f32 %v795, %v796
    %v873 = vrot.slane %v872, 4
    %v874 = vadd.f32 %v872, %v873
    %v875 = vrot.slane %v874, 2
    %v876 = vadd.f32 %v874, %v875
    %v877 = vrot.slane %v876, 1
    %v878 = vadd.f32 %v876, %v877
    %v879 = vadd.f32 %v797, %v798
    %v880 = vrot.slane %v879, 4
    %v881 = vadd.f32 %v879, %v880
    %v882 = vrot.slane %v881, 2
    %v883 = vadd.f32 %v881, %v882
    %v884 = vrot.slane %v883, 1
    %v885 = vadd.f32 %v883, %v884
    %v886 = vadd.f32 %v799, %v800
    %v887 = vrot.slane %v886, 4
    %v888 = vadd.f32 %v886, %v887
    %v889 = vrot.slane %v888, 2
    %v890 = vadd.f32 %v888, %v889
    %v891 = vrot.slane %v890, 1
    %v892 = vadd.f32 %v890, %v891
    %v893 = vadd.f32 %v801, %v802
    %v894 = vrot.slane %v893, 4
    %v895 = vadd.f32 %v893, %v894
    %v896 = vrot.slane %v895, 2
    %v897 = vadd.f32 %v895, %v896
    %v898 = vrot.slane %v897, 1
    %v899 = vadd.f32 %v897, %v898
    %v900 = vadd.f32 %v803, %v804
    %v901 = vrot.slane %v900, 4
    %v902 = vadd.f32 %v900, %v901
    %v903 = vrot.slane %v902, 2
    %v904 = vadd.f32 %v902, %v903
    %v905 = vrot.slane %v904, 1
    %v906 = vadd.f32 %v904, %v905
    %v907 = vadd.f32 %v805, %v806
    %v908 = vrot.slane %v907, 4
    %v909 = vadd.f32 %v907, %v908
    %v910 = vrot.slane %v909, 2
    %v911 = vadd.f32 %v909, %v910
    %v912 = vrot.slane %v911, 1
    %v913 = vadd.f32 %v911, %v912
    %v914 = vadd.f32 %v807, %v808
    %v915 = vrot.slane %v914, 4
    %v916 = vadd.f32 %v914, %v915
    %v917 = vrot.slane %v916, 2
    %v918 = vadd.f32 %v916, %v917
    %v919 = vrot.slane %v918, 1
    %v920 = vadd.f32 %v918, %v919
    %v921 = vld [vmem:[#allocation5] sm:$0xff]
    %v922 = vld [vmem:[#allocation5 + $0x8] sm:$0xff]
    %v923 = vld [vmem:[#allocation5 + $0x10] sm:$0xff]
    %v924 = vld [vmem:[#allocation5 + $0x18] sm:$0xff]
    %v925 = vld [vmem:[#allocation5 + $0x20] sm:$0xff]
    %v926 = vld [vmem:[#allocation5 + $0x28] sm:$0xff]
    %v927 = vld [vmem:[#allocation5 + $0x30] sm:$0xff]
    %v928 = vld [vmem:[#allocation5 + $0x38] sm:$0xff]
    %v929 = vld [vmem:[#allocation5 + $0x40] sm:$0xff]
    %v930 = vld [vmem:[#allocation5 + $0x48] sm:$0xff]
    %v931 = vld [vmem:[#allocation5 + $0x50] sm:$0xff]
    %v932 = vld [vmem:[#allocation5 + $0x58] sm:$0xff]
    %v933 = vld [vmem:[#allocation5 + $0x60] sm:$0xff]
    %v934 = vld [vmem:[#allocation5 + $0x68] sm:$0xff]
    %v935 = vld [vmem:[#allocation5 + $0x70] sm:$0xff]
    %v936 = vld [vmem:[#allocation5 + $0x78] sm:$0xff]
    %v953 = vsel %vm521, %v822, %v815
    %v954 = vsel %vm523, %v829, %v953
    %v955 = vsel %vm525, %v836, %v954
    %v956 = vsel %vm527, %v843, %v955
    %v957 = vsel %vm529, %v850, %v956
    %v958 = vsel %vm531, %v857, %v957
    %v959 = vsel %vm533, %v864, %v958
    %v960 = vsel %vm521, %v878, %v871
    %v961 = vsel %vm523, %v885, %v960
    %v962 = vsel %vm525, %v892, %v961
    %v963 = vsel %vm527, %v899, %v962
    %v964 = vsel %vm529, %v906, %v963
    %v965 = vsel %vm531, %v913, %v964
    %v966 = vsel %vm533, %v920, %v965
    %969 = vmatpush.msra.mxu0 %v936
    %970 = vmatpush.msra.mxu0 %v935
    %971 = vmatpush.msra.mxu0 %v934
    %972 = vmatpush.msra.mxu0 %v933
    %973 = vmatpush.msra.mxu0 %v932
    %974 = vmatpush.msra.mxu0 %v931
    %975 = vmatpush.msra.mxu0 %v930
    %976 = vmatpush.msra.mxu0 %v929
    %977 = vmatpush.msra.mxu0 %v928
    %978 = vmatpush.msra.mxu0 %v927
    %979 = vmatpush.msra.mxu0 %v926
    %980 = vmatpush.msra.mxu0 %v925
    %981 = vmatpush.msra.mxu0 %v924
    %982 = vmatpush.msra.mxu0 %v923
    %983 = vmatpush.msra.mxu0 %v922
    %984 = vmatpush.msra.mxu0 %v921
    %985 = vmatmul.f32.gmra.mxu0 %v959
    %v986 = vpop.f32.mrf.mxu0
    %v987 = vadd.f32 0.0, %v986
    %988 = vmatmul.f32.gmra.mxu0 %v966
    %v989 = vpop.f32.mrf.mxu0
    %v990 = vadd.f32 0.0, %v989
    %991 = vdwg.mxu0
    %v992 = vadd.f32 %v265, %v987
    %v993 = vadd.f32 %v265, %v990
    %v994 = vld [vmem:[%s4 + $0x1] sm:$0x1]
    %v995 = vperm.slane %v994, 0
    %v996 = vmul.f32 %v227, %v995
    %v997 = vmul.f32 %v228, %v995
    %v998 = vmul.f32 %v229, %v995
    %v999 = vmul.f32 %v230, %v995
    %v1000 = vmul.f32 %v231, %v995
    %v1001 = vmul.f32 %v232, %v995
    %v1002 = vmul.f32 %v233, %v995
    %v1003 = vmul.f32 %v234, %v995
    %v1004 = vmul.f32 %v235, %v995
    %v1005 = vmul.f32 %v236, %v995
    %v1006 = vmul.f32 %v237, %v995
    %v1007 = vmul.f32 %v238, %v995
    %v1008 = vmul.f32 %v239, %v995
    %v1009 = vmul.f32 %v240, %v995
    %v1010 = vmul.f32 %v241, %v995
    %v1011 = vmul.f32 %v242, %v995
    %v1012 = vmul.f32 %v243, %v995
    %v1013 = vmul.f32 %v244, %v995
    %v1014 = vmul.f32 %v245, %v995
    %v1015 = vmul.f32 %v246, %v995
    %v1016 = vmul.f32 %v247, %v995
    %v1017 = vmul.f32 %v248, %v995
    %v1018 = vmul.f32 %v249, %v995
    %v1019 = vmul.f32 %v250, %v995
    %v1020 = vmul.f32 %v251, %v995
    %v1021 = vmul.f32 %v252, %v995
    %v1022 = vmul.f32 %v253, %v995
    %v1023 = vmul.f32 %v254, %v995
    %v1024 = vmul.f32 %v255, %v995
    %v1025 = vmul.f32 %v256, %v995
    %v1026 = vmul.f32 %v257, %v995
    %v1027 = vmul.f32 %v258, %v995
    %v1028 = vsel %vm301, %v996, 0.0
    %1029 = vadd.xlane.f32.xlu0 %v1028
    %v1030 = vpop.xlane.xlu0 %1029
    %v1031 = vsel %vm301, %v997, 0.0
    %1032 = vadd.xlane.f32.xlu0 %v1031
    %v1033 = vpop.xlane.xlu0 %1032
    %v1034 = vsel %vm301, %v998, 0.0
    %1035 = vadd.xlane.f32.xlu0 %v1034
    %v1036 = vpop.xlane.xlu0 %1035
    %v1037 = vsel %vm301, %v999, 0.0
    %1038 = vadd.xlane.f32.xlu0 %v1037
    %v1039 = vpop.xlane.xlu0 %1038
    %v1040 = vsel %vm301, %v1000, 0.0
    %1041 = vadd.xlane.f32.xlu0 %v1040
    %v1042 = vpop.xlane.xlu0 %1041
    %v1043 = vsel %vm301, %v1001, 0.0
    %1044 = vadd.xlane.f32.xlu0 %v1043
    %v1045 = vpop.xlane.xlu0 %1044
    %v1046 = vsel %vm301, %v1002, 0.0
    %1047 = vadd.xlane.f32.xlu0 %v1046
    %v1048 = vpop.xlane.xlu0 %1047
    %v1049 = vsel %vm301, %v1003, 0.0
    %1050 = vadd.xlane.f32.xlu0 %v1049
    %v1051 = vpop.xlane.xlu0 %1050
    %v1052 = vsel %vm301, %v1004, 0.0
    %1053 = vadd.xlane.f32.xlu0 %v1052
    %v1054 = vpop.xlane.xlu0 %1053
    %v1055 = vsel %vm301, %v1005, 0.0
    %1056 = vadd.xlane.f32.xlu0 %v1055
    %v1057 = vpop.xlane.xlu0 %1056
    %v1058 = vsel %vm301, %v1006, 0.0
    %1059 = vadd.xlane.f32.xlu0 %v1058
    %v1060 = vpop.xlane.xlu0 %1059
    %v1061 = vsel %vm301, %v1007, 0.0
    %1062 = vadd.xlane.f32.xlu0 %v1061
    %v1063 = vpop.xlane.xlu0 %1062
    %v1064 = vsel %vm301, %v1008, 0.0
    %1065 = vadd.xlane.f32.xlu0 %v1064
    %v1066 = vpop.xlane.xlu0 %1065
    %v1067 = vsel %vm301, %v1009, 0.0
    %1068 = vadd.xlane.f32.xlu0 %v1067
    %v1069 = vpop.xlane.xlu0 %1068
    %v1070 = vsel %vm301, %v1010, 0.0
    %1071 = vadd.xlane.f32.xlu0 %v1070
    %v1072 = vpop.xlane.xlu0 %1071
    %v1073 = vsel %vm301, %v1011, 0.0
    %1074 = vadd.xlane.f32.xlu0 %v1073
    %v1075 = vpop.xlane.xlu0 %1074
    %v1076 = vsel %vm301, %v1012, 0.0
    %1077 = vadd.xlane.f32.xlu0 %v1076
    %v1078 = vpop.xlane.xlu0 %1077
    %v1079 = vsel %vm301, %v1013, 0.0
    %1080 = vadd.xlane.f32.xlu0 %v1079
    %v1081 = vpop.xlane.xlu0 %1080
    %v1082 = vsel %vm301, %v1014, 0.0
    %1083 = vadd.xlane.f32.xlu0 %v1082
    %v1084 = vpop.xlane.xlu0 %1083
    %v1085 = vsel %vm301, %v1015, 0.0
    %1086 = vadd.xlane.f32.xlu0 %v1085
    %v1087 = vpop.xlane.xlu0 %1086
    %v1088 = vsel %vm301, %v1016, 0.0
    %1089 = vadd.xlane.f32.xlu0 %v1088
    %v1090 = vpop.xlane.xlu0 %1089
    %v1091 = vsel %vm301, %v1017, 0.0
    %1092 = vadd.xlane.f32.xlu0 %v1091
    %v1093 = vpop.xlane.xlu0 %1092
    %v1094 = vsel %vm301, %v1018, 0.0
    %1095 = vadd.xlane.f32.xlu0 %v1094
    %v1096 = vpop.xlane.xlu0 %1095
    %v1097 = vsel %vm301, %v1019, 0.0
    %1098 = vadd.xlane.f32.xlu0 %v1097
    %v1099 = vpop.xlane.xlu0 %1098
    %v1100 = vsel %vm301, %v1020, 0.0
    %1101 = vadd.xlane.f32.xlu0 %v1100
    %v1102 = vpop.xlane.xlu0 %1101
    %v1103 = vsel %vm301, %v1021, 0.0
    %1104 = vadd.xlane.f32.xlu0 %v1103
    %v1105 = vpop.xlane.xlu0 %1104
    %v1106 = vsel %vm301, %v1022, 0.0
    %1107 = vadd.xlane.f32.xlu0 %v1106
    %v1108 = vpop.xlane.xlu0 %1107
    %v1109 = vsel %vm301, %v1023, 0.0
    %1110 = vadd.xlane.f32.xlu0 %v1109
    %v1111 = vpop.xlane.xlu0 %1110
    %v1112 = vsel %vm301, %v1024, 0.0
    %1113 = vadd.xlane.f32.xlu0 %v1112
    %v1114 = vpop.xlane.xlu0 %1113
    %v1115 = vsel %vm301, %v1025, 0.0
    %1116 = vadd.xlane.f32.xlu0 %v1115
    %v1117 = vpop.xlane.xlu0 %1116
    %v1118 = vsel %vm301, %v1026, 0.0
    %1119 = vadd.xlane.f32.xlu0 %v1118
    %v1120 = vpop.xlane.xlu0 %1119
    %v1121 = vsel %vm301, %v1027, 0.0
    %1122 = vadd.xlane.f32.xlu0 %v1121
    %v1123 = vpop.xlane.xlu0 %1122
    %1124 = vset.pattern.permute.xlu0 1
    %1125 = vperm.xlu0 %1124, %v400
    %v1126 = vpop.permute.xlu0 %1125
    %v1128 = vadd.f32 %v1030, %v1126
    %v1129 = vadd.f32 %v1033, %v1126
    %v1130 = vadd.f32 %v1036, %v1126
    %v1131 = vadd.f32 %v1039, %v1126
    %v1132 = vadd.f32 %v1042, %v1126
    %v1133 = vadd.f32 %v1045, %v1126
    %v1134 = vadd.f32 %v1048, %v1126
    %v1135 = vadd.f32 %v1051, %v1126
    %v1136 = vadd.f32 %v1054, %v1126
    %v1137 = vadd.f32 %v1057, %v1126
    %v1138 = vadd.f32 %v1060, %v1126
    %v1139 = vadd.f32 %v1063, %v1126
    %v1140 = vadd.f32 %v1066, %v1126
    %v1141 = vadd.f32 %v1069, %v1126
    %v1142 = vadd.f32 %v1072, %v1126
    %v1143 = vadd.f32 %v1075, %v1126
    %v1144 = vadd.f32 %v1078, %v1126
    %v1145 = vadd.f32 %v1081, %v1126
    %v1146 = vadd.f32 %v1084, %v1126
    %v1147 = vadd.f32 %v1087, %v1126
    %v1148 = vadd.f32 %v1090, %v1126
    %v1149 = vadd.f32 %v1093, %v1126
    %v1150 = vadd.f32 %v1096, %v1126
    %v1151 = vadd.f32 %v1099, %v1126
    %v1152 = vadd.f32 %v1102, %v1126
    %v1153 = vadd.f32 %v1105, %v1126
    %v1154 = vadd.f32 %v1108, %v1126
    %v1155 = vadd.f32 %v1111, %v1126
    %v1156 = vadd.f32 %v1114, %v1126
    %v1157 = vadd.f32 %v1117, %v1126
    %v1158 = vadd.f32 %v1120, %v1126
    %v1159 = vadd.f32 %v1123, %v1126
    %v1192 = vperm.slane %v1128, %v470
    %v1193 = vperm.slane %v1129, %v472
    %v1194 = vsel %vm474, %v1193, %v1192
    %v1195 = vperm.slane %v1130, %v470
    %v1196 = vperm.slane %v1131, %v472
    %v1197 = vsel %vm474, %v1196, %v1195
    %v1198 = vperm.slane %v1132, %v470
    %v1199 = vperm.slane %v1133, %v472
    %v1200 = vsel %vm474, %v1199, %v1198
    %v1201 = vperm.slane %v1134, %v470
    %v1202 = vperm.slane %v1135, %v472
    %v1203 = vsel %vm474, %v1202, %v1201
    %v1204 = vperm.slane %v1136, %v470
    %v1205 = vperm.slane %v1137, %v472
    %v1206 = vsel %vm474, %v1205, %v1204
    %v1207 = vperm.slane %v1138, %v470
    %v1208 = vperm.slane %v1139, %v472
    %v1209 = vsel %vm474, %v1208, %v1207
    %v1210 = vperm.slane %v1140, %v470
    %v1211 = vperm.slane %v1141, %v472
    %v1212 = vsel %vm474, %v1211, %v1210
    %v1213 = vperm.slane %v1142, %v470
    %v1214 = vperm.slane %v1143, %v472
    %v1215 = vsel %vm474, %v1214, %v1213
    %v1216 = vperm.slane %v1144, %v470
    %v1217 = vperm.slane %v1145, %v472
    %v1218 = vsel %vm474, %v1217, %v1216
    %v1219 = vperm.slane %v1146, %v470
    %v1220 = vperm.slane %v1147, %v472
    %v1221 = vsel %vm474, %v1220, %v1219
    %v1222 = vperm.slane %v1148, %v470
    %v1223 = vperm.slane %v1149, %v472
    %v1224 = vsel %vm474, %v1223, %v1222
    %v1225 = vperm.slane %v1150, %v470
    %v1226 = vperm.slane %v1151, %v472
    %v1227 = vsel %vm474, %v1226, %v1225
    %v1228 = vperm.slane %v1152, %v470
    %v1229 = vperm.slane %v1153, %v472
    %v1230 = vsel %vm474, %v1229, %v1228
    %v1231 = vperm.slane %v1154, %v470
    %v1232 = vperm.slane %v1155, %v472
    %v1233 = vsel %vm474, %v1232, %v1231
    %v1234 = vperm.slane %v1156, %v470
    %v1235 = vperm.slane %v1157, %v472
    %v1236 = vsel %vm474, %v1235, %v1234
    %v1237 = vperm.slane %v1158, %v470
    %v1238 = vperm.slane %v1159, %v472
    %v1239 = vsel %vm474, %v1238, %v1237
    %v1240 = vsel %vm521, %v1197, %v1194
    %v1241 = vsel %vm523, %v1200, %v1240
    %v1242 = vsel %vm525, %v1203, %v1241
    %v1243 = vsel %vm527, %v1206, %v1242
    %v1244 = vsel %vm529, %v1209, %v1243
    %v1245 = vsel %vm531, %v1212, %v1244
    %v1246 = vsel %vm533, %v1215, %v1245
    %v1247 = vsel %vm521, %v1221, %v1218
    %v1248 = vsel %vm523, %v1224, %v1247
    %v1249 = vsel %vm525, %v1227, %v1248
    %v1250 = vsel %vm527, %v1230, %v1249
    %v1251 = vsel %vm529, %v1233, %v1250
    %v1252 = vsel %vm531, %v1236, %v1251
    %v1253 = vsel %vm533, %v1239, %v1252
    %v1256 = vsel %vm261, -1e+09, %v1246
    %v1257 = vsel %vm262, -1e+09, %v1253
    %v1258 = vsel %vm546, %v1256, -inf
    %1259 = vmax.xlane.f32.xlu0 %v1258
    %v1260 = vpop.xlane.xlu0 %1259
    %v1261 = vsel %vm546, %v1257, -inf
    %1262 = vmax.xlane.f32.xlu0 %v1261
    %v1263 = vpop.xlane.xlu0 %1262
    %v1264 = vsub.f32 %v1256, %v1260
    %v1265 = vsub.f32 %v1257, %v1263
    %v1266 = vmul.f32 %v1264, 1.442695
    %v1267 = vpow.pop %v1266
    %v1268 = vmul.f32 %v1265, 1.442695
    %v1269 = vpow.pop %v1268
    %v1270 = vsel %vm546, %v1267, 0.0
    %1271 = vadd.xlane.f32.xlu0 %v1270
    %v1272 = vpop.xlane.xlu0 %1271
    %v1273 = vsel %vm546, %v1269, 0.0
    %1274 = vadd.xlane.f32.xlu0 %v1273
    %v1275 = vpop.xlane.xlu0 %1274
    %v1276 = vrcp.pop %v1272
    %v1277 = vrcp.pop %v1275
    %v1278 = vmul.f32 %v1267, %v1276
    %v1279 = vmul.f32 %v1269, %v1277
    %v1280 = vperm.slane %v1278, 0
    %v1281 = vlaneseq
    %v1282 = vshrl.u32 %v1281, 7
    %1284 = vset.pattern.permute.xlu0 %v1282
    %1285 = vperm.xlu0 %1284, %v1280
    %v1286 = vpop.permute.xlu0 %1285
    %v1287 = vlaneseq
    %v1288 = vshrl.u32 %v1287, 7
    %v1289 = vadd.s32 %v1288, 8
    %1290 = vset.pattern.permute.xlu0 %v1289
    %1291 = vperm.xlu0 %1290, %v1280
    %v1292 = vpop.permute.xlu0 %1291
    %v1293 = vperm.slane %v1278, 1
    %v1294 = vlaneseq
    %v1295 = vshrl.u32 %v1294, 7
    %1297 = vset.pattern.permute.xlu0 %v1295
    %1298 = vperm.xlu0 %1297, %v1293
    %v1299 = vpop.permute.xlu0 %1298
    %v1300 = vlaneseq
    %v1301 = vshrl.u32 %v1300, 7
    %v1302 = vadd.s32 %v1301, 8
    %1303 = vset.pattern.permute.xlu0 %v1302
    %1304 = vperm.xlu0 %1303, %v1293
    %v1305 = vpop.permute.xlu0 %1304
    %v1306 = vperm.slane %v1278, 2
    %v1307 = vlaneseq
    %v1308 = vshrl.u32 %v1307, 7
    %1310 = vset.pattern.permute.xlu0 %v1308
    %1311 = vperm.xlu0 %1310, %v1306
    %v1312 = vpop.permute.xlu0 %1311
    %v1313 = vlaneseq
    %v1314 = vshrl.u32 %v1313, 7
    %v1315 = vadd.s32 %v1314, 8
    %1316 = vset.pattern.permute.xlu0 %v1315
    %1317 = vperm.xlu0 %1316, %v1306
    %v1318 = vpop.permute.xlu0 %1317
    %v1319 = vperm.slane %v1278, 3
    %v1320 = vlaneseq
    %v1321 = vshrl.u32 %v1320, 7
    %1323 = vset.pattern.permute.xlu0 %v1321
    %1324 = vperm.xlu0 %1323, %v1319
    %v1325 = vpop.permute.xlu0 %1324
    %v1326 = vlaneseq
    %v1327 = vshrl.u32 %v1326, 7
    %v1328 = vadd.s32 %v1327, 8
    %1329 = vset.pattern.permute.xlu0 %v1328
    %1330 = vperm.xlu0 %1329, %v1319
    %v1331 = vpop.permute.xlu0 %1330
    %v1332 = vperm.slane %v1278, 4
    %v1333 = vlaneseq
    %v1334 = vshrl.u32 %v1333, 7
    %1336 = vset.pattern.permute.xlu0 %v1334
    %1337 = vperm.xlu0 %1336, %v1332
    %v1338 = vpop.permute.xlu0 %1337
    %v1339 = vlaneseq
    %v1340 = vshrl.u32 %v1339, 7
    %v1341 = vadd.s32 %v1340, 8
    %1342 = vset.pattern.permute.xlu0 %v1341
    %1343 = vperm.xlu0 %1342, %v1332
    %v1344 = vpop.permute.xlu0 %1343
    %v1345 = vperm.slane %v1278, 5
    %v1346 = vlaneseq
    %v1347 = vshrl.u32 %v1346, 7
    %1349 = vset.pattern.permute.xlu0 %v1347
    %1350 = vperm.xlu0 %1349, %v1345
    %v1351 = vpop.permute.xlu0 %1350
    %v1352 = vlaneseq
    %v1353 = vshrl.u32 %v1352, 7
    %v1354 = vadd.s32 %v1353, 8
    %1355 = vset.pattern.permute.xlu0 %v1354
    %1356 = vperm.xlu0 %1355, %v1345
    %v1357 = vpop.permute.xlu0 %1356
    %v1358 = vperm.slane %v1278, 6
    %v1359 = vlaneseq
    %v1360 = vshrl.u32 %v1359, 7
    %1362 = vset.pattern.permute.xlu0 %v1360
    %1363 = vperm.xlu0 %1362, %v1358
    %v1364 = vpop.permute.xlu0 %1363
    %v1365 = vlaneseq
    %v1366 = vshrl.u32 %v1365, 7
    %v1367 = vadd.s32 %v1366, 8
    %1368 = vset.pattern.permute.xlu0 %v1367
    %1369 = vperm.xlu0 %1368, %v1358
    %v1370 = vpop.permute.xlu0 %1369
    %v1371 = vperm.slane %v1278, 7
    %v1372 = vlaneseq
    %v1373 = vshrl.u32 %v1372, 7
    %1375 = vset.pattern.permute.xlu0 %v1373
    %1376 = vperm.xlu0 %1375, %v1371
    %v1377 = vpop.permute.xlu0 %1376
    %v1378 = vlaneseq
    %v1379 = vshrl.u32 %v1378, 7
    %v1380 = vadd.s32 %v1379, 8
    %1381 = vset.pattern.permute.xlu0 %v1380
    %1382 = vperm.xlu0 %1381, %v1371
    %v1383 = vpop.permute.xlu0 %1382
    %v1384 = vperm.slane %v1279, 0
    %v1385 = vlaneseq
    %v1386 = vshrl.u32 %v1385, 7
    %1388 = vset.pattern.permute.xlu0 %v1386
    %1389 = vperm.xlu0 %1388, %v1384
    %v1390 = vpop.permute.xlu0 %1389
    %v1391 = vlaneseq
    %v1392 = vshrl.u32 %v1391, 7
    %v1393 = vadd.s32 %v1392, 8
    %1394 = vset.pattern.permute.xlu0 %v1393
    %1395 = vperm.xlu0 %1394, %v1384
    %v1396 = vpop.permute.xlu0 %1395
    %v1397 = vperm.slane %v1279, 1
    %v1398 = vlaneseq
    %v1399 = vshrl.u32 %v1398, 7
    %1401 = vset.pattern.permute.xlu0 %v1399
    %1402 = vperm.xlu0 %1401, %v1397
    %v1403 = vpop.permute.xlu0 %1402
    %v1404 = vlaneseq
    %v1405 = vshrl.u32 %v1404, 7
    %v1406 = vadd.s32 %v1405, 8
    %1407 = vset.pattern.permute.xlu0 %v1406
    %1408 = vperm.xlu0 %1407, %v1397
    %v1409 = vpop.permute.xlu0 %1408
    %v1410 = vperm.slane %v1279, 2
    %v1411 = vlaneseq
    %v1412 = vshrl.u32 %v1411, 7
    %1414 = vset.pattern.permute.xlu0 %v1412
    %1415 = vperm.xlu0 %1414, %v1410
    %v1416 = vpop.permute.xlu0 %1415
    %v1417 = vlaneseq
    %v1418 = vshrl.u32 %v1417, 7
    %v1419 = vadd.s32 %v1418, 8
    %1420 = vset.pattern.permute.xlu0 %v1419
    %1421 = vperm.xlu0 %1420, %v1410
    %v1422 = vpop.permute.xlu0 %1421
    %v1423 = vperm.slane %v1279, 3
    %v1424 = vlaneseq
    %v1425 = vshrl.u32 %v1424, 7
    %1427 = vset.pattern.permute.xlu0 %v1425
    %1428 = vperm.xlu0 %1427, %v1423
    %v1429 = vpop.permute.xlu0 %1428
    %v1430 = vlaneseq
    %v1431 = vshrl.u32 %v1430, 7
    %v1432 = vadd.s32 %v1431, 8
    %1433 = vset.pattern.permute.xlu0 %v1432
    %1434 = vperm.xlu0 %1433, %v1423
    %v1435 = vpop.permute.xlu0 %1434
    %v1436 = vperm.slane %v1279, 4
    %v1437 = vlaneseq
    %v1438 = vshrl.u32 %v1437, 7
    %1440 = vset.pattern.permute.xlu0 %v1438
    %1441 = vperm.xlu0 %1440, %v1436
    %v1442 = vpop.permute.xlu0 %1441
    %v1443 = vlaneseq
    %v1444 = vshrl.u32 %v1443, 7
    %v1445 = vadd.s32 %v1444, 8
    %1446 = vset.pattern.permute.xlu0 %v1445
    %1447 = vperm.xlu0 %1446, %v1436
    %v1448 = vpop.permute.xlu0 %1447
    %v1449 = vperm.slane %v1279, 5
    %v1450 = vlaneseq
    %v1451 = vshrl.u32 %v1450, 7
    %1453 = vset.pattern.permute.xlu0 %v1451
    %1454 = vperm.xlu0 %1453, %v1449
    %v1455 = vpop.permute.xlu0 %1454
    %v1456 = vlaneseq
    %v1457 = vshrl.u32 %v1456, 7
    %v1458 = vadd.s32 %v1457, 8
    %1459 = vset.pattern.permute.xlu0 %v1458
    %1460 = vperm.xlu0 %1459, %v1449
    %v1461 = vpop.permute.xlu0 %1460
    %v1462 = vperm.slane %v1279, 6
    %v1463 = vlaneseq
    %v1464 = vshrl.u32 %v1463, 7
    %1466 = vset.pattern.permute.xlu0 %v1464
    %1467 = vperm.xlu0 %1466, %v1462
    %v1468 = vpop.permute.xlu0 %1467
    %v1469 = vlaneseq
    %v1470 = vshrl.u32 %v1469, 7
    %v1471 = vadd.s32 %v1470, 8
    %1472 = vset.pattern.permute.xlu0 %v1471
    %1473 = vperm.xlu0 %1472, %v1462
    %v1474 = vpop.permute.xlu0 %1473
    %v1475 = vperm.slane %v1279, 7
    %v1476 = vlaneseq
    %v1477 = vshrl.u32 %v1476, 7
    %1479 = vset.pattern.permute.xlu0 %v1477
    %1480 = vperm.xlu0 %1479, %v1475
    %v1481 = vpop.permute.xlu0 %1480
    %v1482 = vlaneseq
    %v1483 = vshrl.u32 %v1482, 7
    %v1484 = vadd.s32 %v1483, 8
    %1485 = vset.pattern.permute.xlu0 %v1484
    %1486 = vperm.xlu0 %1485, %v1475
    %v1487 = vpop.permute.xlu0 %1486
    %v1488 = vmul.f32 %v1286, %v62
    %v1489 = vmul.f32 %v1292, %v63
    %v1490 = vmul.f32 %v1299, %v64
    %v1491 = vmul.f32 %v1305, %v65
    %v1492 = vmul.f32 %v1312, %v66
    %v1493 = vmul.f32 %v1318, %v67
    %v1494 = vmul.f32 %v1325, %v68
    %v1495 = vmul.f32 %v1331, %v69
    %v1496 = vmul.f32 %v1338, %v70
    %v1497 = vmul.f32 %v1344, %v71
    %v1498 = vmul.f32 %v1351, %v72
    %v1499 = vmul.f32 %v1357, %v73
    %v1500 = vmul.f32 %v1364, %v74
    %v1501 = vmul.f32 %v1370, %v75
    %v1502 = vmul.f32 %v1377, %v76
    %v1503 = vmul.f32 %v1383, %v77
    %v1504 = vmul.f32 %v1390, %v78
    %v1505 = vmul.f32 %v1396, %v79
    %v1506 = vmul.f32 %v1403, %v80
    %v1507 = vmul.f32 %v1409, %v81
    %v1508 = vmul.f32 %v1416, %v82
    %v1509 = vmul.f32 %v1422, %v83
    %v1510 = vmul.f32 %v1429, %v84
    %v1511 = vmul.f32 %v1435, %v85
    %v1512 = vmul.f32 %v1442, %v86
    %v1513 = vmul.f32 %v1448, %v87
    %v1514 = vmul.f32 %v1455, %v88
    %v1515 = vmul.f32 %v1461, %v89
    %v1516 = vmul.f32 %v1468, %v90
    %v1517 = vmul.f32 %v1474, %v91
    %v1518 = vmul.f32 %v1481, %v92
    %v1519 = vmul.f32 %v1487, %v93
    %v1520 = vadd.f32 %v1488, %v1489
    %v1521 = vrot.slane %v1520, 4
    %v1522 = vadd.f32 %v1520, %v1521
    %v1523 = vrot.slane %v1522, 2
    %v1524 = vadd.f32 %v1522, %v1523
    %v1525 = vrot.slane %v1524, 1
    %v1526 = vadd.f32 %v1524, %v1525
    %v1527 = vadd.f32 %v1490, %v1491
    %v1528 = vrot.slane %v1527, 4
    %v1529 = vadd.f32 %v1527, %v1528
    %v1530 = vrot.slane %v1529, 2
    %v1531 = vadd.f32 %v1529, %v1530
    %v1532 = vrot.slane %v1531, 1
    %v1533 = vadd.f32 %v1531, %v1532
    %v1534 = vadd.f32 %v1492, %v1493
    %v1535 = vrot.slane %v1534, 4
    %v1536 = vadd.f32 %v1534, %v1535
    %v1537 = vrot.slane %v1536, 2
    %v1538 = vadd.f32 %v1536, %v1537
    %v1539 = vrot.slane %v1538, 1
    %v1540 = vadd.f32 %v1538, %v1539
    %v1541 = vadd.f32 %v1494, %v1495
    %v1542 = vrot.slane %v1541, 4
    %v1543 = vadd.f32 %v1541, %v1542
    %v1544 = vrot.slane %v1543, 2
    %v1545 = vadd.f32 %v1543, %v1544
    %v1546 = vrot.slane %v1545, 1
    %v1547 = vadd.f32 %v1545, %v1546
    %v1548 = vadd.f32 %v1496, %v1497
    %v1549 = vrot.slane %v1548, 4
    %v1550 = vadd.f32 %v1548, %v1549
    %v1551 = vrot.slane %v1550, 2
    %v1552 = vadd.f32 %v1550, %v1551
    %v1553 = vrot.slane %v1552, 1
    %v1554 = vadd.f32 %v1552, %v1553
    %v1555 = vadd.f32 %v1498, %v1499
    %v1556 = vrot.slane %v1555, 4
    %v1557 = vadd.f32 %v1555, %v1556
    %v1558 = vrot.slane %v1557, 2
    %v1559 = vadd.f32 %v1557, %v1558
    %v1560 = vrot.slane %v1559, 1
    %v1561 = vadd.f32 %v1559, %v1560
    %v1562 = vadd.f32 %v1500, %v1501
    %v1563 = vrot.slane %v1562, 4
    %v1564 = vadd.f32 %v1562, %v1563
    %v1565 = vrot.slane %v1564, 2
    %v1566 = vadd.f32 %v1564, %v1565
    %v1567 = vrot.slane %v1566, 1
    %v1568 = vadd.f32 %v1566, %v1567
    %v1569 = vadd.f32 %v1502, %v1503
    %v1570 = vrot.slane %v1569, 4
    %v1571 = vadd.f32 %v1569, %v1570
    %v1572 = vrot.slane %v1571, 2
    %v1573 = vadd.f32 %v1571, %v1572
    %v1574 = vrot.slane %v1573, 1
    %v1575 = vadd.f32 %v1573, %v1574
    %v1576 = vadd.f32 %v1504, %v1505
    %v1577 = vrot.slane %v1576, 4
    %v1578 = vadd.f32 %v1576, %v1577
    %v1579 = vrot.slane %v1578, 2
    %v1580 = vadd.f32 %v1578, %v1579
    %v1581 = vrot.slane %v1580, 1
    %v1582 = vadd.f32 %v1580, %v1581
    %v1583 = vadd.f32 %v1506, %v1507
    %v1584 = vrot.slane %v1583, 4
    %v1585 = vadd.f32 %v1583, %v1584
    %v1586 = vrot.slane %v1585, 2
    %v1587 = vadd.f32 %v1585, %v1586
    %v1588 = vrot.slane %v1587, 1
    %v1589 = vadd.f32 %v1587, %v1588
    %v1590 = vadd.f32 %v1508, %v1509
    %v1591 = vrot.slane %v1590, 4
    %v1592 = vadd.f32 %v1590, %v1591
    %v1593 = vrot.slane %v1592, 2
    %v1594 = vadd.f32 %v1592, %v1593
    %v1595 = vrot.slane %v1594, 1
    %v1596 = vadd.f32 %v1594, %v1595
    %v1597 = vadd.f32 %v1510, %v1511
    %v1598 = vrot.slane %v1597, 4
    %v1599 = vadd.f32 %v1597, %v1598
    %v1600 = vrot.slane %v1599, 2
    %v1601 = vadd.f32 %v1599, %v1600
    %v1602 = vrot.slane %v1601, 1
    %v1603 = vadd.f32 %v1601, %v1602
    %v1604 = vadd.f32 %v1512, %v1513
    %v1605 = vrot.slane %v1604, 4
    %v1606 = vadd.f32 %v1604, %v1605
    %v1607 = vrot.slane %v1606, 2
    %v1608 = vadd.f32 %v1606, %v1607
    %v1609 = vrot.slane %v1608, 1
    %v1610 = vadd.f32 %v1608, %v1609
    %v1611 = vadd.f32 %v1514, %v1515
    %v1612 = vrot.slane %v1611, 4
    %v1613 = vadd.f32 %v1611, %v1612
    %v1614 = vrot.slane %v1613, 2
    %v1615 = vadd.f32 %v1613, %v1614
    %v1616 = vrot.slane %v1615, 1
    %v1617 = vadd.f32 %v1615, %v1616
    %v1618 = vadd.f32 %v1516, %v1517
    %v1619 = vrot.slane %v1618, 4
    %v1620 = vadd.f32 %v1618, %v1619
    %v1621 = vrot.slane %v1620, 2
    %v1622 = vadd.f32 %v1620, %v1621
    %v1623 = vrot.slane %v1622, 1
    %v1624 = vadd.f32 %v1622, %v1623
    %v1625 = vadd.f32 %v1518, %v1519
    %v1626 = vrot.slane %v1625, 4
    %v1627 = vadd.f32 %v1625, %v1626
    %v1628 = vrot.slane %v1627, 2
    %v1629 = vadd.f32 %v1627, %v1628
    %v1630 = vrot.slane %v1629, 1
    %v1631 = vadd.f32 %v1629, %v1630
    %s1632 = scalar_lea.vmem [#allocation5], 128
    %v1633 = vld [vmem:[%s1632] sm:$0xff]
    %v1634 = vld [vmem:[%s1632 + $0x8] sm:$0xff]
    %v1635 = vld [vmem:[%s1632 + $0x10] sm:$0xff]
    %v1636 = vld [vmem:[%s1632 + $0x18] sm:$0xff]
    %v1637 = vld [vmem:[%s1632 + $0x20] sm:$0xff]
    %v1638 = vld [vmem:[%s1632 + $0x28] sm:$0xff]
    %v1639 = vld [vmem:[%s1632 + $0x30] sm:$0xff]
    %v1640 = vld [vmem:[%s1632 + $0x38] sm:$0xff]
    %v1641 = vld [vmem:[%s1632 + $0x40] sm:$0xff]
    %v1642 = vld [vmem:[%s1632 + $0x48] sm:$0xff]
    %v1643 = vld [vmem:[%s1632 + $0x50] sm:$0xff]
    %v1644 = vld [vmem:[%s1632 + $0x58] sm:$0xff]
    %v1645 = vld [vmem:[%s1632 + $0x60] sm:$0xff]
    %v1646 = vld [vmem:[%s1632 + $0x68] sm:$0xff]
    %v1647 = vld [vmem:[%s1632 + $0x70] sm:$0xff]
    %v1648 = vld [vmem:[%s1632 + $0x78] sm:$0xff]
    %v1665 = vsel %vm521, %v1533, %v1526
    %v1666 = vsel %vm523, %v1540, %v1665
    %v1667 = vsel %vm525, %v1547, %v1666
    %v1668 = vsel %vm527, %v1554, %v1667
    %v1669 = vsel %vm529, %v1561, %v1668
    %v1670 = vsel %vm531, %v1568, %v1669
    %v1671 = vsel %vm533, %v1575, %v1670
    %v1672 = vsel %vm521, %v1589, %v1582
    %v1673 = vsel %vm523, %v1596, %v1672
    %v1674 = vsel %vm525, %v1603, %v1673
    %v1675 = vsel %vm527, %v1610, %v1674
    %v1676 = vsel %vm529, %v1617, %v1675
    %v1677 = vsel %vm531, %v1624, %v1676
    %v1678 = vsel %vm533, %v1631, %v1677
    %1681 = vmatpush.msra.mxu0 %v1648
    %1682 = vmatpush.msra.mxu0 %v1647
    %1683 = vmatpush.msra.mxu0 %v1646
    %1684 = vmatpush.msra.mxu0 %v1645
    %1685 = vmatpush.msra.mxu0 %v1644
    %1686 = vmatpush.msra.mxu0 %v1643
    %1687 = vmatpush.msra.mxu0 %v1642
    %1688 = vmatpush.msra.mxu0 %v1641
    %1689 = vmatpush.msra.mxu0 %v1640
    %1690 = vmatpush.msra.mxu0 %v1639
    %1691 = vmatpush.msra.mxu0 %v1638
    %1692 = vmatpush.msra.mxu0 %v1637
    %1693 = vmatpush.msra.mxu0 %v1636
    %1694 = vmatpush.msra.mxu0 %v1635
    %1695 = vmatpush.msra.mxu0 %v1634
    %1696 = vmatpush.msra.mxu0 %v1633
    %1697 = vmatmul.f32.gmra.mxu0 %v1671
    %v1698 = vpop.f32.mrf.mxu0
    %v1699 = vadd.f32 0.0, %v1698
    %1700 = vmatmul.f32.gmra.mxu0 %v1678
    %v1701 = vpop.f32.mrf.mxu0
    %v1702 = vadd.f32 0.0, %v1701
    %1703 = vdwg.mxu0
    %v1704 = vadd.f32 %v992, %v1699
    %v1705 = vadd.f32 %v993, %v1702
    %1706 = vst [vmem:[#allocation7] sm:$0xff] %v1704
    %1707 = vst [vmem:[#allocation7 + $0x8] sm:$0xff] %v1705
    // Predicated region
    $region42: #{tpu_custom_call.1} parent=1 // pred_check
      _
    $region43: #{tpu_custom_call.1} parent=1 // pred_check_branch
      %1709 = sbr.rel (0) target = $region45
    $region44: #{tpu_custom_call.1} parent=1 // pred_region
      %1711 = vsyncadd [#allocation4], 0
      %s1712 = sshll.u32 [#allocation7], 4
      %s1713 = int_to_ptr.vmem [resolvable:$true] %s1712
      %s1714 = sshll.u32 %s8, 4
      %s1715 = int_to_ptr.hbm [resolvable:$true] %s1714
      %1720 = dma.vmem_to_hbm [thread:$0]  %s1713, 256, %s1715, [#allocation4], 128, 128, 8
    $region45: #{tpu_custom_call.1} parent=1 // pred_fallthru
      _
    // Predicated region
    $region46: #{tpu_custom_call.1} parent=1 // pred_check
      _
    $region47: #{tpu_custom_call.1} parent=1 // pred_check_branch
      %1722 = sbr.rel (0) target = $region49
    $region48: #{tpu_custom_call.1} parent=1 // pred_region
      %1724 = dma.done [#allocation4], 256
    $region49: #{tpu_custom_call.1} parent=1 // pred_fallthru
      _
    %1725 = vsyncpa [#allocation3], 1
    %1726 = vsyncpa [#allocation6], 1
    %1727 = vsyncpa [#allocation4], 1

// kernel: tpu_custom_call.1
$region0: #{tpu_custom_call.1}
  #allocation0 [shape = 'u32[]', space=smem, size = 0x4, offset = 0x4, fixed_abs, tag = 'smem constant byte address 0x4 - core index']
  #allocation1 [shape = 'u32[72,128]{1,0:T(1,128)}', space=vmem, size = 0x9000, scoped, tag = 'internal scratch']
  %s0 = inlined_call_operand.hbm [shape: f32[16,16,128], index: 0, kind: input, shape index: {}]
  %s1 = inlined_call_operand.vmem [shape: s32[16,16], index: 1, kind: input, shape index: {}]
  %s2 = inlined_call_operand.vmem [shape: f32[128,64], index: 2, kind: input, shape index: {}]
  %s3 = inlined_call_operand.vmem [shape: f32[1,64], index: 3, kind: input, shape index: {}]
  %s4 = inlined_call_operand.vmem [shape: f32[2,64], index: 4, kind: input, shape index: {}]
  %s5 = inlined_call_operand.vmem [shape: f32[1,2], index: 5, kind: input, shape index: {}]
  %s6 = inlined_call_operand.hbm [shape: f32[2,128,128], index: 6, kind: input, shape index: {}]
  %s7 = inlined_call_operand.vmem [shape: f32[1,128], index: 7, kind: input, shape index: {}]
  %s8 = inlined_call_operand.hbm [shape: f32[16,128], index: 8, kind: output, shape index: {}]
  %s9 = sld [smem:[#allocation0]]
  $region50: #{tpu_custom_call.1} parent=0
    _
  %s11 = ssub.s32 1, %s9
  %s12 = scalar_select 0, %s11, %s9
  $region1: #{tpu_custom_call.1} parent=0
    #allocation2 [shape = 'u8[131072]{0}', space=vmem, size = 0x20000, scoped, tag = 'input window, operand 0, single buffered']
    #allocation3 [shape = 's32[1]{0}', space=sflag, size = 0x4, scoped, tag = 'scoped memory for tpu_custom_call.1']
    #allocation4 [shape = 's32[1]{0}', space=sflag, size = 0x4, scoped, tag = 'scoped memory for tpu_custom_call.1']
    #allocation5 [shape = 'u8[131072]{0}', space=vmem, size = 0x20000, scoped, tag = 'input window, operand 6, single buffered']
    #allocation6 [shape = 's32[1]{0}', space=sflag, size = 0x4, scoped, tag = 'scoped memory for tpu_custom_call.1']
    #allocation7 [shape = 'u8[8192]{0}', space=vmem, size = 0x2000, scoped, tag = 'output window, operand 0, single buffered']
    %13 = vsyncpa [#allocation3], 0
    %14 = vsyncpa [#allocation6], 0
    %15 = vsyncpa [#allocation4], 0
    // Predicated region
    $region2: #{tpu_custom_call.1} parent=1 // pred_check
      _
    $region3: #{tpu_custom_call.1} parent=1 // pred_check_branch
      %17 = sbr.rel (0) target = $region5
    $region4: #{tpu_custom_call.1} parent=1 // pred_region
      %19 = vsyncadd [#allocation3], 0
      %s20 = sshll.u32 %s0, 4
      %s21 = int_to_ptr.hbm [resolvable:$true] %s20
      %s22 = sshll.u32 [#allocation2], 4
      %s23 = int_to_ptr.vmem [resolvable:$true] %s22
      %28 = dma.hbm_to_vmem [thread:$0]  %s21, 4096, %s23, [#allocation3], 128, 128, 8
    $region5: #{tpu_custom_call.1} parent=1 // pred_fallthru
      _
    // Predicated region
    $region6: #{tpu_custom_call.1} parent=1 // pred_check
      _
    $region7: #{tpu_custom_call.1} parent=1 // pred_check_branch
      %30 = sbr.rel (0) target = $region9
    $region8: #{tpu_custom_call.1} parent=1 // pred_region
      _
    $region9: #{tpu_custom_call.1} parent=1 // pred_fallthru
      _
    // Predicated region
    $region10: #{tpu_custom_call.1} parent=1 // pred_check
      _
    $region11: #{tpu_custom_call.1} parent=1 // pred_check_branch
      %32 = sbr.rel (0) target = $region13
    $region12: #{tpu_custom_call.1} parent=1 // pred_region
      _
    $region13: #{tpu_custom_call.1} parent=1 // pred_fallthru
      _
    // Predicated region
    $region14: #{tpu_custom_call.1} parent=1 // pred_check
      _
    $region15: #{tpu_custom_call.1} parent=1 // pred_check_branch
      %34 = sbr.rel (0) target = $region17
    $region16: #{tpu_custom_call.1} parent=1 // pred_region
      _
    $region17: #{tpu_custom_call.1} parent=1 // pred_fallthru
      _
    // Predicated region
    $region18: #{tpu_custom_call.1} parent=1 // pred_check
      _
    $region19: #{tpu_custom_call.1} parent=1 // pred_check_branch
      %36 = sbr.rel (0) target = $region21
    $region20: #{tpu_custom_call.1} parent=1 // pred_region
      _
    $region21: #{tpu_custom_call.1} parent=1 // pred_fallthru
      _
    // Predicated region
    $region22: #{tpu_custom_call.1} parent=1 // pred_check
      _
    $region23: #{tpu_custom_call.1} parent=1 // pred_check_branch
      %38 = sbr.rel (0) target = $region25
    $region24: #{tpu_custom_call.1} parent=1 // pred_region
      _
    $region25: #{tpu_custom_call.1} parent=1 // pred_fallthru
      _
    // Predicated region
    $region26: #{tpu_custom_call.1} parent=1 // pred_check
      _
    $region27: #{tpu_custom_call.1} parent=1 // pred_check_branch
      %40 = sbr.rel (0) target = $region29
    $region28: #{tpu_custom_call.1} parent=1 // pred_region
      %42 = vsyncadd [#allocation6], 0
      %s43 = sshll.u32 %s6, 4
      %s44 = int_to_ptr.hbm [resolvable:$true] %s43
      %s45 = sshll.u32 [#allocation5], 4
      %s46 = int_to_ptr.vmem [resolvable:$true] %s45
      %51 = dma.hbm_to_vmem [thread:$0]  %s44, 4096, %s46, [#allocation6], 128, 128, 8
    $region29: #{tpu_custom_call.1} parent=1 // pred_fallthru
      _
    // Predicated region
    $region30: #{tpu_custom_call.1} parent=1 // pred_check
      _
    $region31: #{tpu_custom_call.1} parent=1 // pred_check_branch
      %53 = sbr.rel (0) target = $region33
    $region32: #{tpu_custom_call.1} parent=1 // pred_region
      _
    $region33: #{tpu_custom_call.1} parent=1 // pred_fallthru
      _
    // Predicated region
    $region34: #{tpu_custom_call.1} parent=1 // pred_check
      _
    $region35: #{tpu_custom_call.1} parent=1 // pred_check_branch
      %55 = sbr.rel (0) target = $region37
    $region36: #{tpu_custom_call.1} parent=1 // pred_region
      %57 = dma.done [#allocation3], 4096
    $region37: #{tpu_custom_call.1} parent=1 // pred_fallthru
      _
    // Predicated region
    $region38: #{tpu_custom_call.1} parent=1 // pred_check
      _
    $region39: #{tpu_custom_call.1} parent=1 // pred_check_branch
      %59 = sbr.rel (0) target = $region41
    $region40: #{tpu_custom_call.1} parent=1 // pred_region
      %61 = dma.done [#allocation6], 4096
    $region41: #{tpu_custom_call.1} parent=1 // pred_fallthru
      _
    %v62 = vld [vmem:[#allocation2] sm:$0xff]
    %v63 = vld [vmem:[#allocation2 + $0x8] sm:$0xff]
    %v64 = vld [vmem:[#allocation2 + $0x10] sm:$0xff]
    %v65 = vld [vmem:[#allocation2 + $0x18] sm:$0xff]
    %v66 = vld [vmem:[#allocation2 + $0x20] sm:$0xff]
    %v67 = vld [vmem:[#allocation2 + $0x28] sm:$0xff]
    %v68 = vld [vmem:[#allocation2 + $0x30] sm:$0xff]
    %v69 = vld [vmem:[#allocation2 + $0x38] sm:$0xff]
    %v70 = vld [vmem:[#allocation2 + $0x40] sm:$0xff]
    %v71 = vld [vmem:[#allocation2 + $0x48] sm:$0xff]
    %v72 = vld [vmem:[#allocation2 + $0x50] sm:$0xff]
    %v73 = vld [vmem:[#allocation2 + $0x58] sm:$0xff]
    %v74 = vld [vmem:[#allocation2 + $0x60] sm:$0xff]
    %v75 = vld [vmem:[#allocation2 + $0x68] sm:$0xff]
    %v76 = vld [vmem:[#allocation2 + $0x70] sm:$0xff]
    %v77 = vld [vmem:[#allocation2 + $0x78] sm:$0xff]
    %v78 = vld [vmem:[#allocation2 + $0x80] sm:$0xff]
    %v79 = vld [vmem:[#allocation2 + $0x88] sm:$0xff]
    %v80 = vld [vmem:[#allocation2 + $0x90] sm:$0xff]
    %v81 = vld [vmem:[#allocation2 + $0x98] sm:$0xff]
    %v82 = vld [vmem:[#allocation2 + $0xa0] sm:$0xff]
    %v83 = vld [vmem:[#allocation2 + $0xa8] sm:$0xff]
    %v84 = vld [vmem:[#allocation2 + $0xb0] sm:$0xff]
    %v85 = vld [vmem:[#allocation2 + $0xb8] sm:$0xff]
    %v86 = vld [vmem:[#allocation2 + $0xc0] sm:$0xff]
    %v87 = vld [vmem:[#allocation2 + $0xc8] sm:$0xff]
    %v88 = vld [vmem:[#allocation2 + $0xd0] sm:$0xff]
    %v89 = vld [vmem:[#allocation2 + $0xd8] sm:$0xff]
    %v90 = vld [vmem:[#allocation2 + $0xe0] sm:$0xff]
    %v91 = vld [vmem:[#allocation2 + $0xe8] sm:$0xff]
    %v92 = vld [vmem:[#allocation2 + $0xf0] sm:$0xff]
    %v93 = vld [vmem:[#allocation2 + $0xf8] sm:$0xff]
    %v94 = vld [vmem:[%s2] sm:$0xff]
    %v95 = vld [vmem:[%s2 + $0x8] sm:$0xff]
    %v96 = vld [vmem:[%s2 + $0x10] sm:$0xff]
    %v97 = vld [vmem:[%s2 + $0x18] sm:$0xff]
    %v98 = vld [vmem:[%s2 + $0x20] sm:$0xff]
    %v99 = vld [vmem:[%s2 + $0x28] sm:$0xff]
    %v100 = vld [vmem:[%s2 + $0x30] sm:$0xff]
    %v101 = vld [vmem:[%s2 + $0x38] sm:$0xff]
    %v102 = vld [vmem:[%s2 + $0x40] sm:$0xff]
    %v103 = vld [vmem:[%s2 + $0x48] sm:$0xff]
    %v104 = vld [vmem:[%s2 + $0x50] sm:$0xff]
    %v105 = vld [vmem:[%s2 + $0x58] sm:$0xff]
    %v106 = vld [vmem:[%s2 + $0x60] sm:$0xff]
    %v107 = vld [vmem:[%s2 + $0x68] sm:$0xff]
    %v108 = vld [vmem:[%s2 + $0x70] sm:$0xff]
    %v109 = vld [vmem:[%s2 + $0x78] sm:$0xff]
    %v110 = vld [vmem:[%s3] sm:$0x1]
    %v112 = vperm.slane %v110, 0
    %114 = vmatpush.msra.mxu0 %v109
    %115 = vmatpush.msra.mxu0 %v108
    %116 = vmatpush.msra.mxu0 %v107
    %117 = vmatpush.msra.mxu0 %v106
    %118 = vmatpush.msra.mxu0 %v105
    %119 = vmatpush.msra.mxu0 %v104
    %120 = vmatpush.msra.mxu0 %v103
    %121 = vmatpush.msra.mxu0 %v102
    %122 = vmatpush.msra.mxu0 %v101
    %123 = vmatpush.msra.mxu0 %v100
    %124 = vmatpush.msra.mxu0 %v99
    %125 = vmatpush.msra.mxu0 %v98
    %126 = vmatpush.msra.mxu0 %v97
    %127 = vmatpush.msra.mxu0 %v96
    %128 = vmatpush.msra.mxu0 %v95
    %129 = vmatpush.msra.mxu0 %v94
    %130 = vmatmul.f32.gmra.mxu0 %v62
    %v131 = vpop.f32.mrf.mxu0
    %v132 = vadd.f32 %v112, %v131
    %133 = vmatmul.f32.gmra.mxu0 %v63
    %v134 = vpop.f32.mrf.mxu0
    %v135 = vadd.f32 %v112, %v134
    %136 = vmatmul.f32.gmra.mxu0 %v64
    %v137 = vpop.f32.mrf.mxu0
    %v138 = vadd.f32 %v112, %v137
    %139 = vmatmul.f32.gmra.mxu0 %v65
    %v140 = vpop.f32.mrf.mxu0
    %v141 = vadd.f32 %v112, %v140
    %142 = vmatmul.f32.gmra.mxu0 %v66
    %v143 = vpop.f32.mrf.mxu0
    %v144 = vadd.f32 %v112, %v143
    %145 = vmatmul.f32.gmra.mxu0 %v67
    %v146 = vpop.f32.mrf.mxu0
    %v147 = vadd.f32 %v112, %v146
    %148 = vmatmul.f32.gmra.mxu0 %v68
    %v149 = vpop.f32.mrf.mxu0
    %v150 = vadd.f32 %v112, %v149
    %151 = vmatmul.f32.gmra.mxu0 %v69
    %v152 = vpop.f32.mrf.mxu0
    %v153 = vadd.f32 %v112, %v152
    %154 = vmatmul.f32.gmra.mxu0 %v70
    %v155 = vpop.f32.mrf.mxu0
    %v156 = vadd.f32 %v112, %v155
    %157 = vmatmul.f32.gmra.mxu0 %v71
    %v158 = vpop.f32.mrf.mxu0
    %v159 = vadd.f32 %v112, %v158
    %160 = vmatmul.f32.gmra.mxu0 %v72
    %v161 = vpop.f32.mrf.mxu0
    %v162 = vadd.f32 %v112, %v161
    %163 = vmatmul.f32.gmra.mxu0 %v73
    %v164 = vpop.f32.mrf.mxu0
    %v165 = vadd.f32 %v112, %v164
    %166 = vmatmul.f32.gmra.mxu0 %v74
    %v167 = vpop.f32.mrf.mxu0
    %v168 = vadd.f32 %v112, %v167
    %169 = vmatmul.f32.gmra.mxu0 %v75
    %v170 = vpop.f32.mrf.mxu0
    %v171 = vadd.f32 %v112, %v170
    %172 = vmatmul.f32.gmra.mxu0 %v76
    %v173 = vpop.f32.mrf.mxu0
    %v174 = vadd.f32 %v112, %v173
    %175 = vmatmul.f32.gmra.mxu0 %v77
    %v176 = vpop.f32.mrf.mxu0
    %v177 = vadd.f32 %v112, %v176
    %178 = vmatmul.f32.gmra.mxu0 %v78
    %v179 = vpop.f32.mrf.mxu0
    %v180 = vadd.f32 %v112, %v179
    %181 = vmatmul.f32.gmra.mxu0 %v79
    %v182 = vpop.f32.mrf.mxu0
    %v183 = vadd.f32 %v112, %v182
    %184 = vmatmul.f32.gmra.mxu0 %v80
    %v185 = vpop.f32.mrf.mxu0
    %v186 = vadd.f32 %v112, %v185
    %187 = vmatmul.f32.gmra.mxu0 %v81
    %v188 = vpop.f32.mrf.mxu0
    %v189 = vadd.f32 %v112, %v188
    %190 = vmatmul.f32.gmra.mxu0 %v82
    %v191 = vpop.f32.mrf.mxu0
    %v192 = vadd.f32 %v112, %v191
    %193 = vmatmul.f32.gmra.mxu0 %v83
    %v194 = vpop.f32.mrf.mxu0
    %v195 = vadd.f32 %v112, %v194
    %196 = vmatmul.f32.gmra.mxu0 %v84
    %v197 = vpop.f32.mrf.mxu0
    %v198 = vadd.f32 %v112, %v197
    %199 = vmatmul.f32.gmra.mxu0 %v85
    %v200 = vpop.f32.mrf.mxu0
    %v201 = vadd.f32 %v112, %v200
    %202 = vmatmul.f32.gmra.mxu0 %v86
    %v203 = vpop.f32.mrf.mxu0
    %v204 = vadd.f32 %v112, %v203
    %205 = vmatmul.f32.gmra.mxu0 %v87
    %v206 = vpop.f32.mrf.mxu0
    %v207 = vadd.f32 %v112, %v206
    %208 = vmatmul.f32.gmra.mxu0 %v88
    %v209 = vpop.f32.mrf.mxu0
    %v210 = vadd.f32 %v112, %v209
    %211 = vmatmul.f32.gmra.mxu0 %v89
    %v212 = vpop.f32.mrf.mxu0
    %v213 = vadd.f32 %v112, %v212
    %214 = vmatmul.f32.gmra.mxu0 %v90
    %v215 = vpop.f32.mrf.mxu0
    %v216 = vadd.f32 %v112, %v215
    %217 = vmatmul.f32.gmra.mxu0 %v91
    %v218 = vpop.f32.mrf.mxu0
    %v219 = vadd.f32 %v112, %v218
    %220 = vmatmul.f32.gmra.mxu0 %v92
    %v221 = vpop.f32.mrf.mxu0
    %v222 = vadd.f32 %v112, %v221
    %223 = vmatmul.f32.gmra.mxu0 %v93
    %v224 = vpop.f32.mrf.mxu0
    %v225 = vadd.f32 %v112, %v224
    %226 = vdwg.mxu0
    %v227 = vmax.f32 %v132, 0.0
    %v228 = vmax.f32 %v135, 0.0
    %v229 = vmax.f32 %v138, 0.0
    %v230 = vmax.f32 %v141, 0.0
    %v231 = vmax.f32 %v144, 0.0
    %v232 = vmax.f32 %v147, 0.0
    %v233 = vmax.f32 %v150, 0.0
    %v234 = vmax.f32 %v153, 0.0
    %v235 = vmax.f32 %v156, 0.0
    %v236 = vmax.f32 %v159, 0.0
    %v237 = vmax.f32 %v162, 0.0
    %v238 = vmax.f32 %v165, 0.0
    %v239 = vmax.f32 %v168, 0.0
    %v240 = vmax.f32 %v171, 0.0
    %v241 = vmax.f32 %v174, 0.0
    %v242 = vmax.f32 %v177, 0.0
    %v243 = vmax.f32 %v180, 0.0
    %v244 = vmax.f32 %v183, 0.0
    %v245 = vmax.f32 %v186, 0.0
    %v246 = vmax.f32 %v189, 0.0
    %v247 = vmax.f32 %v192, 0.0
    %v248 = vmax.f32 %v195, 0.0
    %v249 = vmax.f32 %v198, 0.0
    %v250 = vmax.f32 %v201, 0.0
    %v251 = vmax.f32 %v204, 0.0
    %v252 = vmax.f32 %v207, 0.0
    %v253 = vmax.f32 %v210, 0.0
    %v254 = vmax.f32 %v213, 0.0
    %v255 = vmax.f32 %v216, 0.0
    %v256 = vmax.f32 %v219, 0.0
    %v257 = vmax.f32 %v222, 0.0
    %v258 = vmax.f32 %v225, 0.0
    %v259 = vld [vmem:[%s1] sm:$0xff]
    %v260 = vld [vmem:[%s1 + $0x8] sm:$0xff]
    %vm261 = vcmp.ne.s32.totalorder %v259, 0
    %vm262 = vcmp.ne.s32.totalorder %v260, 0
    %v263 = vld [vmem:[%s7] sm:$0x1]
    %v265 = vperm.slane %v263, 0
    %v267 = vld [vmem:[%s4] sm:$0x1]
    %v268 = vperm.slane %v267, 0
    %v269 = vmul.f32 %v227, %v268
    %v270 = vmul.f32 %v228, %v268
    %v271 = vmul.f32 %v229, %v268
    %v272 = vmul.f32 %v230, %v268
    %v273 = vmul.f32 %v231, %v268
    %v274 = vmul.f32 %v232, %v268
    %v275 = vmul.f32 %v233, %v268
    %v276 = vmul.f32 %v234, %v268
    %v277 = vmul.f32 %v235, %v268
    %v278 = vmul.f32 %v236, %v268
    %v279 = vmul.f32 %v237, %v268
    %v280 = vmul.f32 %v238, %v268
    %v281 = vmul.f32 %v239, %v268
    %v282 = vmul.f32 %v240, %v268
    %v283 = vmul.f32 %v241, %v268
    %v284 = vmul.f32 %v242, %v268
    %v285 = vmul.f32 %v243, %v268
    %v286 = vmul.f32 %v244, %v268
    %v287 = vmul.f32 %v245, %v268
    %v288 = vmul.f32 %v246, %v268
    %v289 = vmul.f32 %v247, %v268
    %v290 = vmul.f32 %v248, %v268
    %v291 = vmul.f32 %v249, %v268
    %v292 = vmul.f32 %v250, %v268
    %v293 = vmul.f32 %v251, %v268
    %v294 = vmul.f32 %v252, %v268
    %v295 = vmul.f32 %v253, %v268
    %v296 = vmul.f32 %v254, %v268
    %v297 = vmul.f32 %v255, %v268
    %v298 = vmul.f32 %v256, %v268
    %v299 = vmul.f32 %v257, %v268
    %v300 = vmul.f32 %v258, %v268
    %vm301 = vcmask 523264
    %v302 = vsel %vm301, %v269, 0.0
    %303 = vadd.xlane.f32.xlu0 %v302
    %v304 = vpop.xlane.xlu0 %303
    %v305 = vsel %vm301, %v270, 0.0
    %306 = vadd.xlane.f32.xlu0 %v305
    %v307 = vpop.xlane.xlu0 %306
    %v308 = vsel %vm301, %v271, 0.0
    %309 = vadd.xlane.f32.xlu0 %v308
    %v310 = vpop.xlane.xlu0 %309
    %v311 = vsel %vm301, %v272, 0.0
    %312 = vadd.xlane.f32.xlu0 %v311
    %v313 = vpop.xlane.xlu0 %312
    %v314 = vsel %vm301, %v273, 0.0
    %315 = vadd.xlane.f32.xlu0 %v314
    %v316 = vpop.xlane.xlu0 %315
    %v317 = vsel %vm301, %v274, 0.0
    %318 = vadd.xlane.f32.xlu0 %v317
    %v319 = vpop.xlane.xlu0 %318
    %v320 = vsel %vm301, %v275, 0.0
    %321 = vadd.xlane.f32.xlu0 %v320
    %v322 = vpop.xlane.xlu0 %321
    %v323 = vsel %vm301, %v276, 0.0
    %324 = vadd.xlane.f32.xlu0 %v323
    %v325 = vpop.xlane.xlu0 %324
    %v326 = vsel %vm301, %v277, 0.0
    %327 = vadd.xlane.f32.xlu0 %v326
    %v328 = vpop.xlane.xlu0 %327
    %v329 = vsel %vm301, %v278, 0.0
    %330 = vadd.xlane.f32.xlu0 %v329
    %v331 = vpop.xlane.xlu0 %330
    %v332 = vsel %vm301, %v279, 0.0
    %333 = vadd.xlane.f32.xlu0 %v332
    %v334 = vpop.xlane.xlu0 %333
    %v335 = vsel %vm301, %v280, 0.0
    %336 = vadd.xlane.f32.xlu0 %v335
    %v337 = vpop.xlane.xlu0 %336
    %v338 = vsel %vm301, %v281, 0.0
    %339 = vadd.xlane.f32.xlu0 %v338
    %v340 = vpop.xlane.xlu0 %339
    %v341 = vsel %vm301, %v282, 0.0
    %342 = vadd.xlane.f32.xlu0 %v341
    %v343 = vpop.xlane.xlu0 %342
    %v344 = vsel %vm301, %v283, 0.0
    %345 = vadd.xlane.f32.xlu0 %v344
    %v346 = vpop.xlane.xlu0 %345
    %v347 = vsel %vm301, %v284, 0.0
    %348 = vadd.xlane.f32.xlu0 %v347
    %v349 = vpop.xlane.xlu0 %348
    %v350 = vsel %vm301, %v285, 0.0
    %351 = vadd.xlane.f32.xlu0 %v350
    %v352 = vpop.xlane.xlu0 %351
    %v353 = vsel %vm301, %v286, 0.0
    %354 = vadd.xlane.f32.xlu0 %v353
    %v355 = vpop.xlane.xlu0 %354
    %v356 = vsel %vm301, %v287, 0.0
    %357 = vadd.xlane.f32.xlu0 %v356
    %v358 = vpop.xlane.xlu0 %357
    %v359 = vsel %vm301, %v288, 0.0
    %360 = vadd.xlane.f32.xlu0 %v359
    %v361 = vpop.xlane.xlu0 %360
    %v362 = vsel %vm301, %v289, 0.0
    %363 = vadd.xlane.f32.xlu0 %v362
    %v364 = vpop.xlane.xlu0 %363
    %v365 = vsel %vm301, %v290, 0.0
    %366 = vadd.xlane.f32.xlu0 %v365
    %v367 = vpop.xlane.xlu0 %366
    %v368 = vsel %vm301, %v291, 0.0
    %369 = vadd.xlane.f32.xlu0 %v368
    %v370 = vpop.xlane.xlu0 %369
    %v371 = vsel %vm301, %v292, 0.0
    %372 = vadd.xlane.f32.xlu0 %v371
    %v373 = vpop.xlane.xlu0 %372
    %v374 = vsel %vm301, %v293, 0.0
    %375 = vadd.xlane.f32.xlu0 %v374
    %v376 = vpop.xlane.xlu0 %375
    %v377 = vsel %vm301, %v294, 0.0
    %378 = vadd.xlane.f32.xlu0 %v377
    %v379 = vpop.xlane.xlu0 %378
    %v380 = vsel %vm301, %v295, 0.0
    %381 = vadd.xlane.f32.xlu0 %v380
    %v382 = vpop.xlane.xlu0 %381
    %v383 = vsel %vm301, %v296, 0.0
    %384 = vadd.xlane.f32.xlu0 %v383
    %v385 = vpop.xlane.xlu0 %384
    %v386 = vsel %vm301, %v297, 0.0
    %387 = vadd.xlane.f32.xlu0 %v386
    %v388 = vpop.xlane.xlu0 %387
    %v389 = vsel %vm301, %v298, 0.0
    %390 = vadd.xlane.f32.xlu0 %v389
    %v391 = vpop.xlane.xlu0 %390
    %v392 = vsel %vm301, %v299, 0.0
    %393 = vadd.xlane.f32.xlu0 %v392
    %v394 = vpop.xlane.xlu0 %393
    %v395 = vsel %vm301, %v300, 0.0
    %396 = vadd.xlane.f32.xlu0 %v395
    %v397 = vpop.xlane.xlu0 %396
    %v398 = vld [vmem:[%s5] sm:$0x1]
    %v400 = vperm.slane %v398, 0
    %401 = vset.pattern.permute.xlu0 0
    %402 = vperm.xlu0 %401, %v400
    %v403 = vpop.permute.xlu0 %402
    %v405 = vadd.f32 %v304, %v403
    %v406 = vadd.f32 %v307, %v403
    %v407 = vadd.f32 %v310, %v403
    %v408 = vadd.f32 %v313, %v403
    %v409 = vadd.f32 %v316, %v403
    %v410 = vadd.f32 %v319, %v403
    %v411 = vadd.f32 %v322, %v403
    %v412 = vadd.f32 %v325, %v403
    %v413 = vadd.f32 %v328, %v403
    %v414 = vadd.f32 %v331, %v403
    %v415 = vadd.f32 %v334, %v403
    %v416 = vadd.f32 %v337, %v403
    %v417 = vadd.f32 %v340, %v403
    %v418 = vadd.f32 %v343, %v403
    %v419 = vadd.f32 %v346, %v403
    %v420 = vadd.f32 %v349, %v403
    %v421 = vadd.f32 %v352, %v403
    %v422 = vadd.f32 %v355, %v403
    %v423 = vadd.f32 %v358, %v403
    %v424 = vadd.f32 %v361, %v403
    %v425 = vadd.f32 %v364, %v403
    %v426 = vadd.f32 %v367, %v403
    %v427 = vadd.f32 %v370, %v403
    %v428 = vadd.f32 %v373, %v403
    %v429 = vadd.f32 %v376, %v403
    %v430 = vadd.f32 %v379, %v403
    %v431 = vadd.f32 %v382, %v403
    %v432 = vadd.f32 %v385, %v403
    %v433 = vadd.f32 %v388, %v403
    %v434 = vadd.f32 %v391, %v403
    %v435 = vadd.f32 %v394, %v403
    %v436 = vadd.f32 %v397, %v403
    %v469 = vlaneseq
    %v470 = vand.u32 %v469, 127
    %v471 = vperm.slane %v405, %v470
    %v472 = vadd.s32 %v470, 4294967288
    %v473 = vperm.slane %v406, %v472
    %vm474 = vcmask 130112
    %v475 = vsel %vm474, %v473, %v471
    %v476 = vperm.slane %v407, %v470
    %v477 = vperm.slane %v408, %v472
    %v478 = vsel %vm474, %v477, %v476
    %v479 = vperm.slane %v409, %v470
    %v480 = vperm.slane %v410, %v472
    %v481 = vsel %vm474, %v480, %v479
    %v482 = vperm.slane %v411, %v470
    %v483 = vperm.slane %v412, %v472
    %v484 = vsel %vm474, %v483, %v482
    %v485 = vperm.slane %v413, %v470
    %v486 = vperm.slane %v414, %v472
    %v487 = vsel %vm474, %v486, %v485
    %v488 = vperm.slane %v415, %v470
    %v489 = vperm.slane %v416, %v472
    %v490 = vsel %vm474, %v489, %v488
    %v491 = vperm.slane %v417, %v470
    %v492 = vperm.slane %v418, %v472
    %v493 = vsel %vm474, %v492, %v491
    %v494 = vperm.slane %v419, %v470
    %v495 = vperm.slane %v420, %v472
    %v496 = vsel %vm474, %v495, %v494
    %v497 = vperm.slane %v421, %v470
    %v498 = vperm.slane %v422, %v472
    %v499 = vsel %vm474, %v498, %v497
    %v500 = vperm.slane %v423, %v470
    %v501 = vperm.slane %v424, %v472
    %v502 = vsel %vm474, %v501, %v500
    %v503 = vperm.slane %v425, %v470
    %v504 = vperm.slane %v426, %v472
    %v505 = vsel %vm474, %v504, %v503
    %v506 = vperm.slane %v427, %v470
    %v507 = vperm.slane %v428, %v472
    %v508 = vsel %vm474, %v507, %v506
    %v509 = vperm.slane %v429, %v470
    %v510 = vperm.slane %v430, %v472
    %v511 = vsel %vm474, %v510, %v509
    %v512 = vperm.slane %v431, %v470
    %v513 = vperm.slane %v432, %v472
    %v514 = vsel %vm474, %v513, %v512
    %v515 = vperm.slane %v433, %v470
    %v516 = vperm.slane %v434, %v472
    %v517 = vsel %vm474, %v516, %v515
    %v518 = vperm.slane %v435, %v470
    %v519 = vperm.slane %v436, %v472
    %v520 = vsel %vm474, %v519, %v518
    %vm521 = vcmask 1041409
    %v522 = vsel %vm521, %v478, %v475
    %vm523 = vcmask 1042434
    %v524 = vsel %vm523, %v481, %v522
    %vm525 = vcmask 1043459
    %v526 = vsel %vm525, %v484, %v524
    %vm527 = vcmask 1044484
    %v528 = vsel %vm527, %v487, %v526
    %vm529 = vcmask 1045509
    %v530 = vsel %vm529, %v490, %v528
    %vm531 = vcmask 1046534
    %v532 = vsel %vm531, %v493, %v530
    %vm533 = vcmask 1047559
    %v534 = vsel %vm533, %v496, %v532
    %v535 = vsel %vm521, %v502, %v499
    %v536 = vsel %vm523, %v505, %v535
    %v537 = vsel %vm525, %v508, %v536
    %v538 = vsel %vm527, %v511, %v537
    %v539 = vsel %vm529, %v514, %v538
    %v540 = vsel %vm531, %v517, %v539
    %v541 = vsel %vm533, %v520, %v540
    %v544 = vsel %vm261, -1e+09, %v534
    %v545 = vsel %vm262, -1e+09, %v541
    %vm546 = vcmask 130048
    %v547 = vsel %vm546, %v544, -inf
    %548 = vmax.xlane.f32.xlu0 %v547
    %v549 = vpop.xlane.xlu0 %548
    %v550 = vsel %vm546, %v545, -inf
    %551 = vmax.xlane.f32.xlu0 %v550
    %v552 = vpop.xlane.xlu0 %551
    %v553 = vsub.f32 %v544, %v549
    %v554 = vsub.f32 %v545, %v552
    %v555 = vmul.f32 %v553, 1.442695
    %v556 = vpow.pop %v555
    %v557 = vmul.f32 %v554, 1.442695
    %v558 = vpow.pop %v557
    %v559 = vsel %vm546, %v556, 0.0
    %560 = vadd.xlane.f32.xlu0 %v559
    %v561 = vpop.xlane.xlu0 %560
    %v562 = vsel %vm546, %v558, 0.0
    %563 = vadd.xlane.f32.xlu0 %v562
    %v564 = vpop.xlane.xlu0 %563
    %v565 = vrcp.pop %v561
    %v566 = vrcp.pop %v564
    %v567 = vmul.f32 %v556, %v565
    %v568 = vmul.f32 %v558, %v566
    %v569 = vperm.slane %v567, 0
    %v570 = vlaneseq
    %v571 = vshrl.u32 %v570, 7
    %573 = vset.pattern.permute.xlu0 %v571
    %574 = vperm.xlu0 %573, %v569
    %v575 = vpop.permute.xlu0 %574
    %v576 = vlaneseq
    %v577 = vshrl.u32 %v576, 7
    %v578 = vadd.s32 %v577, 8
    %579 = vset.pattern.permute.xlu0 %v578
    %580 = vperm.xlu0 %579, %v569
    %v581 = vpop.permute.xlu0 %580
    %v582 = vperm.slane %v567, 1
    %v583 = vlaneseq
    %v584 = vshrl.u32 %v583, 7
    %586 = vset.pattern.permute.xlu0 %v584
    %587 = vperm.xlu0 %586, %v582
    %v588 = vpop.permute.xlu0 %587
    %v589 = vlaneseq
    %v590 = vshrl.u32 %v589, 7
    %v591 = vadd.s32 %v590, 8
    %592 = vset.pattern.permute.xlu0 %v591
    %593 = vperm.xlu0 %592, %v582
    %v594 = vpop.permute.xlu0 %593
    %v595 = vperm.slane %v567, 2
    %v596 = vlaneseq
    %v597 = vshrl.u32 %v596, 7
    %599 = vset.pattern.permute.xlu0 %v597
    %600 = vperm.xlu0 %599, %v595
    %v601 = vpop.permute.xlu0 %600
    %v602 = vlaneseq
    %v603 = vshrl.u32 %v602, 7
    %v604 = vadd.s32 %v603, 8
    %605 = vset.pattern.permute.xlu0 %v604
    %606 = vperm.xlu0 %605, %v595
    %v607 = vpop.permute.xlu0 %606
    %v608 = vperm.slane %v567, 3
    %v609 = vlaneseq
    %v610 = vshrl.u32 %v609, 7
    %612 = vset.pattern.permute.xlu0 %v610
    %613 = vperm.xlu0 %612, %v608
    %v614 = vpop.permute.xlu0 %613
    %v615 = vlaneseq
    %v616 = vshrl.u32 %v615, 7
    %v617 = vadd.s32 %v616, 8
    %618 = vset.pattern.permute.xlu0 %v617
    %619 = vperm.xlu0 %618, %v608
    %v620 = vpop.permute.xlu0 %619
    %v621 = vperm.slane %v567, 4
    %v622 = vlaneseq
    %v623 = vshrl.u32 %v622, 7
    %625 = vset.pattern.permute.xlu0 %v623
    %626 = vperm.xlu0 %625, %v621
    %v627 = vpop.permute.xlu0 %626
    %v628 = vlaneseq
    %v629 = vshrl.u32 %v628, 7
    %v630 = vadd.s32 %v629, 8
    %631 = vset.pattern.permute.xlu0 %v630
    %632 = vperm.xlu0 %631, %v621
    %v633 = vpop.permute.xlu0 %632
    %v634 = vperm.slane %v567, 5
    %v635 = vlaneseq
    %v636 = vshrl.u32 %v635, 7
    %638 = vset.pattern.permute.xlu0 %v636
    %639 = vperm.xlu0 %638, %v634
    %v640 = vpop.permute.xlu0 %639
    %v641 = vlaneseq
    %v642 = vshrl.u32 %v641, 7
    %v643 = vadd.s32 %v642, 8
    %644 = vset.pattern.permute.xlu0 %v643
    %645 = vperm.xlu0 %644, %v634
    %v646 = vpop.permute.xlu0 %645
    %v647 = vperm.slane %v567, 6
    %v648 = vlaneseq
    %v649 = vshrl.u32 %v648, 7
    %651 = vset.pattern.permute.xlu0 %v649
    %652 = vperm.xlu0 %651, %v647
    %v653 = vpop.permute.xlu0 %652
    %v654 = vlaneseq
    %v655 = vshrl.u32 %v654, 7
    %v656 = vadd.s32 %v655, 8
    %657 = vset.pattern.permute.xlu0 %v656
    %658 = vperm.xlu0 %657, %v647
    %v659 = vpop.permute.xlu0 %658
    %v660 = vperm.slane %v567, 7
    %v661 = vlaneseq
    %v662 = vshrl.u32 %v661, 7
    %664 = vset.pattern.permute.xlu0 %v662
    %665 = vperm.xlu0 %664, %v660
    %v666 = vpop.permute.xlu0 %665
    %v667 = vlaneseq
    %v668 = vshrl.u32 %v667, 7
    %v669 = vadd.s32 %v668, 8
    %670 = vset.pattern.permute.xlu0 %v669
    %671 = vperm.xlu0 %670, %v660
    %v672 = vpop.permute.xlu0 %671
    %v673 = vperm.slane %v568, 0
    %v674 = vlaneseq
    %v675 = vshrl.u32 %v674, 7
    %677 = vset.pattern.permute.xlu0 %v675
    %678 = vperm.xlu0 %677, %v673
    %v679 = vpop.permute.xlu0 %678
    %v680 = vlaneseq
    %v681 = vshrl.u32 %v680, 7
    %v682 = vadd.s32 %v681, 8
    %683 = vset.pattern.permute.xlu0 %v682
    %684 = vperm.xlu0 %683, %v673
    %v685 = vpop.permute.xlu0 %684
    %v686 = vperm.slane %v568, 1
    %v687 = vlaneseq
    %v688 = vshrl.u32 %v687, 7
    %690 = vset.pattern.permute.xlu0 %v688
    %691 = vperm.xlu0 %690, %v686
    %v692 = vpop.permute.xlu0 %691
    %v693 = vlaneseq
    %v694 = vshrl.u32 %v693, 7
    %v695 = vadd.s32 %v694, 8
    %696 = vset.pattern.permute.xlu0 %v695
    %697 = vperm.xlu0 %696, %v686
    %v698 = vpop.permute.xlu0 %697
    %v699 = vperm.slane %v568, 2
    %v700 = vlaneseq
    %v701 = vshrl.u32 %v700, 7
    %703 = vset.pattern.permute.xlu0 %v701
    %704 = vperm.xlu0 %703, %v699
    %v705 = vpop.permute.xlu0 %704
    %v706 = vlaneseq
    %v707 = vshrl.u32 %v706, 7
    %v708 = vadd.s32 %v707, 8
    %709 = vset.pattern.permute.xlu0 %v708
    %710 = vperm.xlu0 %709, %v699
    %v711 = vpop.permute.xlu0 %710
    %v712 = vperm.slane %v568, 3
    %v713 = vlaneseq
    %v714 = vshrl.u32 %v713, 7
    %716 = vset.pattern.permute.xlu0 %v714
    %717 = vperm.xlu0 %716, %v712
    %v718 = vpop.permute.xlu0 %717
    %v719 = vlaneseq
    %v720 = vshrl.u32 %v719, 7
    %v721 = vadd.s32 %v720, 8
    %722 = vset.pattern.permute.xlu0 %v721
    %723 = vperm.xlu0 %722, %v712
    %v724 = vpop.permute.xlu0 %723
    %v725 = vperm.slane %v568, 4
    %v726 = vlaneseq
    %v727 = vshrl.u32 %v726, 7
    %729 = vset.pattern.permute.xlu0 %v727
    %730 = vperm.xlu0 %729, %v725
    %v731 = vpop.permute.xlu0 %730
    %v732 = vlaneseq
    %v733 = vshrl.u32 %v732, 7
    %v734 = vadd.s32 %v733, 8
    %735 = vset.pattern.permute.xlu0 %v734
    %736 = vperm.xlu0 %735, %v725
    %v737 = vpop.permute.xlu0 %736
    %v738 = vperm.slane %v568, 5
    %v739 = vlaneseq
    %v740 = vshrl.u32 %v739, 7
    %742 = vset.pattern.permute.xlu0 %v740
    %743 = vperm.xlu0 %742, %v738
    %v744 = vpop.permute.xlu0 %743
    %v745 = vlaneseq
    %v746 = vshrl.u32 %v745, 7
    %v747 = vadd.s32 %v746, 8
    %748 = vset.pattern.permute.xlu0 %v747
    %749 = vperm.xlu0 %748, %v738
    %v750 = vpop.permute.xlu0 %749
    %v751 = vperm.slane %v568, 6
    %v752 = vlaneseq
    %v753 = vshrl.u32 %v752, 7
    %755 = vset.pattern.permute.xlu0 %v753
    %756 = vperm.xlu0 %755, %v751
    %v757 = vpop.permute.xlu0 %756
    %v758 = vlaneseq
    %v759 = vshrl.u32 %v758, 7
    %v760 = vadd.s32 %v759, 8
    %761 = vset.pattern.permute.xlu0 %v760
    %762 = vperm.xlu0 %761, %v751
    %v763 = vpop.permute.xlu0 %762
    %v764 = vperm.slane %v568, 7
    %v765 = vlaneseq
    %v766 = vshrl.u32 %v765, 7
    %768 = vset.pattern.permute.xlu0 %v766
    %769 = vperm.xlu0 %768, %v764
    %v770 = vpop.permute.xlu0 %769
    %v771 = vlaneseq
    %v772 = vshrl.u32 %v771, 7
    %v773 = vadd.s32 %v772, 8
    %774 = vset.pattern.permute.xlu0 %v773
    %775 = vperm.xlu0 %774, %v764
    %v776 = vpop.permute.xlu0 %775
    %v777 = vmul.f32 %v575, %v62
    %v778 = vmul.f32 %v581, %v63
    %v779 = vmul.f32 %v588, %v64
    %v780 = vmul.f32 %v594, %v65
    %v781 = vmul.f32 %v601, %v66
    %v782 = vmul.f32 %v607, %v67
    %v783 = vmul.f32 %v614, %v68
    %v784 = vmul.f32 %v620, %v69
    %v785 = vmul.f32 %v627, %v70
    %v786 = vmul.f32 %v633, %v71
    %v787 = vmul.f32 %v640, %v72
    %v788 = vmul.f32 %v646, %v73
    %v789 = vmul.f32 %v653, %v74
    %v790 = vmul.f32 %v659, %v75
    %v791 = vmul.f32 %v666, %v76
    %v792 = vmul.f32 %v672, %v77
    %v793 = vmul.f32 %v679, %v78
    %v794 = vmul.f32 %v685, %v79
    %v795 = vmul.f32 %v692, %v80
    %v796 = vmul.f32 %v698, %v81
    %v797 = vmul.f32 %v705, %v82
    %v798 = vmul.f32 %v711, %v83
    %v799 = vmul.f32 %v718, %v84
    %v800 = vmul.f32 %v724, %v85
    %v801 = vmul.f32 %v731, %v86
    %v802 = vmul.f32 %v737, %v87
    %v803 = vmul.f32 %v744, %v88
    %v804 = vmul.f32 %v750, %v89
    %v805 = vmul.f32 %v757, %v90
    %v806 = vmul.f32 %v763, %v91
    %v807 = vmul.f32 %v770, %v92
    %v808 = vmul.f32 %v776, %v93
    %v809 = vadd.f32 %v777, %v778
    %v810 = vrot.slane %v809, 4
    %v811 = vadd.f32 %v809, %v810
    %v812 = vrot.slane %v811, 2
    %v813 = vadd.f32 %v811, %v812
    %v814 = vrot.slane %v813, 1
    %v815 = vadd.f32 %v813, %v814
    %v816 = vadd.f32 %v779, %v780
    %v817 = vrot.slane %v816, 4
    %v818 = vadd.f32 %v816, %v817
    %v819 = vrot.slane %v818, 2
    %v820 = vadd.f32 %v818, %v819
    %v821 = vrot.slane %v820, 1
    %v822 = vadd.f32 %v820, %v821
    %v823 = vadd.f32 %v781, %v782
    %v824 = vrot.slane %v823, 4
    %v825 = vadd.f32 %v823, %v824
    %v826 = vrot.slane %v825, 2
    %v827 = vadd.f32 %v825, %v826
    %v828 = vrot.slane %v827, 1
    %v829 = vadd.f32 %v827, %v828
    %v830 = vadd.f32 %v783, %v784
    %v831 = vrot.slane %v830, 4
    %v832 = vadd.f32 %v830, %v831
    %v833 = vrot.slane %v832, 2
    %v834 = vadd.f32 %v832, %v833
    %v835 = vrot.slane %v834, 1
    %v836 = vadd.f32 %v834, %v835
    %v837 = vadd.f32 %v785, %v786
    %v838 = vrot.slane %v837, 4
    %v839 = vadd.f32 %v837, %v838
    %v840 = vrot.slane %v839, 2
    %v841 = vadd.f32 %v839, %v840
    %v842 = vrot.slane %v841, 1
    %v843 = vadd.f32 %v841, %v842
    %v844 = vadd.f32 %v787, %v788
    %v845 = vrot.slane %v844, 4
    %v846 = vadd.f32 %v844, %v845
    %v847 = vrot.slane %v846, 2
    %v848 = vadd.f32 %v846, %v847
    %v849 = vrot.slane %v848, 1
    %v850 = vadd.f32 %v848, %v849
    %v851 = vadd.f32 %v789, %v790
    %v852 = vrot.slane %v851, 4
    %v853 = vadd.f32 %v851, %v852
    %v854 = vrot.slane %v853, 2
    %v855 = vadd.f32 %v853, %v854
    %v856 = vrot.slane %v855, 1
    %v857 = vadd.f32 %v855, %v856
    %v858 = vadd.f32 %v791, %v792
    %v859 = vrot.slane %v858, 4
    %v860 = vadd.f32 %v858, %v859
    %v861 = vrot.slane %v860, 2
    %v862 = vadd.f32 %v860, %v861
    %v863 = vrot.slane %v862, 1
    %v864 = vadd.f32 %v862, %v863
    %v865 = vadd.f32 %v793, %v794
    %v866 = vrot.slane %v865, 4
    %v867 = vadd.f32 %v865, %v866
    %v868 = vrot.slane %v867, 2
    %v869 = vadd.f32 %v867, %v868
    %v870 = vrot.slane %v869, 1
    %v871 = vadd.f32 %v869, %v870
    %v872 = vadd.f32 %v795, %v796
    %v873 = vrot.slane %v872, 4
    %v874 = vadd.f32 %v872, %v873
    %v875 = vrot.slane %v874, 2
    %v876 = vadd.f32 %v874, %v875
    %v877 = vrot.slane %v876, 1
    %v878 = vadd.f32 %v876, %v877
    %v879 = vadd.f32 %v797, %v798
    %v880 = vrot.slane %v879, 4
    %v881 = vadd.f32 %v879, %v880
    %v882 = vrot.slane %v881, 2
    %v883 = vadd.f32 %v881, %v882
    %v884 = vrot.slane %v883, 1
    %v885 = vadd.f32 %v883, %v884
    %v886 = vadd.f32 %v799, %v800
    %v887 = vrot.slane %v886, 4
    %v888 = vadd.f32 %v886, %v887
    %v889 = vrot.slane %v888, 2
    %v890 = vadd.f32 %v888, %v889
    %v891 = vrot.slane %v890, 1
    %v892 = vadd.f32 %v890, %v891
    %v893 = vadd.f32 %v801, %v802
    %v894 = vrot.slane %v893, 4
    %v895 = vadd.f32 %v893, %v894
    %v896 = vrot.slane %v895, 2
    %v897 = vadd.f32 %v895, %v896
    %v898 = vrot.slane %v897, 1
    %v899 = vadd.f32 %v897, %v898
    %v900 = vadd.f32 %v803, %v804
    %v901 = vrot.slane %v900, 4
    %v902 = vadd.f32 %v900, %v901
    %v903 = vrot.slane %v902, 2
    %v904 = vadd.f32 %v902, %v903
    %v905 = vrot.slane %v904, 1
    %v906 = vadd.f32 %v904, %v905
    %v907 = vadd.f32 %v805, %v806
    %v908 = vrot.slane %v907, 4
    %v909 = vadd.f32 %v907, %v908
    %v910 = vrot.slane %v909, 2
    %v911 = vadd.f32 %v909, %v910
    %v912 = vrot.slane %v911, 1
    %v913 = vadd.f32 %v911, %v912
    %v914 = vadd.f32 %v807, %v808
    %v915 = vrot.slane %v914, 4
    %v916 = vadd.f32 %v914, %v915
    %v917 = vrot.slane %v916, 2
    %v918 = vadd.f32 %v916, %v917
    %v919 = vrot.slane %v918, 1
    %v920 = vadd.f32 %v918, %v919
    %v921 = vld [vmem:[#allocation5] sm:$0xff]
    %v922 = vld [vmem:[#allocation5 + $0x8] sm:$0xff]
    %v923 = vld [vmem:[#allocation5 + $0x10] sm:$0xff]
    %v924 = vld [vmem:[#allocation5 + $0x18] sm:$0xff]
    %v925 = vld [vmem:[#allocation5 + $0x20] sm:$0xff]
    %v926 = vld [vmem:[#allocation5 + $0x28] sm:$0xff]
    %v927 = vld [vmem:[#allocation5 + $0x30] sm:$0xff]
    %v928 = vld [vmem:[#allocation5 + $0x38] sm:$0xff]
    %v929 = vld [vmem:[#allocation5 + $0x40] sm:$0xff]
    %v930 = vld [vmem:[#allocation5 + $0x48] sm:$0xff]
    %v931 = vld [vmem:[#allocation5 + $0x50] sm:$0xff]
    %v932 = vld [vmem:[#allocation5 + $0x58] sm:$0xff]
    %v933 = vld [vmem:[#allocation5 + $0x60] sm:$0xff]
    %v934 = vld [vmem:[#allocation5 + $0x68] sm:$0xff]
    %v935 = vld [vmem:[#allocation5 + $0x70] sm:$0xff]
    %v936 = vld [vmem:[#allocation5 + $0x78] sm:$0xff]
    %v953 = vsel %vm521, %v822, %v815
    %v954 = vsel %vm523, %v829, %v953
    %v955 = vsel %vm525, %v836, %v954
    %v956 = vsel %vm527, %v843, %v955
    %v957 = vsel %vm529, %v850, %v956
    %v958 = vsel %vm531, %v857, %v957
    %v959 = vsel %vm533, %v864, %v958
    %v960 = vsel %vm521, %v878, %v871
    %v961 = vsel %vm523, %v885, %v960
    %v962 = vsel %vm525, %v892, %v961
    %v963 = vsel %vm527, %v899, %v962
    %v964 = vsel %vm529, %v906, %v963
    %v965 = vsel %vm531, %v913, %v964
    %v966 = vsel %vm533, %v920, %v965
    %969 = vmatpush.msra.mxu0 %v936
    %970 = vmatpush.msra.mxu0 %v935
    %971 = vmatpush.msra.mxu0 %v934
    %972 = vmatpush.msra.mxu0 %v933
    %973 = vmatpush.msra.mxu0 %v932
    %974 = vmatpush.msra.mxu0 %v931
    %975 = vmatpush.msra.mxu0 %v930
    %976 = vmatpush.msra.mxu0 %v929
    %977 = vmatpush.msra.mxu0 %v928
    %978 = vmatpush.msra.mxu0 %v927
    %979 = vmatpush.msra.mxu0 %v926
    %980 = vmatpush.msra.mxu0 %v925
    %981 = vmatpush.msra.mxu0 %v924
    %982 = vmatpush.msra.mxu0 %v923
    %983 = vmatpush.msra.mxu0 %v922
    %984 = vmatpush.msra.mxu0 %v921
    %985 = vmatmul.f32.gmra.mxu0 %v959
    %v986 = vpop.f32.mrf.mxu0
    %v987 = vadd.f32 0.0, %v986
    %988 = vmatmul.f32.gmra.mxu0 %v966
    %v989 = vpop.f32.mrf.mxu0
    %v990 = vadd.f32 0.0, %v989
    %991 = vdwg.mxu0
    %v992 = vadd.f32 %v265, %v987
    %v993 = vadd.f32 %v265, %v990
    %v994 = vld [vmem:[%s4 + $0x1] sm:$0x1]
    %v995 = vperm.slane %v994, 0
    %v996 = vmul.f32 %v227, %v995
    %v997 = vmul.f32 %v228, %v995
    %v998 = vmul.f32 %v229, %v995
    %v999 = vmul.f32 %v230, %v995
    %v1000 = vmul.f32 %v231, %v995
    %v1001 = vmul.f32 %v232, %v995
    %v1002 = vmul.f32 %v233, %v995
    %v1003 = vmul.f32 %v234, %v995
    %v1004 = vmul.f32 %v235, %v995
    %v1005 = vmul.f32 %v236, %v995
    %v1006 = vmul.f32 %v237, %v995
    %v1007 = vmul.f32 %v238, %v995
    %v1008 = vmul.f32 %v239, %v995
    %v1009 = vmul.f32 %v240, %v995
    %v1010 = vmul.f32 %v241, %v995
    %v1011 = vmul.f32 %v242, %v995
    %v1012 = vmul.f32 %v243, %v995
    %v1013 = vmul.f32 %v244, %v995
    %v1014 = vmul.f32 %v245, %v995
    %v1015 = vmul.f32 %v246, %v995
    %v1016 = vmul.f32 %v247, %v995
    %v1017 = vmul.f32 %v248, %v995
    %v1018 = vmul.f32 %v249, %v995
    %v1019 = vmul.f32 %v250, %v995
    %v1020 = vmul.f32 %v251, %v995
    %v1021 = vmul.f32 %v252, %v995
    %v1022 = vmul.f32 %v253, %v995
    %v1023 = vmul.f32 %v254, %v995
    %v1024 = vmul.f32 %v255, %v995
    %v1025 = vmul.f32 %v256, %v995
    %v1026 = vmul.f32 %v257, %v995
    %v1027 = vmul.f32 %v258, %v995
    %v1028 = vsel %vm301, %v996, 0.0
    %1029 = vadd.xlane.f32.xlu0 %v1028
    %v1030 = vpop.xlane.xlu0 %1029
    %v1031 = vsel %vm301, %v997, 0.0
    %1032 = vadd.xlane.f32.xlu0 %v1031
    %v1033 = vpop.xlane.xlu0 %1032
    %v1034 = vsel %vm301, %v998, 0.0
    %1035 = vadd.xlane.f32.xlu0 %v1034
    %v1036 = vpop.xlane.xlu0 %1035
    %v1037 = vsel %vm301, %v999, 0.0
    %1038 = vadd.xlane.f32.xlu0 %v1037
    %v1039 = vpop.xlane.xlu0 %1038
    %v1040 = vsel %vm301, %v1000, 0.0
    %1041 = vadd.xlane.f32.xlu0 %v1040
    %v1042 = vpop.xlane.xlu0 %1041
    %v1043 = vsel %vm301, %v1001, 0.0
    %1044 = vadd.xlane.f32.xlu0 %v1043
    %v1045 = vpop.xlane.xlu0 %1044
    %v1046 = vsel %vm301, %v1002, 0.0
    %1047 = vadd.xlane.f32.xlu0 %v1046
    %v1048 = vpop.xlane.xlu0 %1047
    %v1049 = vsel %vm301, %v1003, 0.0
    %1050 = vadd.xlane.f32.xlu0 %v1049
    %v1051 = vpop.xlane.xlu0 %1050
    %v1052 = vsel %vm301, %v1004, 0.0
    %1053 = vadd.xlane.f32.xlu0 %v1052
    %v1054 = vpop.xlane.xlu0 %1053
    %v1055 = vsel %vm301, %v1005, 0.0
    %1056 = vadd.xlane.f32.xlu0 %v1055
    %v1057 = vpop.xlane.xlu0 %1056
    %v1058 = vsel %vm301, %v1006, 0.0
    %1059 = vadd.xlane.f32.xlu0 %v1058
    %v1060 = vpop.xlane.xlu0 %1059
    %v1061 = vsel %vm301, %v1007, 0.0
    %1062 = vadd.xlane.f32.xlu0 %v1061
    %v1063 = vpop.xlane.xlu0 %1062
    %v1064 = vsel %vm301, %v1008, 0.0
    %1065 = vadd.xlane.f32.xlu0 %v1064
    %v1066 = vpop.xlane.xlu0 %1065
    %v1067 = vsel %vm301, %v1009, 0.0
    %1068 = vadd.xlane.f32.xlu0 %v1067
    %v1069 = vpop.xlane.xlu0 %1068
    %v1070 = vsel %vm301, %v1010, 0.0
    %1071 = vadd.xlane.f32.xlu0 %v1070
    %v1072 = vpop.xlane.xlu0 %1071
    %v1073 = vsel %vm301, %v1011, 0.0
    %1074 = vadd.xlane.f32.xlu0 %v1073
    %v1075 = vpop.xlane.xlu0 %1074
    %v1076 = vsel %vm301, %v1012, 0.0
    %1077 = vadd.xlane.f32.xlu0 %v1076
    %v1078 = vpop.xlane.xlu0 %1077
    %v1079 = vsel %vm301, %v1013, 0.0
    %1080 = vadd.xlane.f32.xlu0 %v1079
    %v1081 = vpop.xlane.xlu0 %1080
    %v1082 = vsel %vm301, %v1014, 0.0
    %1083 = vadd.xlane.f32.xlu0 %v1082
    %v1084 = vpop.xlane.xlu0 %1083
    %v1085 = vsel %vm301, %v1015, 0.0
    %1086 = vadd.xlane.f32.xlu0 %v1085
    %v1087 = vpop.xlane.xlu0 %1086
    %v1088 = vsel %vm301, %v1016, 0.0
    %1089 = vadd.xlane.f32.xlu0 %v1088
    %v1090 = vpop.xlane.xlu0 %1089
    %v1091 = vsel %vm301, %v1017, 0.0
    %1092 = vadd.xlane.f32.xlu0 %v1091
    %v1093 = vpop.xlane.xlu0 %1092
    %v1094 = vsel %vm301, %v1018, 0.0
    %1095 = vadd.xlane.f32.xlu0 %v1094
    %v1096 = vpop.xlane.xlu0 %1095
    %v1097 = vsel %vm301, %v1019, 0.0
    %1098 = vadd.xlane.f32.xlu0 %v1097
    %v1099 = vpop.xlane.xlu0 %1098
    %v1100 = vsel %vm301, %v1020, 0.0
    %1101 = vadd.xlane.f32.xlu0 %v1100
    %v1102 = vpop.xlane.xlu0 %1101
    %v1103 = vsel %vm301, %v1021, 0.0
    %1104 = vadd.xlane.f32.xlu0 %v1103
    %v1105 = vpop.xlane.xlu0 %1104
    %v1106 = vsel %vm301, %v1022, 0.0
    %1107 = vadd.xlane.f32.xlu0 %v1106
    %v1108 = vpop.xlane.xlu0 %1107
    %v1109 = vsel %vm301, %v1023, 0.0
    %1110 = vadd.xlane.f32.xlu0 %v1109
    %v1111 = vpop.xlane.xlu0 %1110
    %v1112 = vsel %vm301, %v1024, 0.0
    %1113 = vadd.xlane.f32.xlu0 %v1112
    %v1114 = vpop.xlane.xlu0 %1113
    %v1115 = vsel %vm301, %v1025, 0.0
    %1116 = vadd.xlane.f32.xlu0 %v1115
    %v1117 = vpop.xlane.xlu0 %1116
    %v1118 = vsel %vm301, %v1026, 0.0
    %1119 = vadd.xlane.f32.xlu0 %v1118
    %v1120 = vpop.xlane.xlu0 %1119
    %v1121 = vsel %vm301, %v1027, 0.0
    %1122 = vadd.xlane.f32.xlu0 %v1121
    %v1123 = vpop.xlane.xlu0 %1122
    %1124 = vset.pattern.permute.xlu0 1
    %1125 = vperm.xlu0 %1124, %v400
    %v1126 = vpop.permute.xlu0 %1125
    %v1128 = vadd.f32 %v1030, %v1126
    %v1129 = vadd.f32 %v1033, %v1126
    %v1130 = vadd.f32 %v1036, %v1126
    %v1131 = vadd.f32 %v1039, %v1126
    %v1132 = vadd.f32 %v1042, %v1126
    %v1133 = vadd.f32 %v1045, %v1126
    %v1134 = vadd.f32 %v1048, %v1126
    %v1135 = vadd.f32 %v1051, %v1126
    %v1136 = vadd.f32 %v1054, %v1126
    %v1137 = vadd.f32 %v1057, %v1126
    %v1138 = vadd.f32 %v1060, %v1126
    %v1139 = vadd.f32 %v1063, %v1126
    %v1140 = vadd.f32 %v1066, %v1126
    %v1141 = vadd.f32 %v1069, %v1126
    %v1142 = vadd.f32 %v1072, %v1126
    %v1143 = vadd.f32 %v1075, %v1126
    %v1144 = vadd.f32 %v1078, %v1126
    %v1145 = vadd.f32 %v1081, %v1126
    %v1146 = vadd.f32 %v1084, %v1126
    %v1147 = vadd.f32 %v1087, %v1126
    %v1148 = vadd.f32 %v1090, %v1126
    %v1149 = vadd.f32 %v1093, %v1126
    %v1150 = vadd.f32 %v1096, %v1126
    %v1151 = vadd.f32 %v1099, %v1126
    %v1152 = vadd.f32 %v1102, %v1126
    %v1153 = vadd.f32 %v1105, %v1126
    %v1154 = vadd.f32 %v1108, %v1126
    %v1155 = vadd.f32 %v1111, %v1126
    %v1156 = vadd.f32 %v1114, %v1126
    %v1157 = vadd.f32 %v1117, %v1126
    %v1158 = vadd.f32 %v1120, %v1126
    %v1159 = vadd.f32 %v1123, %v1126
    %v1192 = vperm.slane %v1128, %v470
    %v1193 = vperm.slane %v1129, %v472
    %v1194 = vsel %vm474, %v1193, %v1192
    %v1195 = vperm.slane %v1130, %v470
    %v1196 = vperm.slane %v1131, %v472
    %v1197 = vsel %vm474, %v1196, %v1195
    %v1198 = vperm.slane %v1132, %v470
    %v1199 = vperm.slane %v1133, %v472
    %v1200 = vsel %vm474, %v1199, %v1198
    %v1201 = vperm.slane %v1134, %v470
    %v1202 = vperm.slane %v1135, %v472
    %v1203 = vsel %vm474, %v1202, %v1201
    %v1204 = vperm.slane %v1136, %v470
    %v1205 = vperm.slane %v1137, %v472
    %v1206 = vsel %vm474, %v1205, %v1204
    %v1207 = vperm.slane %v1138, %v470
    %v1208 = vperm.slane %v1139, %v472
    %v1209 = vsel %vm474, %v1208, %v1207
    %v1210 = vperm.slane %v1140, %v470
    %v1211 = vperm.slane %v1141, %v472
    %v1212 = vsel %vm474, %v1211, %v1210
    %v1213 = vperm.slane %v1142, %v470
    %v1214 = vperm.slane %v1143, %v472
    %v1215 = vsel %vm474, %v1214, %v1213
    %v1216 = vperm.slane %v1144, %v470
    %v1217 = vperm.slane %v1145, %v472
    %v1218 = vsel %vm474, %v1217, %v1216
    %v1219 = vperm.slane %v1146, %v470
    %v1220 = vperm.slane %v1147, %v472
    %v1221 = vsel %vm474, %v1220, %v1219
    %v1222 = vperm.slane %v1148, %v470
    %v1223 = vperm.slane %v1149, %v472
    %v1224 = vsel %vm474, %v1223, %v1222
    %v1225 = vperm.slane %v1150, %v470
    %v1226 = vperm.slane %v1151, %v472
    %v1227 = vsel %vm474, %v1226, %v1225
    %v1228 = vperm.slane %v1152, %v470
    %v1229 = vperm.slane %v1153, %v472
    %v1230 = vsel %vm474, %v1229, %v1228
    %v1231 = vperm.slane %v1154, %v470
    %v1232 = vperm.slane %v1155, %v472
    %v1233 = vsel %vm474, %v1232, %v1231
    %v1234 = vperm.slane %v1156, %v470
    %v1235 = vperm.slane %v1157, %v472
    %v1236 = vsel %vm474, %v1235, %v1234
    %v1237 = vperm.slane %v1158, %v470
    %v1238 = vperm.slane %v1159, %v472
    %v1239 = vsel %vm474, %v1238, %v1237
    %v1240 = vsel %vm521, %v1197, %v1194
    %v1241 = vsel %vm523, %v1200, %v1240
    %v1242 = vsel %vm525, %v1203, %v1241
    %v1243 = vsel %vm527, %v1206, %v1242
    %v1244 = vsel %vm529, %v1209, %v1243
    %v1245 = vsel %vm531, %v1212, %v1244
    %v1246 = vsel %vm533, %v1215, %v1245
    %v1247 = vsel %vm521, %v1221, %v1218
    %v1248 = vsel %vm523, %v1224, %v1247
    %v1249 = vsel %vm525, %v1227, %v1248
    %v1250 = vsel %vm527, %v1230, %v1249
    %v1251 = vsel %vm529, %v1233, %v1250
    %v1252 = vsel %vm531, %v1236, %v1251
    %v1253 = vsel %vm533, %v1239, %v1252
    %v1256 = vsel %vm261, -1e+09, %v1246
    %v1257 = vsel %vm262, -1e+09, %v1253
    %v1258 = vsel %vm546, %v1256, -inf
    %1259 = vmax.xlane.f32.xlu0 %v1258
    %v1260 = vpop.xlane.xlu0 %1259
    %v1261 = vsel %vm546, %v1257, -inf
    %1262 = vmax.xlane.f32.xlu0 %v1261
    %v1263 = vpop.xlane.xlu0 %1262
    %v1264 = vsub.f32 %v1256, %v1260
    %v1265 = vsub.f32 %v1257, %v1263
    %v1266 = vmul.f32 %v1264, 1.442695
    %v1267 = vpow.pop %v1266
    %v1268 = vmul.f32 %v1265, 1.442695
    %v1269 = vpow.pop %v1268
    %v1270 = vsel %vm546, %v1267, 0.0
    %1271 = vadd.xlane.f32.xlu0 %v1270
    %v1272 = vpop.xlane.xlu0 %1271
    %v1273 = vsel %vm546, %v1269, 0.0
    %1274 = vadd.xlane.f32.xlu0 %v1273
    %v1275 = vpop.xlane.xlu0 %1274
    %v1276 = vrcp.pop %v1272
    %v1277 = vrcp.pop %v1275
    %v1278 = vmul.f32 %v1267, %v1276
    %v1279 = vmul.f32 %v1269, %v1277
    %v1280 = vperm.slane %v1278, 0
    %v1281 = vlaneseq
    %v1282 = vshrl.u32 %v1281, 7
    %1284 = vset.pattern.permute.xlu0 %v1282
    %1285 = vperm.xlu0 %1284, %v1280
    %v1286 = vpop.permute.xlu0 %1285
    %v1287 = vlaneseq
    %v1288 = vshrl.u32 %v1287, 7
    %v1289 = vadd.s32 %v1288, 8
    %1290 = vset.pattern.permute.xlu0 %v1289
    %1291 = vperm.xlu0 %1290, %v1280
    %v1292 = vpop.permute.xlu0 %1291
    %v1293 = vperm.slane %v1278, 1
    %v1294 = vlaneseq
    %v1295 = vshrl.u32 %v1294, 7
    %1297 = vset.pattern.permute.xlu0 %v1295
    %1298 = vperm.xlu0 %1297, %v1293
    %v1299 = vpop.permute.xlu0 %1298
    %v1300 = vlaneseq
    %v1301 = vshrl.u32 %v1300, 7
    %v1302 = vadd.s32 %v1301, 8
    %1303 = vset.pattern.permute.xlu0 %v1302
    %1304 = vperm.xlu0 %1303, %v1293
    %v1305 = vpop.permute.xlu0 %1304
    %v1306 = vperm.slane %v1278, 2
    %v1307 = vlaneseq
    %v1308 = vshrl.u32 %v1307, 7
    %1310 = vset.pattern.permute.xlu0 %v1308
    %1311 = vperm.xlu0 %1310, %v1306
    %v1312 = vpop.permute.xlu0 %1311
    %v1313 = vlaneseq
    %v1314 = vshrl.u32 %v1313, 7
    %v1315 = vadd.s32 %v1314, 8
    %1316 = vset.pattern.permute.xlu0 %v1315
    %1317 = vperm.xlu0 %1316, %v1306
    %v1318 = vpop.permute.xlu0 %1317
    %v1319 = vperm.slane %v1278, 3
    %v1320 = vlaneseq
    %v1321 = vshrl.u32 %v1320, 7
    %1323 = vset.pattern.permute.xlu0 %v1321
    %1324 = vperm.xlu0 %1323, %v1319
    %v1325 = vpop.permute.xlu0 %1324
    %v1326 = vlaneseq
    %v1327 = vshrl.u32 %v1326, 7
    %v1328 = vadd.s32 %v1327, 8
    %1329 = vset.pattern.permute.xlu0 %v1328
    %1330 = vperm.xlu0 %1329, %v1319
    %v1331 = vpop.permute.xlu0 %1330
    %v1332 = vperm.slane %v1278, 4
    %v1333 = vlaneseq
    %v1334 = vshrl.u32 %v1333, 7
    %1336 = vset.pattern.permute.xlu0 %v1334
    %1337 = vperm.xlu0 %1336, %v1332
    %v1338 = vpop.permute.xlu0 %1337
    %v1339 = vlaneseq
    %v1340 = vshrl.u32 %v1339, 7
    %v1341 = vadd.s32 %v1340, 8
    %1342 = vset.pattern.permute.xlu0 %v1341
    %1343 = vperm.xlu0 %1342, %v1332
    %v1344 = vpop.permute.xlu0 %1343
    %v1345 = vperm.slane %v1278, 5
    %v1346 = vlaneseq
    %v1347 = vshrl.u32 %v1346, 7
    %1349 = vset.pattern.permute.xlu0 %v1347
    %1350 = vperm.xlu0 %1349, %v1345
    %v1351 = vpop.permute.xlu0 %1350
    %v1352 = vlaneseq
    %v1353 = vshrl.u32 %v1352, 7
    %v1354 = vadd.s32 %v1353, 8
    %1355 = vset.pattern.permute.xlu0 %v1354
    %1356 = vperm.xlu0 %1355, %v1345
    %v1357 = vpop.permute.xlu0 %1356
    %v1358 = vperm.slane %v1278, 6
    %v1359 = vlaneseq
    %v1360 = vshrl.u32 %v1359, 7
    %1362 = vset.pattern.permute.xlu0 %v1360
    %1363 = vperm.xlu0 %1362, %v1358
    %v1364 = vpop.permute.xlu0 %1363
    %v1365 = vlaneseq
    %v1366 = vshrl.u32 %v1365, 7
    %v1367 = vadd.s32 %v1366, 8
    %1368 = vset.pattern.permute.xlu0 %v1367
    %1369 = vperm.xlu0 %1368, %v1358
    %v1370 = vpop.permute.xlu0 %1369
    %v1371 = vperm.slane %v1278, 7
    %v1372 = vlaneseq
    %v1373 = vshrl.u32 %v1372, 7
    %1375 = vset.pattern.permute.xlu0 %v1373
    %1376 = vperm.xlu0 %1375, %v1371
    %v1377 = vpop.permute.xlu0 %1376
    %v1378 = vlaneseq
    %v1379 = vshrl.u32 %v1378, 7
    %v1380 = vadd.s32 %v1379, 8
    %1381 = vset.pattern.permute.xlu0 %v1380
    %1382 = vperm.xlu0 %1381, %v1371
    %v1383 = vpop.permute.xlu0 %1382
    %v1384 = vperm.slane %v1279, 0
    %v1385 = vlaneseq
    %v1386 = vshrl.u32 %v1385, 7
    %1388 = vset.pattern.permute.xlu0 %v1386
    %1389 = vperm.xlu0 %1388, %v1384
    %v1390 = vpop.permute.xlu0 %1389
    %v1391 = vlaneseq
    %v1392 = vshrl.u32 %v1391, 7
    %v1393 = vadd.s32 %v1392, 8
    %1394 = vset.pattern.permute.xlu0 %v1393
    %1395 = vperm.xlu0 %1394, %v1384
    %v1396 = vpop.permute.xlu0 %1395
    %v1397 = vperm.slane %v1279, 1
    %v1398 = vlaneseq
    %v1399 = vshrl.u32 %v1398, 7
    %1401 = vset.pattern.permute.xlu0 %v1399
    %1402 = vperm.xlu0 %1401, %v1397
    %v1403 = vpop.permute.xlu0 %1402
    %v1404 = vlaneseq
    %v1405 = vshrl.u32 %v1404, 7
    %v1406 = vadd.s32 %v1405, 8
    %1407 = vset.pattern.permute.xlu0 %v1406
    %1408 = vperm.xlu0 %1407, %v1397
    %v1409 = vpop.permute.xlu0 %1408
    %v1410 = vperm.slane %v1279, 2
    %v1411 = vlaneseq
    %v1412 = vshrl.u32 %v1411, 7
    %1414 = vset.pattern.permute.xlu0 %v1412
    %1415 = vperm.xlu0 %1414, %v1410
    %v1416 = vpop.permute.xlu0 %1415
    %v1417 = vlaneseq
    %v1418 = vshrl.u32 %v1417, 7
    %v1419 = vadd.s32 %v1418, 8
    %1420 = vset.pattern.permute.xlu0 %v1419
    %1421 = vperm.xlu0 %1420, %v1410
    %v1422 = vpop.permute.xlu0 %1421
    %v1423 = vperm.slane %v1279, 3
    %v1424 = vlaneseq
    %v1425 = vshrl.u32 %v1424, 7
    %1427 = vset.pattern.permute.xlu0 %v1425
    %1428 = vperm.xlu0 %1427, %v1423
    %v1429 = vpop.permute.xlu0 %1428
    %v1430 = vlaneseq
    %v1431 = vshrl.u32 %v1430, 7
    %v1432 = vadd.s32 %v1431, 8
    %1433 = vset.pattern.permute.xlu0 %v1432
    %1434 = vperm.xlu0 %1433, %v1423
    %v1435 = vpop.permute.xlu0 %1434
    %v1436 = vperm.slane %v1279, 4
    %v1437 = vlaneseq
    %v1438 = vshrl.u32 %v1437, 7
    %1440 = vset.pattern.permute.xlu0 %v1438
    %1441 = vperm.xlu0 %1440, %v1436
    %v1442 = vpop.permute.xlu0 %1441
    %v1443 = vlaneseq
    %v1444 = vshrl.u32 %v1443, 7
    %v1445 = vadd.s32 %v1444, 8
    %1446 = vset.pattern.permute.xlu0 %v1445
    %1447 = vperm.xlu0 %1446, %v1436
    %v1448 = vpop.permute.xlu0 %1447
    %v1449 = vperm.slane %v1279, 5
    %v1450 = vlaneseq
    %v1451 = vshrl.u32 %v1450, 7
    %1453 = vset.pattern.permute.xlu0 %v1451
    %1454 = vperm.xlu0 %1453, %v1449
    %v1455 = vpop.permute.xlu0 %1454
    %v1456 = vlaneseq
    %v1457 = vshrl.u32 %v1456, 7
    %v1458 = vadd.s32 %v1457, 8
    %1459 = vset.pattern.permute.xlu0 %v1458
    %1460 = vperm.xlu0 %1459, %v1449
    %v1461 = vpop.permute.xlu0 %1460
    %v1462 = vperm.slane %v1279, 6
    %v1463 = vlaneseq
    %v1464 = vshrl.u32 %v1463, 7
    %1466 = vset.pattern.permute.xlu0 %v1464
    %1467 = vperm.xlu0 %1466, %v1462
    %v1468 = vpop.permute.xlu0 %1467
    %v1469 = vlaneseq
    %v1470 = vshrl.u32 %v1469, 7
    %v1471 = vadd.s32 %v1470, 8
    %1472 = vset.pattern.permute.xlu0 %v1471
    %1473 = vperm.xlu0 %1472, %v1462
    %v1474 = vpop.permute.xlu0 %1473
    %v1475 = vperm.slane %v1279, 7
    %v1476 = vlaneseq
    %v1477 = vshrl.u32 %v1476, 7
    %1479 = vset.pattern.permute.xlu0 %v1477
    %1480 = vperm.xlu0 %1479, %v1475
    %v1481 = vpop.permute.xlu0 %1480
    %v1482 = vlaneseq
    %v1483 = vshrl.u32 %v1482, 7
    %v1484 = vadd.s32 %v1483, 8
    %1485 = vset.pattern.permute.xlu0 %v1484
    %1486 = vperm.xlu0 %1485, %v1475
    %v1487 = vpop.permute.xlu0 %1486
    %v1488 = vmul.f32 %v1286, %v62
    %v1489 = vmul.f32 %v1292, %v63
    %v1490 = vmul.f32 %v1299, %v64
    %v1491 = vmul.f32 %v1305, %v65
    %v1492 = vmul.f32 %v1312, %v66
    %v1493 = vmul.f32 %v1318, %v67
    %v1494 = vmul.f32 %v1325, %v68
    %v1495 = vmul.f32 %v1331, %v69
    %v1496 = vmul.f32 %v1338, %v70
    %v1497 = vmul.f32 %v1344, %v71
    %v1498 = vmul.f32 %v1351, %v72
    %v1499 = vmul.f32 %v1357, %v73
    %v1500 = vmul.f32 %v1364, %v74
    %v1501 = vmul.f32 %v1370, %v75
    %v1502 = vmul.f32 %v1377, %v76
    %v1503 = vmul.f32 %v1383, %v77
    %v1504 = vmul.f32 %v1390, %v78
    %v1505 = vmul.f32 %v1396, %v79
    %v1506 = vmul.f32 %v1403, %v80
    %v1507 = vmul.f32 %v1409, %v81
    %v1508 = vmul.f32 %v1416, %v82
    %v1509 = vmul.f32 %v1422, %v83
    %v1510 = vmul.f32 %v1429, %v84
    %v1511 = vmul.f32 %v1435, %v85
    %v1512 = vmul.f32 %v1442, %v86
    %v1513 = vmul.f32 %v1448, %v87
    %v1514 = vmul.f32 %v1455, %v88
    %v1515 = vmul.f32 %v1461, %v89
    %v1516 = vmul.f32 %v1468, %v90
    %v1517 = vmul.f32 %v1474, %v91
    %v1518 = vmul.f32 %v1481, %v92
    %v1519 = vmul.f32 %v1487, %v93
    %v1520 = vadd.f32 %v1488, %v1489
    %v1521 = vrot.slane %v1520, 4
    %v1522 = vadd.f32 %v1520, %v1521
    %v1523 = vrot.slane %v1522, 2
    %v1524 = vadd.f32 %v1522, %v1523
    %v1525 = vrot.slane %v1524, 1
    %v1526 = vadd.f32 %v1524, %v1525
    %v1527 = vadd.f32 %v1490, %v1491
    %v1528 = vrot.slane %v1527, 4
    %v1529 = vadd.f32 %v1527, %v1528
    %v1530 = vrot.slane %v1529, 2
    %v1531 = vadd.f32 %v1529, %v1530
    %v1532 = vrot.slane %v1531, 1
    %v1533 = vadd.f32 %v1531, %v1532
    %v1534 = vadd.f32 %v1492, %v1493
    %v1535 = vrot.slane %v1534, 4
    %v1536 = vadd.f32 %v1534, %v1535
    %v1537 = vrot.slane %v1536, 2
    %v1538 = vadd.f32 %v1536, %v1537
    %v1539 = vrot.slane %v1538, 1
    %v1540 = vadd.f32 %v1538, %v1539
    %v1541 = vadd.f32 %v1494, %v1495
    %v1542 = vrot.slane %v1541, 4
    %v1543 = vadd.f32 %v1541, %v1542
    %v1544 = vrot.slane %v1543, 2
    %v1545 = vadd.f32 %v1543, %v1544
    %v1546 = vrot.slane %v1545, 1
    %v1547 = vadd.f32 %v1545, %v1546
    %v1548 = vadd.f32 %v1496, %v1497
    %v1549 = vrot.slane %v1548, 4
    %v1550 = vadd.f32 %v1548, %v1549
    %v1551 = vrot.slane %v1550, 2
    %v1552 = vadd.f32 %v1550, %v1551
    %v1553 = vrot.slane %v1552, 1
    %v1554 = vadd.f32 %v1552, %v1553
    %v1555 = vadd.f32 %v1498, %v1499
    %v1556 = vrot.slane %v1555, 4
    %v1557 = vadd.f32 %v1555, %v1556
    %v1558 = vrot.slane %v1557, 2
    %v1559 = vadd.f32 %v1557, %v1558
    %v1560 = vrot.slane %v1559, 1
    %v1561 = vadd.f32 %v1559, %v1560
    %v1562 = vadd.f32 %v1500, %v1501
    %v1563 = vrot.slane %v1562, 4
    %v1564 = vadd.f32 %v1562, %v1563
    %v1565 = vrot.slane %v1564, 2
    %v1566 = vadd.f32 %v1564, %v1565
    %v1567 = vrot.slane %v1566, 1
    %v1568 = vadd.f32 %v1566, %v1567
    %v1569 = vadd.f32 %v1502, %v1503
    %v1570 = vrot.slane %v1569, 4
    %v1571 = vadd.f32 %v1569, %v1570
    %v1572 = vrot.slane %v1571, 2
    %v1573 = vadd.f32 %v1571, %v1572
    %v1574 = vrot.slane %v1573, 1
    %v1575 = vadd.f32 %v1573, %v1574
    %v1576 = vadd.f32 %v1504, %v1505
    %v1577 = vrot.slane %v1576, 4
    %v1578 = vadd.f32 %v1576, %v1577
    %v1579 = vrot.slane %v1578, 2
    %v1580 = vadd.f32 %v1578, %v1579
    %v1581 = vrot.slane %v1580, 1
    %v1582 = vadd.f32 %v1580, %v1581
    %v1583 = vadd.f32 %v1506, %v1507
    %v1584 = vrot.slane %v1583, 4
    %v1585 = vadd.f32 %v1583, %v1584
    %v1586 = vrot.slane %v1585, 2
    %v1587 = vadd.f32 %v1585, %v1586
    %v1588 = vrot.slane %v1587, 1
    %v1589 = vadd.f32 %v1587, %v1588
    %v1590 = vadd.f32 %v1508, %v1509
    %v1591 = vrot.slane %v1590, 4
    %v1592 = vadd.f32 %v1590, %v1591
    %v1593 = vrot.slane %v1592, 2
    %v1594 = vadd.f32 %v1592, %v1593
    %v1595 = vrot.slane %v1594, 1
    %v1596 = vadd.f32 %v1594, %v1595
    %v1597 = vadd.f32 %v1510, %v1511
    %v1598 = vrot.slane %v1597, 4
    %v1599 = vadd.f32 %v1597, %v1598
    %v1600 = vrot.slane %v1599, 2
    %v1601 = vadd.f32 %v1599, %v1600
    %v1602 = vrot.slane %v1601, 1
    %v1603 = vadd.f32 %v1601, %v1602
    %v1604 = vadd.f32 %v1512, %v1513
    %v1605 = vrot.slane %v1604, 4
    %v1606 = vadd.f32 %v1604, %v1605
    %v1607 = vrot.slane %v1606, 2
    %v1608 = vadd.f32 %v1606, %v1607
    %v1609 = vrot.slane %v1608, 1
    %v1610 = vadd.f32 %v1608, %v1609
    %v1611 = vadd.f32 %v1514, %v1515
    %v1612 = vrot.slane %v1611, 4
    %v1613 = vadd.f32 %v1611, %v1612
    %v1614 = vrot.slane %v1613, 2
    %v1615 = vadd.f32 %v1613, %v1614
    %v1616 = vrot.slane %v1615, 1
    %v1617 = vadd.f32 %v1615, %v1616
    %v1618 = vadd.f32 %v1516, %v1517
    %v1619 = vrot.slane %v1618, 4
    %v1620 = vadd.f32 %v1618, %v1619
    %v1621 = vrot.slane %v1620, 2
    %v1622 = vadd.f32 %v1620, %v1621
    %v1623 = vrot.slane %v1622, 1
    %v1624 = vadd.f32 %v1622, %v1623
    %v1625 = vadd.f32 %v1518, %v1519
    %v1626 = vrot.slane %v1625, 4
    %v1627 = vadd.f32 %v1625, %v1626
    %v1628 = vrot.slane %v1627, 2
    %v1629 = vadd.f32 %v1627, %v1628
    %v1630 = vrot.slane %v1629, 1
    %v1631 = vadd.f32 %v1629, %v1630
    %s1632 = scalar_lea.vmem [#allocation5], 128
    %v1633 = vld [vmem:[%s1632] sm:$0xff]
    %v1634 = vld [vmem:[%s1632 + $0x8] sm:$0xff]
    %v1635 = vld [vmem:[%s1632 + $0x10] sm:$0xff]
    %v1636 = vld [vmem:[%s1632 + $0x18] sm:$0xff]
    %v1637 = vld [vmem:[%s1632 + $0x20] sm:$0xff]
    %v1638 = vld [vmem:[%s1632 + $0x28] sm:$0xff]
    %v1639 = vld [vmem:[%s1632 + $0x30] sm:$0xff]
    %v1640 = vld [vmem:[%s1632 + $0x38] sm:$0xff]
    %v1641 = vld [vmem:[%s1632 + $0x40] sm:$0xff]
    %v1642 = vld [vmem:[%s1632 + $0x48] sm:$0xff]
    %v1643 = vld [vmem:[%s1632 + $0x50] sm:$0xff]
    %v1644 = vld [vmem:[%s1632 + $0x58] sm:$0xff]
    %v1645 = vld [vmem:[%s1632 + $0x60] sm:$0xff]
    %v1646 = vld [vmem:[%s1632 + $0x68] sm:$0xff]
    %v1647 = vld [vmem:[%s1632 + $0x70] sm:$0xff]
    %v1648 = vld [vmem:[%s1632 + $0x78] sm:$0xff]
    %v1665 = vsel %vm521, %v1533, %v1526
    %v1666 = vsel %vm523, %v1540, %v1665
    %v1667 = vsel %vm525, %v1547, %v1666
    %v1668 = vsel %vm527, %v1554, %v1667
    %v1669 = vsel %vm529, %v1561, %v1668
    %v1670 = vsel %vm531, %v1568, %v1669
    %v1671 = vsel %vm533, %v1575, %v1670
    %v1672 = vsel %vm521, %v1589, %v1582
    %v1673 = vsel %vm523, %v1596, %v1672
    %v1674 = vsel %vm525, %v1603, %v1673
    %v1675 = vsel %vm527, %v1610, %v1674
    %v1676 = vsel %vm529, %v1617, %v1675
    %v1677 = vsel %vm531, %v1624, %v1676
    %v1678 = vsel %vm533, %v1631, %v1677
    %1681 = vmatpush.msra.mxu0 %v1648
    %1682 = vmatpush.msra.mxu0 %v1647
    %1683 = vmatpush.msra.mxu0 %v1646
    %1684 = vmatpush.msra.mxu0 %v1645
    %1685 = vmatpush.msra.mxu0 %v1644
    %1686 = vmatpush.msra.mxu0 %v1643
    %1687 = vmatpush.msra.mxu0 %v1642
    %1688 = vmatpush.msra.mxu0 %v1641
    %1689 = vmatpush.msra.mxu0 %v1640
    %1690 = vmatpush.msra.mxu0 %v1639
    %1691 = vmatpush.msra.mxu0 %v1638
    %1692 = vmatpush.msra.mxu0 %v1637
    %1693 = vmatpush.msra.mxu0 %v1636
    %1694 = vmatpush.msra.mxu0 %v1635
    %1695 = vmatpush.msra.mxu0 %v1634
    %1696 = vmatpush.msra.mxu0 %v1633
    %1697 = vmatmul.f32.gmra.mxu0 %v1671
    %v1698 = vpop.f32.mrf.mxu0
    %v1699 = vadd.f32 0.0, %v1698
    %1700 = vmatmul.f32.gmra.mxu0 %v1678
    %v1701 = vpop.f32.mrf.mxu0
    %v1702 = vadd.f32 0.0, %v1701
    %1703 = vdwg.mxu0
    %v1704 = vadd.f32 %v992, %v1699
    %v1705 = vadd.f32 %v993, %v1702
    %1706 = vst [vmem:[#allocation7] sm:$0xff] %v1704
    %1707 = vst [vmem:[#allocation7 + $0x8] sm:$0xff] %v1705
    // Predicated region
    $region42: #{tpu_custom_call.1} parent=1 // pred_check
      _
    $region43: #{tpu_custom_call.1} parent=1 // pred_check_branch
      %1709 = sbr.rel (0) target = $region45
    $region44: #{tpu_custom_call.1} parent=1 // pred_region
      %1711 = vsyncadd [#allocation4], 0
      %s1712 = sshll.u32 [#allocation7], 4
      %s1713 = int_to_ptr.vmem [resolvable:$true] %s1712
      %s1714 = sshll.u32 %s8, 4
      %s1715 = int_to_ptr.hbm [resolvable:$true] %s1714
      %1720 = dma.vmem_to_hbm [thread:$0]  %s1713, 256, %s1715, [#allocation4], 128, 128, 8
    $region45: #{tpu_custom_call.1} parent=1 // pred_fallthru
      _
    // Predicated region
    $region46: #{tpu_custom_call.1} parent=1 // pred_check
      _
    $region47: #{tpu_custom_call.1} parent=1 // pred_check_branch
      %1722 = sbr.rel (0) target = $region49
    $region48: #{tpu_custom_call.1} parent=1 // pred_region
      %1724 = dma.done [#allocation4], 256
    $region49: #{tpu_custom_call.1} parent=1 // pred_fallthru
      _
    %1725 = vsyncpa [#allocation3], 1
    %1726 = vsyncpa [#allocation6], 1
    %1727 = vsyncpa [#allocation4], 1

</llo_original>
